<compile_context>
chip_gen: v6e
topology: v6e:2x2x1
jax: 0.10.0
libtpu: 0.0.40
codegen_flags: <defaults>
</compile_context>

<pallas_src>
import functools
import math

import jax
import jax.numpy as jnp
from jax import lax
from jax.experimental import pallas as pl
from jax.experimental.pallas import tpu as pltpu  # noqa: F401  (TPU backend)

# ----------------------------- hyper-parameters -----------------------------
NODE_CHANNELS = 32
PAIR_CHANNELS = 32
N_ATOM_ENC = 16
N_BOND_ENC = 4
N_ATOM_PAIR_ENC = N_BOND_ENC + 4          # 8
N_ATOM_POS_ENC = 8                         # unused in forward
N_STEREO_ENC = 8
PI_HEADS = 8                               # PathConvStack default n_heads
MAX_PATH_LENGTH = 4
N_STACKS = 2

# synthetic graph sizes
NUM_U = 8        # atoms
NUM_UV = 16      # atom-atom edges (transformer stacks are identity)
NUM_IJK = 12     # frames
NUM_UIJK = 24    # atom-frame pairs
NUM_IJKL = 20    # frame-frame (stereo) quadruples
NUM_UIJKL = 40   # path-extension records
NUM_I = 6        # sampled frames
NUM_UI = 10      # sampled atom-frame pairs


def _gelu(x):
    # exact (erf-based) GELU, matching torch.nn.GELU(approximate='none'); kept f32
    return 0.5 * x * (1.0 + lax.erf(x * (1.0 / math.sqrt(2.0))))


# ------------------------------ fused Pallas kernel ------------------------------
def _piformer_kernel(
    # graph features
    atom_enc_ref, pair_enc_ref, af_enc_ref, stereo_enc_ref,
    # dense one-hot gather/scatter operators (bf16, exact for {0,1})
    m_jkl_ref, m_jkl_t_ref, g_ijkl_ref, g_uijk_ref, s_ujkl_ref,
    # input-layer parameters
    atom_w_ref, atom_b_ref, pair_w_ref, pair_b_ref, stereo_w_ref, stereo_b_ref,
    prop_w1_ref, prop_b1_ref, prop_w2_ref, prop_b2_ref,
    # stacked PathConvStack parameters (leading dim = n_stacks)
    wv_ref, wk_ref, mlp_w1_ref, mlp_b1_ref, mlp_w2_ref, mlp_b2_ref,
    # outputs
    atom_out_ref, pair_out_ref, prop_out_ref,
    *, n_heads, max_pi_length, n_stacks):
    """Whole PIFormer forward (minus the undefined TransformerLayer stacks).

    One-hot operators (all {0,1}, exact in bf16; math in f32):
      m_jkl   [Eq, S] : one_hot(gather_idx_ijkl_jkl)
      m_jkl_t [S, Eq] : its transpose (segment-sum operator)
      g_ijkl  [E, Eq] : one_hot(gather_idx_Uijkl_ijkl)
      g_uijk  [E, N]  : one_hot(gather_idx_Uijkl_Uijk)
      s_ujkl  [N, E]  : one_hot(gather_idx_Uijkl_ujkl).T  (segment-sum scatter)
    """
    f32 = jnp.float32

    # ---- input projections ----
    atom_out_ref[...] = (
        jnp.dot(atom_enc_ref[...], atom_w_ref[...], preferred_element_type=f32)
        + atom_b_ref[...])
    pair_out_ref[...] = (
        jnp.dot(pair_enc_ref[...], pair_w_ref[...], preferred_element_type=f32)
        + pair_b_ref[...])
    stereo_attr = (
        jnp.dot(stereo_enc_ref[...], stereo_w_ref[...], preferred_element_type=f32)
        + stereo_b_ref[...])

    # input_prop_layer: GELUMLP = Linear(in,in) -> GELU -> Linear(in,out)
    h0 = jnp.dot(af_enc_ref[...], prop_w1_ref[...], preferred_element_type=f32) + prop_b1_ref[...]
    prop = jnp.dot(_gelu(h0), prop_w2_ref[...], preferred_element_type=f32) + prop_b2_ref[...]

    # one-hot operators: bf16 on the wire, f32 in-register (exact)
    m_jkl = m_jkl_ref[...].astype(f32)       # [Eq, S]
    m_jkl_t = m_jkl_t_ref[...].astype(f32)   # [S, Eq]
    g_ijkl = g_ijkl_ref[...].astype(f32)     # [E, Eq]
    g_uijk = g_uijk_ref[...].astype(f32)     # [E, N]
    s_ujkl = s_ujkl_ref[...].astype(f32)     # [N, E]

    # loop-invariant segment mask for the vectorized per-segment max (hoisted:
    # JAX does not CSE broadcast_in_dim, so build it once, not per stack/head).
    seg_mask3 = m_jkl_t[:, :, None] > 0.5    # [S, Eq, 1] bool
    neg_big = jnp.float32(-1e30)             # finite: avoids 0 * inf = NaN in matmul gathers

    # TODO(synk): graph_transformer_stacks (TransformerLayer) undefined in the
    # reference snippet -> identity between PathConvStack blocks.
    for stack in range(n_stacks):
        wv = wv_ref[stack]                   # [C, H]
        wk = wk_ref[stack]                   # [C, H]
        w1 = mlp_w1_ref[stack]               # [(T+1)H, (T+1)H]
        b1 = mlp_b1_ref[stack]               # [1, (T+1)H]
        w2 = mlp_w2_ref[stack]               # [(T+1)H, C]
        b2 = mlp_b2_ref[stack]               # [1, C]

        # triangle_pair_kernel = stereo_attr @ Wk   (no bias)
        tpk = jnp.dot(stereo_attr, wk, preferred_element_type=f32)         # [Eq, H]

        # segment_softmax over gather_idx_ijkl_jkl, vectorized over all heads:
        #   per-segment max via a masked 3-D reduce, gathered back by one-hot matmuls.
        masked = jnp.where(seg_mask3, tpk[None, :, :], neg_big)            # [S, Eq, H]
        smax = jnp.max(masked, axis=1)                                     # [S, H]
        gathered_max = jnp.dot(m_jkl, smax, preferred_element_type=f32)    # [Eq, H]
        ex = jnp.exp(tpk - gathered_max)                                   # <= 1, f32
        seg_sum = jnp.dot(m_jkl_t, ex, preferred_element_type=f32)         # [S, H]
        gathered_sum = jnp.dot(m_jkl, seg_sum, preferred_element_type=f32) # [Eq, H] (>= 1)
        alpha = ex / gathered_sum

        # kernel = alpha[gather_idx_Uijkl_ijkl]
        kern = jnp.dot(g_ijkl, alpha, preferred_element_type=f32)          # [E, H]

        # path-integral recurrence; collect all v_t and apply the prop-update
        # MLP's first layer as ONE [N,(T+1)H] @ [(T+1)H, mlp_in] matmul.
        v = jnp.dot(prop, wv, preferred_element_type=f32)                  # [N, H]
        steps = [v]
        for _ in range(max_pi_length):
            gathered = jnp.dot(g_uijk, steps[-1], preferred_element_type=f32)   # [E, H]
            steps.append(jnp.dot(s_ujkl, kern * gathered,
                                 preferred_element_type=f32))                   # [N, H]
        feat = jnp.concatenate(steps, axis=1)                              # [N, (T+1)H]

        h1 = _gelu(jnp.dot(feat, w1, preferred_element_type=f32) + b1)
        upd = jnp.dot(h1, w2, preferred_element_type=f32) + b2             # [N, C]
        # PathConvStack internal residual (+prop) AND PIFormer outer residual (+prop)
        # both exist in the reference -> net update = mlp_out + 2*prop.
        prop = upd + 2.0 * prop

    prop_out_ref[...] = prop


# ------------------------------ jitted glue + call ------------------------------
@functools.partial(jax.jit, static_argnames=("num_ijk", "num_uijk"))
def _piformer_core(atom_enc, pair_enc, af_enc, stereo_enc,
                   idx_ijkl_jkl, idx_uijkl_ijkl, idx_uijkl_uijk, idx_uijkl_ujkl,
                   idx_ui_uijk, params, *, num_ijk, num_uijk):
    bf16 = jnp.bfloat16
    # dense one-hot gather/scatter operators (exact in bf16 -> half the DMA bytes)
    m_jkl = jax.nn.one_hot(idx_ijkl_jkl, num_ijk, dtype=bf16)                  # [Eq, S]
    m_jkl_t = m_jkl.T                                                           # [S, Eq]
    g_ijkl = jax.nn.one_hot(idx_uijkl_ijkl, stereo_enc.shape[0], dtype=bf16)    # [E, Eq]
    g_uijk = jax.nn.one_hot(idx_uijkl_uijk, num_uijk, dtype=bf16)               # [E, N]
    s_ujkl = jax.nn.one_hot(idx_uijkl_ujkl, num_uijk, dtype=bf16).T             # [N, E]

    kernel = functools.partial(_piformer_kernel, n_heads=PI_HEADS,
                               max_pi_length=MAX_PATH_LENGTH, n_stacks=N_STACKS)
    out_shapes = (
        jax.ShapeDtypeStruct((atom_enc.shape[0], NODE_CHANNELS), jnp.float32),
        jax.ShapeDtypeStruct((pair_enc.shape[0], PAIR_CHANNELS), jnp.float32),
        jax.ShapeDtypeStruct((af_enc.shape[0], PAIR_CHANNELS), jnp.float32),
    )
    atom_attr, atom_pair_attr, prop_attr = pl.pallas_call(
        kernel, out_shape=out_shapes,
    )(
        atom_enc, pair_enc, af_enc, stereo_enc,
        m_jkl, m_jkl_t, g_ijkl, g_uijk, s_ujkl,
        params["input_atom_w"], params["input_atom_b"].reshape(1, -1),
        params["input_pair_w"], params["input_pair_b"].reshape(1, -1),
        params["input_stereo_w"], params["input_stereo_b"].reshape(1, -1),
        params["input_prop_w1"], params["input_prop_b1"].reshape(1, -1),
        params["input_prop_w2"], params["input_prop_b2"].reshape(1, -1),
        params["pi_wv"], params["pi_wk"],
        params["pi_mlp_w1"], params["pi_mlp_b1"],
        params["pi_mlp_w2"], params["pi_mlp_b2"],
    )
    af_pair_attr = prop_attr[idx_ui_uijk]
    return atom_attr, atom_pair_attr, prop_attr, af_pair_attr


# ------------------------------ parameter init ------------------------------
def init_params(key):
    keys = iter(jax.random.split(key, 32))

    def w(shape, scale=0.1):
        return scale * jax.random.normal(next(keys), shape, jnp.float32)

    prop_in = 3 * N_ATOM_PAIR_ENC
    mlp_in = PI_HEADS * (MAX_PATH_LENGTH + 1)
    return {
        "input_atom_w": w((N_ATOM_ENC, NODE_CHANNELS)),
        "input_atom_b": w((NODE_CHANNELS,)),
        "input_pair_w": w((N_ATOM_PAIR_ENC, PAIR_CHANNELS)),
        "input_pair_b": w((PAIR_CHANNELS,)),
        "input_stereo_w": w((N_STEREO_ENC, PAIR_CHANNELS)),
        "input_stereo_b": w((PAIR_CHANNELS,)),
        # GELUMLP (no hidden): Linear(in,in) -> GELU -> Linear(in,out)
        "input_prop_w1": w((prop_in, prop_in)),
        "input_prop_b1": w((prop_in,)),
        "input_prop_w2": w((prop_in, PAIR_CHANNELS)),
        "input_prop_b2": w((PAIR_CHANNELS,)),
        # PathConvStack params, stacked along a leading n_stacks dim so the fused
        # kernel indexes them with ref[stack] (single DMA for both blocks).
        "pi_wv": w((N_STACKS, PAIR_CHANNELS, PI_HEADS)),      # prop_value_layer (no bias)
        "pi_wk": w((N_STACKS, PAIR_CHANNELS, PI_HEADS)),      # triangle_pair_kernel_layer
        "pi_mlp_w1": w((N_STACKS, mlp_in, mlp_in)),           # prop_update_mlp
        "pi_mlp_b1": w((N_STACKS, 1, mlp_in)),
        "pi_mlp_w2": w((N_STACKS, mlp_in, PAIR_CHANNELS)),
        "pi_mlp_b2": w((N_STACKS, 1, PAIR_CHANNELS)),
    }


# ------------------------------- forward pass -------------------------------
def piformer_forward(batch, params):
    feats = batch["features"]
    idx = batch["indexer"]
    meta = batch["metadata"]

    feats["lig_atom_token"] = feats["atom_encodings"]
    feats["lig_pair_token"] = feats["atom_pair_encodings"]

    # masking_rate = 0.0 -> torch.rand(...) > 0.0 is (a.s.) all True; masking is a no-op.

    meta["num_atom"] = meta["num_u"]
    meta["num_frame"] = meta["num_ijk"]

    atom_attr, atom_pair_attr, prop_attr, af_pair_attr = _piformer_core(
        feats["atom_encodings"], feats["atom_pair_encodings"],
        feats["atom_frame_pair_encodings"], feats["stereo_chemistry_encodings"],
        idx["gather_idx_ijkl_jkl"], idx["gather_idx_Uijkl_ijkl"],
        idx["gather_idx_Uijkl_Uijk"], idx["gather_idx_Uijkl_ujkl"],
        idx["gather_idx_UI_Uijk"], params,
        num_ijk=meta["num_ijk"], num_uijk=meta["num_Uijk"])

    # triangle_attr is initialized to zeros and (with the transformer stacks as
    # identity) never updated, so the sampled-frame gather is zeros.
    triangle_attr = jnp.zeros((meta["num_frame"], NODE_CHANNELS), jnp.float32)
    sampled_frame = triangle_attr[idx["gather_idx_I_ijk"]]

    meta["num_lig_atm"] = meta["num_u"]
    meta["num_lig_trp"] = meta["num_I"]
    feats["lig_atom_attr"] = atom_attr
    feats["lig_trp_attr"] = sampled_frame
    feats["lig_atom_pair_attr"] = atom_pair_attr
    feats["lig_prop_attr"] = prop_attr
    feats["lig_af_pair_attr"] = af_pair_attr
    return batch


# ------------------------------------ main -----------------------------------
if __name__ == "__main__":
    key = jax.random.PRNGKey(0)
    k_feat, k_idx, k_par = jax.random.split(key, 3)

    fk = jax.random.split(k_feat, 4)
    features = {
        "atom_encodings": jax.random.normal(fk[0], (NUM_U, N_ATOM_ENC), jnp.float32),
        "atom_pair_encodings": jax.random.normal(fk[1], (NUM_UV, N_ATOM_PAIR_ENC), jnp.float32),
        "atom_frame_pair_encodings": jax.random.normal(
            fk[2], (NUM_UIJK, 3 * N_ATOM_PAIR_ENC), jnp.float32),
        "stereo_chemistry_encodings": jax.random.normal(
            fk[3], (NUM_IJKL, N_STEREO_ENC), jnp.float32),
    }

    ik = jax.random.split(k_idx, 6)
    indexer = {
        "gather_idx_ijkl_jkl": jax.random.randint(ik[0], (NUM_IJKL,), 0, NUM_IJK),
        "gather_idx_Uijkl_ijkl": jax.random.randint(ik[1], (NUM_UIJKL,), 0, NUM_IJKL),
        "gather_idx_Uijkl_Uijk": jax.random.randint(ik[2], (NUM_UIJKL,), 0, NUM_UIJK),
        "gather_idx_Uijkl_ujkl": jax.random.randint(ik[3], (NUM_UIJKL,), 0, NUM_UIJK),
        "gather_idx_I_ijk": jax.random.randint(ik[4], (NUM_I,), 0, NUM_IJK),
        "gather_idx_UI_Uijk": jax.random.randint(ik[5], (NUM_UI,), 0, NUM_UIJK),
    }

    metadata = {"num_u": NUM_U, "num_ijk": NUM_IJK, "num_Uijk": NUM_UIJK, "num_I": NUM_I}
    batch = {"features": features, "indexer": indexer, "metadata": metadata}

    params = init_params(k_par)
    out_batch = piformer_forward(batch, params)

    for name in ("lig_atom_attr", "lig_trp_attr", "lig_atom_pair_attr",
                 "lig_prop_attr", "lig_af_pair_attr"):
        jax.block_until_ready(out_batch["features"][name])

    print("KERNEL_OK")
</pallas_src>

<mosaic_0001>
module attributes {stable_mosaic.version = 11 : i64} {
  func.func @_piformer_kernel(%arg0: memref<8x16xf32, #tpu.memory_space<vmem>>, %arg1: memref<16x8xf32, #tpu.memory_space<vmem>>, %arg2: memref<24x24xf32, #tpu.memory_space<vmem>>, %arg3: memref<20x8xf32, #tpu.memory_space<vmem>>, %arg4: memref<20x12xbf16, #tpu.memory_space<vmem>>, %arg5: memref<12x20xbf16, #tpu.memory_space<vmem>>, %arg6: memref<40x20xbf16, #tpu.memory_space<vmem>>, %arg7: memref<40x24xbf16, #tpu.memory_space<vmem>>, %arg8: memref<24x40xbf16, #tpu.memory_space<vmem>>, %arg9: memref<16x32xf32, #tpu.memory_space<vmem>>, %arg10: memref<1x32xf32, #tpu.memory_space<vmem>>, %arg11: memref<8x32xf32, #tpu.memory_space<vmem>>, %arg12: memref<1x32xf32, #tpu.memory_space<vmem>>, %arg13: memref<8x32xf32, #tpu.memory_space<vmem>>, %arg14: memref<1x32xf32, #tpu.memory_space<vmem>>, %arg15: memref<24x24xf32, #tpu.memory_space<vmem>>, %arg16: memref<1x24xf32, #tpu.memory_space<vmem>>, %arg17: memref<24x32xf32, #tpu.memory_space<vmem>>, %arg18: memref<1x32xf32, #tpu.memory_space<vmem>>, %arg19: memref<2x32x8xf32, #tpu.memory_space<vmem>>, %arg20: memref<2x32x8xf32, #tpu.memory_space<vmem>>, %arg21: memref<2x40x40xf32, #tpu.memory_space<vmem>>, %arg22: memref<2x1x40xf32, #tpu.memory_space<vmem>>, %arg23: memref<2x40x32xf32, #tpu.memory_space<vmem>>, %arg24: memref<2x1x32xf32, #tpu.memory_space<vmem>>, %arg25: memref<8x32xf32, #tpu.memory_space<vmem>>, %arg26: memref<16x32xf32, #tpu.memory_space<vmem>>, %arg27: memref<24x32xf32, #tpu.memory_space<vmem>>) attributes {dimension_semantics = [], scalar_prefetch = 0 : i64, scratch_operands = 0 : i64, tpu.core_type = #tpu.core_type<tc>} {
    %c0 = arith.constant 0 : index
    %c0_0 = arith.constant 0 : index
    %0 = vector.load %arg0[%c0, %c0_0] : memref<8x16xf32, #tpu.memory_space<vmem>>, vector<8x16xf32>
    %c0_1 = arith.constant 0 : index
    %c0_2 = arith.constant 0 : index
    %1 = vector.load %arg9[%c0_1, %c0_2] : memref<16x32xf32, #tpu.memory_space<vmem>>, vector<16x32xf32>
    %cst = arith.constant dense<0.000000e+00> : vector<8x32xf32>
    %2 = tpu.matmul %0, %1, %cst {dimension_numbers = #tpu.dot_dimension_numbers<[1], [0], [0], [1], [0, 0, 1, 1], [], []>} : vector<8x16xf32>, vector<16x32xf32>, vector<8x32xf32> -> vector<8x32xf32>
    %c0_3 = arith.constant 0 : index
    %c0_4 = arith.constant 0 : index
    %3 = vector.load %arg10[%c0_3, %c0_4] : memref<1x32xf32, #tpu.memory_space<vmem>>, vector<1x32xf32>
    %4 = vector.broadcast %3 : vector<1x32xf32> to vector<8x32xf32>
    %5 = arith.addf %2, %4 : vector<8x32xf32>
    %c0_5 = arith.constant 0 : index
    %c0_6 = arith.constant 0 : index
    %6 = vector.load %arg25[%c0_5, %c0_6] : memref<8x32xf32, #tpu.memory_space<vmem>>, vector<8x32xf32>
    tpu.vector_store %arg25[%c0_5, %c0_6], %5 {strides = array<i32>} : memref<8x32xf32, #tpu.memory_space<vmem>>, vector<8x32xf32>,
    %c0_7 = arith.constant 0 : index
    %c0_8 = arith.constant 0 : index
    %7 = vector.load %arg1[%c0_7, %c0_8] : memref<16x8xf32, #tpu.memory_space<vmem>>, vector<16x8xf32>
    %c0_9 = arith.constant 0 : index
    %c0_10 = arith.constant 0 : index
    %8 = vector.load %arg11[%c0_9, %c0_10] : memref<8x32xf32, #tpu.memory_space<vmem>>, vector<8x32xf32>
    %cst_11 = arith.constant dense<0.000000e+00> : vector<16x32xf32>
    %9 = tpu.matmul %7, %8, %cst_11 {dimension_numbers = #tpu.dot_dimension_numbers<[1], [0], [0], [1], [0, 0, 1, 1], [], []>} : vector<16x8xf32>, vector<8x32xf32>, vector<16x32xf32> -> vector<16x32xf32>
    %c0_12 = arith.constant 0 : index
    %c0_13 = arith.constant 0 : index
    %10 = vector.load %arg12[%c0_12, %c0_13] : memref<1x32xf32, #tpu.memory_space<vmem>>, vector<1x32xf32>
    %11 = vector.broadcast %10 : vector<1x32xf32> to vector<16x32xf32>
    %12 = arith.addf %9, %11 : vector<16x32xf32>
    %c0_14 = arith.constant 0 : index
    %c0_15 = arith.constant 0 : index
    %13 = vector.load %arg26[%c0_14, %c0_15] : memref<16x32xf32, #tpu.memory_space<vmem>>, vector<16x32xf32>
    tpu.vector_store %arg26[%c0_14, %c0_15], %12 {strides = array<i32>} : memref<16x32xf32, #tpu.memory_space<vmem>>, vector<16x32xf32>,
    %c0_16 = arith.constant 0 : index
    %c0_17 = arith.constant 0 : index
    %14 = vector.load %arg3[%c0_16, %c0_17] : memref<20x8xf32, #tpu.memory_space<vmem>>, vector<20x8xf32>
    %c0_18 = arith.constant 0 : index
    %c0_19 = arith.constant 0 : index
    %15 = vector.load %arg13[%c0_18, %c0_19] : memref<8x32xf32, #tpu.memory_space<vmem>>, vector<8x32xf32>
    %cst_20 = arith.constant dense<0.000000e+00> : vector<20x32xf32>
    %16 = tpu.matmul %14, %15, %cst_20 {dimension_numbers = #tpu.dot_dimension_numbers<[1], [0], [0], [1], [0, 0, 1, 1], [], []>} : vector<20x8xf32>, vector<8x32xf32>, vector<20x32xf32> -> vector<20x32xf32>
    %c0_21 = arith.constant 0 : index
    %c0_22 = arith.constant 0 : index
    %17 = vector.load %arg14[%c0_21, %c0_22] : memref<1x32xf32, #tpu.memory_space<vmem>>, vector<1x32xf32>
    %18 = vector.broadcast %17 : vector<1x32xf32> to vector<20x32xf32>
    %19 = arith.addf %16, %18 : vector<20x32xf32>
    %c0_23 = arith.constant 0 : index
    %c0_24 = arith.constant 0 : index
    %20 = vector.load %arg2[%c0_23, %c0_24] : memref<24x24xf32, #tpu.memory_space<vmem>>, vector<24x24xf32>
    %c0_25 = arith.constant 0 : index
    %c0_26 = arith.constant 0 : index
    %21 = vector.load %arg15[%c0_25, %c0_26] : memref<24x24xf32, #tpu.memory_space<vmem>>, vector<24x24xf32>
    %cst_27 = arith.constant dense<0.000000e+00> : vector<24x24xf32>
    %22 = tpu.matmul %20, %21, %cst_27 {dimension_numbers = #tpu.dot_dimension_numbers<[1], [0], [0], [1], [0, 0, 1, 1], [], []>} : vector<24x24xf32>, vector<24x24xf32>, vector<24x24xf32> -> vector<24x24xf32>
    %c0_28 = arith.constant 0 : index
    %c0_29 = arith.constant 0 : index
    %23 = vector.load %arg16[%c0_28, %c0_29] : memref<1x24xf32, #tpu.memory_space<vmem>>, vector<1x24xf32>
    %24 = vector.broadcast %23 : vector<1x24xf32> to vector<24x24xf32>
    %25 = arith.addf %22, %24 : vector<24x24xf32>
    %cst_30 = arith.constant 5.000000e-01 : f32
    %26 = vector.broadcast %cst_30 : f32 to vector<24x24xf32>
    %27 = arith.mulf %26, %25 : vector<24x24xf32>
    %cst_31 = arith.constant 0.707106769 : f32
    %28 = vector.broadcast %cst_31 : f32 to vector<24x24xf32>
    %29 = arith.mulf %25, %28 : vector<24x24xf32>
    %30 = math.erf %29 : vector<24x24xf32>
    %cst_32 = arith.constant 1.000000e+00 : f32
    %31 = vector.broadcast %cst_32 : f32 to vector<24x24xf32>
    %32 = arith.addf %31, %30 : vector<24x24xf32>
    %33 = arith.mulf %27, %32 : vector<24x24xf32>
    %c0_33 = arith.constant 0 : index
    %c0_34 = arith.constant 0 : index
    %34 = vector.load %arg17[%c0_33, %c0_34] : memref<24x32xf32, #tpu.memory_space<vmem>>, vector<24x32xf32>
    %cst_35 = arith.constant dense<0.000000e+00> : vector<24x32xf32>
    %35 = tpu.matmul %33, %34, %cst_35 {dimension_numbers = #tpu.dot_dimension_numbers<[1], [0], [0], [1], [0, 0, 1, 1], [], []>} : vector<24x24xf32>, vector<24x32xf32>, vector<24x32xf32> -> vector<24x32xf32>
    %c0_36 = arith.constant 0 : index
    %c0_37 = arith.constant 0 : index
    %36 = vector.load %arg18[%c0_36, %c0_37] : memref<1x32xf32, #tpu.memory_space<vmem>>, vector<1x32xf32>
    %37 = vector.broadcast %36 : vector<1x32xf32> to vector<24x32xf32>
    %38 = arith.addf %35, %37 : vector<24x32xf32>
    %c0_38 = arith.constant 0 : index
    %c0_39 = arith.constant 0 : index
    %39 = vector.load %arg4[%c0_38, %c0_39] : memref<20x12xbf16, #tpu.memory_space<vmem>>, vector<20x12xbf16>
    %40 = arith.extf %39 : vector<20x12xbf16> to vector<20x12xf32>
    %c0_40 = arith.constant 0 : index
    %c0_41 = arith.constant 0 : index
    %41 = vector.load %arg5[%c0_40, %c0_41] : memref<12x20xbf16, #tpu.memory_space<vmem>>, vector<12x20xbf16>
    %42 = arith.extf %41 : vector<12x20xbf16> to vector<12x20xf32>
    %c0_42 = arith.constant 0 : index
    %c0_43 = arith.constant 0 : index
    %43 = vector.load %arg6[%c0_42, %c0_43] : memref<40x20xbf16, #tpu.memory_space<vmem>>, vector<40x20xbf16>
    %44 = arith.extf %43 : vector<40x20xbf16> to vector<40x20xf32>
    %c0_44 = arith.constant 0 : index
    %c0_45 = arith.constant 0 : index
    %45 = vector.load %arg7[%c0_44, %c0_45] : memref<40x24xbf16, #tpu.memory_space<vmem>>, vector<40x24xbf16>
    %46 = arith.extf %45 : vector<40x24xbf16> to vector<40x24xf32>
    %c0_46 = arith.constant 0 : index
    %c0_47 = arith.constant 0 : index
    %47 = vector.load %arg8[%c0_46, %c0_47] : memref<24x40xbf16, #tpu.memory_space<vmem>>, vector<24x40xbf16>
    %48 = arith.extf %47 : vector<24x40xbf16> to vector<24x40xf32>
    %49 = vector.shape_cast %42 : vector<12x20xf32> to vector<12x20x1xf32>
    %cst_48 = arith.constant 5.000000e-01 : f32
    %50 = vector.broadcast %cst_48 : f32 to vector<12x20x1xf32>
    %51 = arith.cmpf ogt, %49, %50 : vector<12x20x1xf32>
    %c0_49 = arith.constant 0 : index
    %c0_50 = arith.constant 0 : index
    %c0_51 = arith.constant 0 : index
    %52 = vector.load %arg19[%c0_49, %c0_50, %c0_51] : memref<2x32x8xf32, #tpu.memory_space<vmem>>, vector<1x32x8xf32>
    %53 = vector.shape_cast %52 : vector<1x32x8xf32> to vector<32x8xf32>
    %c0_52 = arith.constant 0 : index
    %c0_53 = arith.constant 0 : index
    %c0_54 = arith.constant 0 : index
    %54 = vector.load %arg20[%c0_52, %c0_53, %c0_54] : memref<2x32x8xf32, #tpu.memory_space<vmem>>, vector<1x32x8xf32>
    %55 = vector.shape_cast %54 : vector<1x32x8xf32> to vector<32x8xf32>
    %c0_55 = arith.constant 0 : index
    %c0_56 = arith.constant 0 : index
    %c0_57 = arith.constant 0 : index
    %56 = vector.load %arg21[%c0_55, %c0_56, %c0_57] : memref<2x40x40xf32, #tpu.memory_space<vmem>>, vector<1x40x40xf32>
    %57 = vector.shape_cast %56 : vector<1x40x40xf32> to vector<40x40xf32>
    %c0_58 = arith.constant 0 : index
    %c0_59 = arith.constant 0 : index
    %c0_60 = arith.constant 0 : index
    %58 = vector.load %arg22[%c0_58, %c0_59, %c0_60] : memref<2x1x40xf32, #tpu.memory_space<vmem>>, vector<1x1x40xf32>
    %59 = vector.shape_cast %58 : vector<1x1x40xf32> to vector<1x40xf32>
    %c0_61 = arith.constant 0 : index
    %c0_62 = arith.constant 0 : index
    %c0_63 = arith.constant 0 : index
    %60 = vector.load %arg23[%c0_61, %c0_62, %c0_63] : memref<2x40x32xf32, #tpu.memory_space<vmem>>, vector<1x40x32xf32>
    %61 = vector.shape_cast %60 : vector<1x40x32xf32> to vector<40x32xf32>
    %c0_64 = arith.constant 0 : index
    %c0_65 = arith.constant 0 : index
    %c0_66 = arith.constant 0 : index
    %62 = vector.load %arg24[%c0_64, %c0_65, %c0_66] : memref<2x1x32xf32, #tpu.memory_space<vmem>>, vector<1x1x32xf32>
    %63 = vector.shape_cast %62 : vector<1x1x32xf32> to vector<1x32xf32>
    %cst_67 = arith.constant dense<0.000000e+00> : vector<20x8xf32>
    %64 = tpu.matmul %19, %55, %cst_67 {dimension_numbers = #tpu.dot_dimension_numbers<[1], [0], [0], [1], [0, 0, 1, 1], [], []>} : vector<20x32xf32>, vector<32x8xf32>, vector<20x8xf32> -> vector<20x8xf32>
    %65 = vector.shape_cast %64 : vector<20x8xf32> to vector<1x20x8xf32>
    %cst_68 = arith.constant -1.000000e+30 : f32
    %66 = vector.shape_cast %51 : vector<12x20x1xi1> to vector<12x20x1xi1>
    %67 = vector.broadcast %66 : vector<12x20x1xi1> to vector<12x20x8xi1>
    %68 = vector.shape_cast %65 : vector<1x20x8xf32> to vector<1x20x8xf32>
    %69 = vector.broadcast %68 : vector<1x20x8xf32> to vector<12x20x8xf32>
    %70 = vector.broadcast %cst_68 : f32 to vector<12x20x8xf32>
    %71 = arith.select %67, %69, %70 : vector<12x20x8xi1>, vector<12x20x8xf32>
    %cst_69 = arith.constant dense<0xFF800000> : vector<12x8xf32>
    %72 = vector.multi_reduction <maximumf>, %71, %cst_69 [1] : vector<12x20x8xf32> to vector<12x8xf32>
    %cst_70 = arith.constant dense<0.000000e+00> : vector<20x8xf32>
    %73 = tpu.matmul %40, %72, %cst_70 {dimension_numbers = #tpu.dot_dimension_numbers<[1], [0], [0], [1], [0, 0, 1, 1], [], []>} : vector<20x12xf32>, vector<12x8xf32>, vector<20x8xf32> -> vector<20x8xf32>
    %74 = arith.subf %64, %73 : vector<20x8xf32>
    %75 = math.exp %74 : vector<20x8xf32>
    %cst_71 = arith.constant dense<0.000000e+00> : vector<12x8xf32>
    %76 = tpu.matmul %42, %75, %cst_71 {dimension_numbers = #tpu.dot_dimension_numbers<[1], [0], [0], [1], [0, 0, 1, 1], [], []>} : vector<12x20xf32>, vector<20x8xf32>, vector<12x8xf32> -> vector<12x8xf32>
    %cst_72 = arith.constant dense<0.000000e+00> : vector<20x8xf32>
    %77 = tpu.matmul %40, %76, %cst_72 {dimension_numbers = #tpu.dot_dimension_numbers<[1], [0], [0], [1], [0, 0, 1, 1], [], []>} : vector<20x12xf32>, vector<12x8xf32>, vector<20x8xf32> -> vector<20x8xf32>
    %78 = arith.divf %75, %77 : vector<20x8xf32>
    %cst_73 = arith.constant dense<0.000000e+00> : vector<40x8xf32>
    %79 = tpu.matmul %44, %78, %cst_73 {dimension_numbers = #tpu.dot_dimension_numbers<[1], [0], [0], [1], [0, 0, 1, 1], [], []>} : vector<40x20xf32>, vector<20x8xf32>, vector<40x8xf32> -> vector<40x8xf32>
    %cst_74 = arith.constant dense<0.000000e+00> : vector<24x8xf32>
    %80 = tpu.matmul %38, %53, %cst_74 {dimension_numbers = #tpu.dot_dimension_numbers<[1], [0], [0], [1], [0, 0, 1, 1], [], []>} : vector<24x32xf32>, vector<32x8xf32>, vector<24x8xf32> -> vector<24x8xf32>
    %cst_75 = arith.constant dense<0.000000e+00> : vector<40x8xf32>
    %81 = tpu.matmul %46, %80, %cst_75 {dimension_numbers = #tpu.dot_dimension_numbers<[1], [0], [0], [1], [0, 0, 1, 1], [], []>} : vector<40x24xf32>, vector<24x8xf32>, vector<40x8xf32> -> vector<40x8xf32>
    %82 = arith.mulf %79, %81 : vector<40x8xf32>
    %cst_76 = arith.constant dense<0.000000e+00> : vector<24x8xf32>
    %83 = tpu.matmul %48, %82, %cst_76 {dimension_numbers = #tpu.dot_dimension_numbers<[1], [0], [0], [1], [0, 0, 1, 1], [], []>} : vector<24x40xf32>, vector<40x8xf32>, vector<24x8xf32> -> vector<24x8xf32>
    %cst_77 = arith.constant dense<0.000000e+00> : vector<40x8xf32>
    %84 = tpu.matmul %46, %83, %cst_77 {dimension_numbers = #tpu.dot_dimension_numbers<[1], [0], [0], [1], [0, 0, 1, 1], [], []>} : vector<40x24xf32>, vector<24x8xf32>, vector<40x8xf32> -> vector<40x8xf32>
    %85 = arith.mulf %79, %84 : vector<40x8xf32>
    %cst_78 = arith.constant dense<0.000000e+00> : vector<24x8xf32>
    %86 = tpu.matmul %48, %85, %cst_78 {dimension_numbers = #tpu.dot_dimension_numbers<[1], [0], [0], [1], [0, 0, 1, 1], [], []>} : vector<24x40xf32>, vector<40x8xf32>, vector<24x8xf32> -> vector<24x8xf32>
    %cst_79 = arith.constant dense<0.000000e+00> : vector<40x8xf32>
    %87 = tpu.matmul %46, %86, %cst_79 {dimension_numbers = #tpu.dot_dimension_numbers<[1], [0], [0], [1], [0, 0, 1, 1], [], []>} : vector<40x24xf32>, vector<24x8xf32>, vector<40x8xf32> -> vector<40x8xf32>
    %88 = arith.mulf %79, %87 : vector<40x8xf32>
    %cst_80 = arith.constant dense<0.000000e+00> : vector<24x8xf32>
    %89 = tpu.matmul %48, %88, %cst_80 {dimension_numbers = #tpu.dot_dimension_numbers<[1], [0], [0], [1], [0, 0, 1, 1], [], []>} : vector<24x40xf32>, vector<40x8xf32>, vector<24x8xf32> -> vector<24x8xf32>
    %cst_81 = arith.constant dense<0.000000e+00> : vector<40x8xf32>
    %90 = tpu.matmul %46, %89, %cst_81 {dimension_numbers = #tpu.dot_dimension_numbers<[1], [0], [0], [1], [0, 0, 1, 1], [], []>} : vector<40x24xf32>, vector<24x8xf32>, vector<40x8xf32> -> vector<40x8xf32>
    %91 = arith.mulf %79, %90 : vector<40x8xf32>
    %cst_82 = arith.constant dense<0.000000e+00> : vector<24x8xf32>
    %92 = tpu.matmul %48, %91, %cst_82 {dimension_numbers = #tpu.dot_dimension_numbers<[1], [0], [0], [1], [0, 0, 1, 1], [], []>} : vector<24x40xf32>, vector<40x8xf32>, vector<24x8xf32> -> vector<24x8xf32>
    %93 = tpu.concatenate %80, %83, %86, %89, %92 in 1 : vector<24x8xf32>, vector<24x8xf32>, vector<24x8xf32>, vector<24x8xf32>, vector<24x8xf32> -> vector<24x40xf32>
    %cst_83 = arith.constant dense<0.000000e+00> : vector<24x40xf32>
    %94 = tpu.matmul %93, %57, %cst_83 {dimension_numbers = #tpu.dot_dimension_numbers<[1], [0], [0], [1], [0, 0, 1, 1], [], []>} : vector<24x40xf32>, vector<40x40xf32>, vector<24x40xf32> -> vector<24x40xf32>
    %95 = vector.broadcast %59 : vector<1x40xf32> to vector<24x40xf32>
    %96 = arith.addf %94, %95 : vector<24x40xf32>
    %cst_84 = arith.constant 5.000000e-01 : f32
    %97 = vector.broadcast %cst_84 : f32 to vector<24x40xf32>
    %98 = arith.mulf %97, %96 : vector<24x40xf32>
    %cst_85 = arith.constant 0.707106769 : f32
    %99 = vector.broadcast %cst_85 : f32 to vector<24x40xf32>
    %100 = arith.mulf %96, %99 : vector<24x40xf32>
    %101 = math.erf %100 : vector<24x40xf32>
    %cst_86 = arith.constant 1.000000e+00 : f32
    %102 = vector.broadcast %cst_86 : f32 to vector<24x40xf32>
    %103 = arith.addf %102, %101 : vector<24x40xf32>
    %104 = arith.mulf %98, %103 : vector<24x40xf32>
    %cst_87 = arith.constant dense<0.000000e+00> : vector<24x32xf32>
    %105 = tpu.matmul %104, %61, %cst_87 {dimension_numbers = #tpu.dot_dimension_numbers<[1], [0], [0], [1], [0, 0, 1, 1], [], []>} : vector<24x40xf32>, vector<40x32xf32>, vector<24x32xf32> -> vector<24x32xf32>
    %106 = vector.broadcast %63 : vector<1x32xf32> to vector<24x32xf32>
    %107 = arith.addf %105, %106 : vector<24x32xf32>
    %cst_88 = arith.constant 2.000000e+00 : f32
    %108 = vector.broadcast %cst_88 : f32 to vector<24x32xf32>
    %109 = arith.mulf %108, %38 : vector<24x32xf32>
    %110 = arith.addf %107, %109 : vector<24x32xf32>
    %c1 = arith.constant 1 : index
    %c0_89 = arith.constant 0 : index
    %c0_90 = arith.constant 0 : index
    %111 = vector.load %arg19[%c1, %c0_89, %c0_90] : memref<2x32x8xf32, #tpu.memory_space<vmem>>, vector<1x32x8xf32>
    %112 = vector.shape_cast %111 : vector<1x32x8xf32> to vector<32x8xf32>
    %c1_91 = arith.constant 1 : index
    %c0_92 = arith.constant 0 : index
    %c0_93 = arith.constant 0 : index
    %113 = vector.load %arg20[%c1_91, %c0_92, %c0_93] : memref<2x32x8xf32, #tpu.memory_space<vmem>>, vector<1x32x8xf32>
    %114 = vector.shape_cast %113 : vector<1x32x8xf32> to vector<32x8xf32>
    %c1_94 = arith.constant 1 : index
    %c0_95 = arith.constant 0 : index
    %c0_96 = arith.constant 0 : index
    %115 = vector.load %arg21[%c1_94, %c0_95, %c0_96] : memref<2x40x40xf32, #tpu.memory_space<vmem>>, vector<1x40x40xf32>
    %116 = vector.shape_cast %115 : vector<1x40x40xf32> to vector<40x40xf32>
    %c1_97 = arith.constant 1 : index
    %c0_98 = arith.constant 0 : index
    %c0_99 = arith.constant 0 : index
    %117 = vector.load %arg22[%c1_97, %c0_98, %c0_99] : memref<2x1x40xf32, #tpu.memory_space<vmem>>, vector<1x1x40xf32>
    %118 = vector.shape_cast %117 : vector<1x1x40xf32> to vector<1x40xf32>
    %c1_100 = arith.constant 1 : index
    %c0_101 = arith.constant 0 : index
    %c0_102 = arith.constant 0 : index
    %119 = vector.load %arg23[%c1_100, %c0_101, %c0_102] : memref<2x40x32xf32, #tpu.memory_space<vmem>>, vector<1x40x32xf32>
    %120 = vector.shape_cast %119 : vector<1x40x32xf32> to vector<40x32xf32>
    %c1_103 = arith.constant 1 : index
    %c0_104 = arith.constant 0 : index
    %c0_105 = arith.constant 0 : index
    %121 = vector.load %arg24[%c1_103, %c0_104, %c0_105] : memref<2x1x32xf32, #tpu.memory_space<vmem>>, vector<1x1x32xf32>
    %122 = vector.shape_cast %121 : vector<1x1x32xf32> to vector<1x32xf32>
    %cst_106 = arith.constant dense<0.000000e+00> : vector<20x8xf32>
    %123 = tpu.matmul %19, %114, %cst_106 {dimension_numbers = #tpu.dot_dimension_numbers<[1], [0], [0], [1], [0, 0, 1, 1], [], []>} : vector<20x32xf32>, vector<32x8xf32>, vector<20x8xf32> -> vector<20x8xf32>
    %124 = vector.shape_cast %123 : vector<20x8xf32> to vector<1x20x8xf32>
    %cst_107 = arith.constant -1.000000e+30 : f32
    %125 = vector.shape_cast %51 : vector<12x20x1xi1> to vector<12x20x1xi1>
    %126 = vector.broadcast %125 : vector<12x20x1xi1> to vector<12x20x8xi1>
    %127 = vector.shape_cast %124 : vector<1x20x8xf32> to vector<1x20x8xf32>
    %128 = vector.broadcast %127 : vector<1x20x8xf32> to vector<12x20x8xf32>
    %129 = vector.broadcast %cst_107 : f32 to vector<12x20x8xf32>
    %130 = arith.select %126, %128, %129 : vector<12x20x8xi1>, vector<12x20x8xf32>
    %cst_108 = arith.constant dense<0xFF800000> : vector<12x8xf32>
    %131 = vector.multi_reduction <maximumf>, %130, %cst_108 [1] : vector<12x20x8xf32> to vector<12x8xf32>
    %cst_109 = arith.constant dense<0.000000e+00> : vector<20x8xf32>
    %132 = tpu.matmul %40, %131, %cst_109 {dimension_numbers = #tpu.dot_dimension_numbers<[1], [0], [0], [1], [0, 0, 1, 1], [], []>} : vector<20x12xf32>, vector<12x8xf32>, vector<20x8xf32> -> vector<20x8xf32>
    %133 = arith.subf %123, %132 : vector<20x8xf32>
    %134 = math.exp %133 : vector<20x8xf32>
    %cst_110 = arith.constant dense<0.000000e+00> : vector<12x8xf32>
    %135 = tpu.matmul %42, %134, %cst_110 {dimension_numbers = #tpu.dot_dimension_numbers<[1], [0], [0], [1], [0, 0, 1, 1], [], []>} : vector<12x20xf32>, vector<20x8xf32>, vector<12x8xf32> -> vector<12x8xf32>
    %cst_111 = arith.constant dense<0.000000e+00> : vector<20x8xf32>
    %136 = tpu.matmul %40, %135, %cst_111 {dimension_numbers = #tpu.dot_dimension_numbers<[1], [0], [0], [1], [0, 0, 1, 1], [], []>} : vector<20x12xf32>, vector<12x8xf32>, vector<20x8xf32> -> vector<20x8xf32>
    %137 = arith.divf %134, %136 : vector<20x8xf32>
    %cst_112 = arith.constant dense<0.000000e+00> : vector<40x8xf32>
    %138 = tpu.matmul %44, %137, %cst_112 {dimension_numbers = #tpu.dot_dimension_numbers<[1], [0], [0], [1], [0, 0, 1, 1], [], []>} : vector<40x20xf32>, vector<20x8xf32>, vector<40x8xf32> -> vector<40x8xf32>
    %cst_113 = arith.constant dense<0.000000e+00> : vector<24x8xf32>
    %139 = tpu.matmul %110, %112, %cst_113 {dimension_numbers = #tpu.dot_dimension_numbers<[1], [0], [0], [1], [0, 0, 1, 1], [], []>} : vector<24x32xf32>, vector<32x8xf32>, vector<24x8xf32> -> vector<24x8xf32>
    %cst_114 = arith.constant dense<0.000000e+00> : vector<40x8xf32>
    %140 = tpu.matmul %46, %139, %cst_114 {dimension_numbers = #tpu.dot_dimension_numbers<[1], [0], [0], [1], [0, 0, 1, 1], [], []>} : vector<40x24xf32>, vector<24x8xf32>, vector<40x8xf32> -> vector<40x8xf32>
    %141 = arith.mulf %138, %140 : vector<40x8xf32>
    %cst_115 = arith.constant dense<0.000000e+00> : vector<24x8xf32>
    %142 = tpu.matmul %48, %141, %cst_115 {dimension_numbers = #tpu.dot_dimension_numbers<[1], [0], [0], [1], [0, 0, 1, 1], [], []>} : vector<24x40xf32>, vector<40x8xf32>, vector<24x8xf32> -> vector<24x8xf32>
    %cst_116 = arith.constant dense<0.000000e+00> : vector<40x8xf32>
    %143 = tpu.matmul %46, %142, %cst_116 {dimension_numbers = #tpu.dot_dimension_numbers<[1], [0], [0], [1], [0, 0, 1, 1], [], []>} : vector<40x24xf32>, vector<24x8xf32>, vector<40x8xf32> -> vector<40x8xf32>
    %144 = arith.mulf %138, %143 : vector<40x8xf32>
    %cst_117 = arith.constant dense<0.000000e+00> : vector<24x8xf32>
    %145 = tpu.matmul %48, %144, %cst_117 {dimension_numbers = #tpu.dot_dimension_numbers<[1], [0], [0], [1], [0, 0, 1, 1], [], []>} : vector<24x40xf32>, vector<40x8xf32>, vector<24x8xf32> -> vector<24x8xf32>
    %cst_118 = arith.constant dense<0.000000e+00> : vector<40x8xf32>
    %146 = tpu.matmul %46, %145, %cst_118 {dimension_numbers = #tpu.dot_dimension_numbers<[1], [0], [0], [1], [0, 0, 1, 1], [], []>} : vector<40x24xf32>, vector<24x8xf32>, vector<40x8xf32> -> vector<40x8xf32>
    %147 = arith.mulf %138, %146 : vector<40x8xf32>
    %cst_119 = arith.constant dense<0.000000e+00> : vector<24x8xf32>
    %148 = tpu.matmul %48, %147, %cst_119 {dimension_numbers = #tpu.dot_dimension_numbers<[1], [0], [0], [1], [0, 0, 1, 1], [], []>} : vector<24x40xf32>, vector<40x8xf32>, vector<24x8xf32> -> vector<24x8xf32>
    %cst_120 = arith.constant dense<0.000000e+00> : vector<40x8xf32>
    %149 = tpu.matmul %46, %148, %cst_120 {dimension_numbers = #tpu.dot_dimension_numbers<[1], [0], [0], [1], [0, 0, 1, 1], [], []>} : vector<40x24xf32>, vector<24x8xf32>, vector<40x8xf32> -> vector<40x8xf32>
    %150 = arith.mulf %138, %149 : vector<40x8xf32>
    %cst_121 = arith.constant dense<0.000000e+00> : vector<24x8xf32>
    %151 = tpu.matmul %48, %150, %cst_121 {dimension_numbers = #tpu.dot_dimension_numbers<[1], [0], [0], [1], [0, 0, 1, 1], [], []>} : vector<24x40xf32>, vector<40x8xf32>, vector<24x8xf32> -> vector<24x8xf32>
    %152 = tpu.concatenate %139, %142, %145, %148, %151 in 1 : vector<24x8xf32>, vector<24x8xf32>, vector<24x8xf32>, vector<24x8xf32>, vector<24x8xf32> -> vector<24x40xf32>
    %cst_122 = arith.constant dense<0.000000e+00> : vector<24x40xf32>
    %153 = tpu.matmul %152, %116, %cst_122 {dimension_numbers = #tpu.dot_dimension_numbers<[1], [0], [0], [1], [0, 0, 1, 1], [], []>} : vector<24x40xf32>, vector<40x40xf32>, vector<24x40xf32> -> vector<24x40xf32>
    %154 = vector.broadcast %118 : vector<1x40xf32> to vector<24x40xf32>
    %155 = arith.addf %153, %154 : vector<24x40xf32>
    %cst_123 = arith.constant 5.000000e-01 : f32
    %156 = vector.broadcast %cst_123 : f32 to vector<24x40xf32>
    %157 = arith.mulf %156, %155 : vector<24x40xf32>
    %cst_124 = arith.constant 0.707106769 : f32
    %158 = vector.broadcast %cst_124 : f32 to vector<24x40xf32>
    %159 = arith.mulf %155, %158 : vector<24x40xf32>
    %160 = math.erf %159 : vector<24x40xf32>
    %cst_125 = arith.constant 1.000000e+00 : f32
    %161 = vector.broadcast %cst_125 : f32 to vector<24x40xf32>
    %162 = arith.addf %161, %160 : vector<24x40xf32>
    %163 = arith.mulf %157, %162 : vector<24x40xf32>
    %cst_126 = arith.constant dense<0.000000e+00> : vector<24x32xf32>
    %164 = tpu.matmul %163, %120, %cst_126 {dimension_numbers = #tpu.dot_dimension_numbers<[1], [0], [0], [1], [0, 0, 1, 1], [], []>} : vector<24x40xf32>, vector<40x32xf32>, vector<24x32xf32> -> vector<24x32xf32>
    %165 = vector.broadcast %122 : vector<1x32xf32> to vector<24x32xf32>
    %166 = arith.addf %164, %165 : vector<24x32xf32>
    %cst_127 = arith.constant 2.000000e+00 : f32
    %167 = vector.broadcast %cst_127 : f32 to vector<24x32xf32>
    %168 = arith.mulf %167, %110 : vector<24x32xf32>
    %169 = arith.addf %166, %168 : vector<24x32xf32>
    %c0_128 = arith.constant 0 : index
    %c0_129 = arith.constant 0 : index
    %170 = vector.load %arg27[%c0_128, %c0_129] : memref<24x32xf32, #tpu.memory_space<vmem>>, vector<24x32xf32>
    tpu.vector_store %arg27[%c0_128, %c0_129], %169 {strides = array<i32>} : memref<24x32xf32, #tpu.memory_space<vmem>>, vector<24x32xf32>,
    return
  }
}

</mosaic_0001>

<llo_original>
// kernel: _piformer_core.1
$region0: #{_piformer_core.1}
  #allocation0 [shape = 'u32[]', space=smem, size = 0x4, offset = 0x4, fixed_abs, tag = 'smem constant byte address 0x4 - core index']
  #allocation1 [shape = 'u32[144,128]{1,0:T(1,128)}', space=vmem, size = 0x12000, scoped, tag = 'internal scratch']
  %s0 = inlined_call_operand.vmem [shape: f32[8,16], index: 0, kind: input, shape index: {}]
  %s1 = inlined_call_operand.vmem [shape: f32[16,8], index: 1, kind: input, shape index: {}]
  %s2 = inlined_call_operand.vmem [shape: f32[24,24], index: 2, kind: input, shape index: {}]
  %s3 = inlined_call_operand.vmem [shape: f32[20,8], index: 3, kind: input, shape index: {}]
  %s4 = inlined_call_operand.vmem [shape: bf16[20,12], index: 4, kind: input, shape index: {}]
  %s5 = inlined_call_operand.vmem [shape: bf16[12,20], index: 5, kind: input, shape index: {}]
  %s6 = inlined_call_operand.vmem [shape: bf16[40,20], index: 6, kind: input, shape index: {}]
  %s7 = inlined_call_operand.vmem [shape: bf16[40,24], index: 7, kind: input, shape index: {}]
  %s8 = inlined_call_operand.vmem [shape: bf16[24,40], index: 8, kind: input, shape index: {}]
  %s9 = inlined_call_operand.vmem [shape: f32[16,32], index: 9, kind: input, shape index: {}]
  %s10 = inlined_call_operand.vmem [shape: f32[1,32], index: 10, kind: input, shape index: {}]
  %s11 = inlined_call_operand.vmem [shape: f32[8,32], index: 11, kind: input, shape index: {}]
  %s12 = inlined_call_operand.vmem [shape: f32[1,32], index: 12, kind: input, shape index: {}]
  %s13 = inlined_call_operand.vmem [shape: f32[8,32], index: 13, kind: input, shape index: {}]
  %s14 = inlined_call_operand.vmem [shape: f32[1,32], index: 14, kind: input, shape index: {}]
  %s15 = inlined_call_operand.vmem [shape: f32[24,24], index: 15, kind: input, shape index: {}]
  %s16 = inlined_call_operand.vmem [shape: f32[1,24], index: 16, kind: input, shape index: {}]
  %s17 = inlined_call_operand.vmem [shape: f32[24,32], index: 17, kind: input, shape index: {}]
  %s18 = inlined_call_operand.vmem [shape: f32[1,32], index: 18, kind: input, shape index: {}]
  %s19 = inlined_call_operand.vmem [shape: f32[2,32,8], index: 19, kind: input, shape index: {}]
  %s20 = inlined_call_operand.vmem [shape: f32[2,32,8], index: 20, kind: input, shape index: {}]
  %s21 = inlined_call_operand.vmem [shape: f32[2,40,40], index: 21, kind: input, shape index: {}]
  %s22 = inlined_call_operand.vmem [shape: f32[2,1,40], index: 22, kind: input, shape index: {}]
  %s23 = inlined_call_operand.vmem [shape: f32[2,40,32], index: 23, kind: input, shape index: {}]
  %s24 = inlined_call_operand.vmem [shape: f32[2,1,32], index: 24, kind: input, shape index: {}]
  %s25 = inlined_call_operand.hbm [shape: f32[8,32], index: 25, kind: output, shape index: {0}]
  %s26 = inlined_call_operand.hbm [shape: f32[16,32], index: 26, kind: output, shape index: {1}]
  %s27 = inlined_call_operand.vmem [shape: f32[24,32], index: 27, kind: output, shape index: {2}]
  %28 = xla_tuple %s25, %s26, %s27
  %s29 = sld [smem:[#allocation0]]
  $region126: #{_piformer_core.1} parent=0
    _
  %s31 = ssub.s32 1, %s29
  %s32 = scalar_select 0, %s31, %s29
  $region1: #{_piformer_core.1} parent=0
    #allocation2 [shape = 'u8[4096]{0}', space=vmem, size = 0x1000, scoped, tag = 'output window, operand 0, single buffered']
    #allocation3 [shape = 's32[1]{0}', space=sflag, size = 0x4, scoped, tag = 'scoped memory for _piformer_core.1']
    #allocation4 [shape = 'u8[8192]{0}', space=vmem, size = 0x2000, scoped, tag = 'output window, operand 1, single buffered']
    #allocation5 [shape = 's32[1]{0}', space=sflag, size = 0x4, scoped, tag = 'scoped memory for _piformer_core.1']
    %33 = vsyncpa [#allocation3], 0
    %34 = vsyncpa [#allocation5], 0
    // Predicated region
    $region2: #{_piformer_core.1} parent=1 // pred_check
      _
    $region3: #{_piformer_core.1} parent=1 // pred_check_branch
      %36 = sbr.rel (0) target = $region5
    $region4: #{_piformer_core.1} parent=1 // pred_region
      _
    $region5: #{_piformer_core.1} parent=1 // pred_fallthru
      _
    // Predicated region
    $region6: #{_piformer_core.1} parent=1 // pred_check
      _
    $region7: #{_piformer_core.1} parent=1 // pred_check_branch
      %38 = sbr.rel (0) target = $region9
    $region8: #{_piformer_core.1} parent=1 // pred_region
      _
    $region9: #{_piformer_core.1} parent=1 // pred_fallthru
      _
    // Predicated region
    $region10: #{_piformer_core.1} parent=1 // pred_check
      _
    $region11: #{_piformer_core.1} parent=1 // pred_check_branch
      %40 = sbr.rel (0) target = $region13
    $region12: #{_piformer_core.1} parent=1 // pred_region
      _
    $region13: #{_piformer_core.1} parent=1 // pred_fallthru
      _
    // Predicated region
    $region14: #{_piformer_core.1} parent=1 // pred_check
      _
    $region15: #{_piformer_core.1} parent=1 // pred_check_branch
      %42 = sbr.rel (0) target = $region17
    $region16: #{_piformer_core.1} parent=1 // pred_region
      _
    $region17: #{_piformer_core.1} parent=1 // pred_fallthru
      _
    // Predicated region
    $region18: #{_piformer_core.1} parent=1 // pred_check
      _
    $region19: #{_piformer_core.1} parent=1 // pred_check_branch
      %44 = sbr.rel (0) target = $region21
    $region20: #{_piformer_core.1} parent=1 // pred_region
      _
    $region21: #{_piformer_core.1} parent=1 // pred_fallthru
      _
    // Predicated region
    $region22: #{_piformer_core.1} parent=1 // pred_check
      _
    $region23: #{_piformer_core.1} parent=1 // pred_check_branch
      %46 = sbr.rel (0) target = $region25
    $region24: #{_piformer_core.1} parent=1 // pred_region
      _
    $region25: #{_piformer_core.1} parent=1 // pred_fallthru
      _
    // Predicated region
    $region26: #{_piformer_core.1} parent=1 // pred_check
      _
    $region27: #{_piformer_core.1} parent=1 // pred_check_branch
      %48 = sbr.rel (0) target = $region29
    $region28: #{_piformer_core.1} parent=1 // pred_region
      _
    $region29: #{_piformer_core.1} parent=1 // pred_fallthru
      _
    // Predicated region
    $region30: #{_piformer_core.1} parent=1 // pred_check
      _
    $region31: #{_piformer_core.1} parent=1 // pred_check_branch
      %50 = sbr.rel (0) target = $region33
    $region32: #{_piformer_core.1} parent=1 // pred_region
      _
    $region33: #{_piformer_core.1} parent=1 // pred_fallthru
      _
    // Predicated region
    $region34: #{_piformer_core.1} parent=1 // pred_check
      _
    $region35: #{_piformer_core.1} parent=1 // pred_check_branch
      %52 = sbr.rel (0) target = $region37
    $region36: #{_piformer_core.1} parent=1 // pred_region
      _
    $region37: #{_piformer_core.1} parent=1 // pred_fallthru
      _
    // Predicated region
    $region38: #{_piformer_core.1} parent=1 // pred_check
      _
    $region39: #{_piformer_core.1} parent=1 // pred_check_branch
      %54 = sbr.rel (0) target = $region41
    $region40: #{_piformer_core.1} parent=1 // pred_region
      _
    $region41: #{_piformer_core.1} parent=1 // pred_fallthru
      _
    // Predicated region
    $region42: #{_piformer_core.1} parent=1 // pred_check
      _
    $region43: #{_piformer_core.1} parent=1 // pred_check_branch
      %56 = sbr.rel (0) target = $region45
    $region44: #{_piformer_core.1} parent=1 // pred_region
      _
    $region45: #{_piformer_core.1} parent=1 // pred_fallthru
      _
    // Predicated region
    $region46: #{_piformer_core.1} parent=1 // pred_check
      _
    $region47: #{_piformer_core.1} parent=1 // pred_check_branch
      %58 = sbr.rel (0) target = $region49
    $region48: #{_piformer_core.1} parent=1 // pred_region
      _
    $region49: #{_piformer_core.1} parent=1 // pred_fallthru
      _
    // Predicated region
    $region50: #{_piformer_core.1} parent=1 // pred_check
      _
    $region51: #{_piformer_core.1} parent=1 // pred_check_branch
      %60 = sbr.rel (0) target = $region53
    $region52: #{_piformer_core.1} parent=1 // pred_region
      _
    $region53: #{_piformer_core.1} parent=1 // pred_fallthru
      _
    // Predicated region
    $region54: #{_piformer_core.1} parent=1 // pred_check
      _
    $region55: #{_piformer_core.1} parent=1 // pred_check_branch
      %62 = sbr.rel (0) target = $region57
    $region56: #{_piformer_core.1} parent=1 // pred_region
      _
    $region57: #{_piformer_core.1} parent=1 // pred_fallthru
      _
    // Predicated region
    $region58: #{_piformer_core.1} parent=1 // pred_check
      _
    $region59: #{_piformer_core.1} parent=1 // pred_check_branch
      %64 = sbr.rel (0) target = $region61
    $region60: #{_piformer_core.1} parent=1 // pred_region
      _
    $region61: #{_piformer_core.1} parent=1 // pred_fallthru
      _
    // Predicated region
    $region62: #{_piformer_core.1} parent=1 // pred_check
      _
    $region63: #{_piformer_core.1} parent=1 // pred_check_branch
      %66 = sbr.rel (0) target = $region65
    $region64: #{_piformer_core.1} parent=1 // pred_region
      _
    $region65: #{_piformer_core.1} parent=1 // pred_fallthru
      _
    // Predicated region
    $region66: #{_piformer_core.1} parent=1 // pred_check
      _
    $region67: #{_piformer_core.1} parent=1 // pred_check_branch
      %68 = sbr.rel (0) target = $region69
    $region68: #{_piformer_core.1} parent=1 // pred_region
      _
    $region69: #{_piformer_core.1} parent=1 // pred_fallthru
      _
    // Predicated region
    $region70: #{_piformer_core.1} parent=1 // pred_check
      _
    $region71: #{_piformer_core.1} parent=1 // pred_check_branch
      %70 = sbr.rel (0) target = $region73
    $region72: #{_piformer_core.1} parent=1 // pred_region
      _
    $region73: #{_piformer_core.1} parent=1 // pred_fallthru
      _
    // Predicated region
    $region74: #{_piformer_core.1} parent=1 // pred_check
      _
    $region75: #{_piformer_core.1} parent=1 // pred_check_branch
      %72 = sbr.rel (0) target = $region77
    $region76: #{_piformer_core.1} parent=1 // pred_region
      _
    $region77: #{_piformer_core.1} parent=1 // pred_fallthru
      _
    // Predicated region
    $region78: #{_piformer_core.1} parent=1 // pred_check
      _
    $region79: #{_piformer_core.1} parent=1 // pred_check_branch
      %74 = sbr.rel (0) target = $region81
    $region80: #{_piformer_core.1} parent=1 // pred_region
      _
    $region81: #{_piformer_core.1} parent=1 // pred_fallthru
      _
    // Predicated region
    $region82: #{_piformer_core.1} parent=1 // pred_check
      _
    $region83: #{_piformer_core.1} parent=1 // pred_check_branch
      %76 = sbr.rel (0) target = $region85
    $region84: #{_piformer_core.1} parent=1 // pred_region
      _
    $region85: #{_piformer_core.1} parent=1 // pred_fallthru
      _
    // Predicated region
    $region86: #{_piformer_core.1} parent=1 // pred_check
      _
    $region87: #{_piformer_core.1} parent=1 // pred_check_branch
      %78 = sbr.rel (0) target = $region89
    $region88: #{_piformer_core.1} parent=1 // pred_region
      _
    $region89: #{_piformer_core.1} parent=1 // pred_fallthru
      _
    // Predicated region
    $region90: #{_piformer_core.1} parent=1 // pred_check
      _
    $region91: #{_piformer_core.1} parent=1 // pred_check_branch
      %80 = sbr.rel (0) target = $region93
    $region92: #{_piformer_core.1} parent=1 // pred_region
      _
    $region93: #{_piformer_core.1} parent=1 // pred_fallthru
      _
    // Predicated region
    $region94: #{_piformer_core.1} parent=1 // pred_check
      _
    $region95: #{_piformer_core.1} parent=1 // pred_check_branch
      %82 = sbr.rel (0) target = $region97
    $region96: #{_piformer_core.1} parent=1 // pred_region
      _
    $region97: #{_piformer_core.1} parent=1 // pred_fallthru
      _
    // Predicated region
    $region98: #{_piformer_core.1} parent=1 // pred_check
      _
    $region99: #{_piformer_core.1} parent=1 // pred_check_branch
      %84 = sbr.rel (0) target = $region101
    $region100: #{_piformer_core.1} parent=1 // pred_region
      _
    $region101: #{_piformer_core.1} parent=1 // pred_fallthru
      _
    %v85 = vld [vmem:[%s0] sm:$0xff]
    %v86 = vld [vmem:[%s9] sm:$0xff]
    %v87 = vld [vmem:[%s9 + $0x8] sm:$0xff]
    %v88 = vld [vmem:[%s10] sm:$0x1]
    %v90 = vlaneseq
    %v91 = vshrl.u32 %v90, 7
    %v92 = vsub.s32 0, %v91
    %v93 = vrot.slane %v88, %v92
    %vm95 = vcmask 130048
    %v97 = vsel %vm95, %v85, 0
    %99 = vmatprep.subr.mxu0 0.0
    %100 = vmatpush1.msra.mxu0 0.0
    %101 = vmatprep.subr.mxu0 0.0
    %102 = vmatpush1.msra.mxu0 0.0
    %103 = vmatprep.subr.mxu0 0.0
    %104 = vmatpush1.msra.mxu0 0.0
    %105 = vmatprep.subr.mxu0 0.0
    %106 = vmatpush1.msra.mxu0 0.0
    %107 = vmatprep.subr.mxu0 0.0
    %108 = vmatpush1.msra.mxu0 0.0
    %109 = vmatprep.subr.mxu0 0.0
    %110 = vmatpush1.msra.mxu0 0.0
    %111 = vmatprep.subr.mxu0 0.0
    %112 = vmatpush1.msra.mxu0 0.0
    %113 = vmatprep.subr.mxu0 0.0
    %114 = vmatpush1.msra.mxu0 0.0
    %115 = vmatprep.subr.mxu0 0.0
    %116 = vmatpush1.msra.mxu0 0.0
    %117 = vmatprep.subr.mxu0 0.0
    %118 = vmatpush1.msra.mxu0 0.0
    %119 = vmatprep.subr.mxu0 0.0
    %120 = vmatpush1.msra.mxu0 0.0
    %121 = vmatprep.subr.mxu0 0.0
    %122 = vmatpush1.msra.mxu0 0.0
    %123 = vmatprep.subr.mxu0 0.0
    %124 = vmatpush1.msra.mxu0 0.0
    %125 = vmatprep.subr.mxu0 0.0
    %126 = vmatpush1.msra.mxu0 0.0
    %127 = vmatprep.subr.mxu0 0.0
    %128 = vmatpush1.msra.mxu0 %v87
    %129 = vmatprep.subr.mxu0 0.0
    %130 = vmatpush1.msra.mxu0 %v86
    %131 = vmatprep.subr.mxu0 0.0
    %132 = vmatpush2.msra.mxu0 0.0
    %133 = vmatprep.subr.mxu0 0.0
    %134 = vmatpush2.msra.mxu0 0.0
    %135 = vmatprep.subr.mxu0 0.0
    %136 = vmatpush2.msra.mxu0 0.0
    %137 = vmatprep.subr.mxu0 0.0
    %138 = vmatpush2.msra.mxu0 0.0
    %139 = vmatprep.subr.mxu0 0.0
    %140 = vmatpush2.msra.mxu0 0.0
    %141 = vmatprep.subr.mxu0 0.0
    %142 = vmatpush2.msra.mxu0 0.0
    %143 = vmatprep.subr.mxu0 0.0
    %144 = vmatpush2.msra.mxu0 0.0
    %145 = vmatprep.subr.mxu0 0.0
    %146 = vmatpush2.msra.mxu0 0.0
    %147 = vmatprep.subr.mxu0 0.0
    %148 = vmatpush2.msra.mxu0 0.0
    %149 = vmatprep.subr.mxu0 0.0
    %150 = vmatpush2.msra.mxu0 0.0
    %151 = vmatprep.subr.mxu0 0.0
    %152 = vmatpush2.msra.mxu0 0.0
    %153 = vmatprep.subr.mxu0 0.0
    %154 = vmatpush2.msra.mxu0 0.0
    %155 = vmatprep.subr.mxu0 0.0
    %156 = vmatpush2.msra.mxu0 0.0
    %157 = vmatprep.subr.mxu0 0.0
    %158 = vmatpush2.msra.mxu0 0.0
    %159 = vmatprep.subr.mxu0 0.0
    %160 = vmatpush2.msra.mxu0 0.0
    %161 = vmatprep.subr.mxu0 0.0
    %162 = vmatpush2.msra.mxu0 0.0
    %163 = vmatprep.mubr.f32.mxu0 0.0
    %164 = vmatmul.mubr.f32.gmra.mxu0 %v97
    %v165 = vpop.f32.mrf.mxu0
    %v166 = vadd.f32 %v93, %v165
    %v167 = vpop.f32.mrf.mxu0
    %168 = vdwg.mxu0
    %vm169 = vcmask 261120
    %170 = vst.msk [vmem:[#allocation2] sm:$0xff] %vm169, %v166
    %v171 = vld [vmem:[%s1] sm:$0xff]
    %v172 = vld [vmem:[%s1 + $0x8] sm:$0xff]
    %v173 = vld [vmem:[%s11] sm:$0xff]
    %v174 = vld [vmem:[%s12] sm:$0x1]
    %v176 = vlaneseq
    %v177 = vshrl.u32 %v176, 7
    %v178 = vsub.s32 0, %v177
    %v179 = vrot.slane %v174, %v178
    %vm181 = vcmask 64512
    %v183 = vsel %vm181, %v171, 0
    %v186 = vsel %vm181, %v172, 0
    %188 = vmatprep.subr.mxu0 0.0
    %189 = vmatpush1.msra.mxu0 0.0
    %190 = vmatprep.subr.mxu0 0.0
    %191 = vmatpush1.msra.mxu0 0.0
    %192 = vmatprep.subr.mxu0 0.0
    %193 = vmatpush1.msra.mxu0 0.0
    %194 = vmatprep.subr.mxu0 0.0
    %195 = vmatpush1.msra.mxu0 0.0
    %196 = vmatprep.subr.mxu0 0.0
    %197 = vmatpush1.msra.mxu0 0.0
    %198 = vmatprep.subr.mxu0 0.0
    %199 = vmatpush1.msra.mxu0 0.0
    %200 = vmatprep.subr.mxu0 0.0
    %201 = vmatpush1.msra.mxu0 0.0
    %202 = vmatprep.subr.mxu0 0.0
    %203 = vmatpush1.msra.mxu0 0.0
    %204 = vmatprep.subr.mxu0 0.0
    %205 = vmatpush1.msra.mxu0 0.0
    %206 = vmatprep.subr.mxu0 0.0
    %207 = vmatpush1.msra.mxu0 0.0
    %208 = vmatprep.subr.mxu0 0.0
    %209 = vmatpush1.msra.mxu0 0.0
    %210 = vmatprep.subr.mxu0 0.0
    %211 = vmatpush1.msra.mxu0 0.0
    %212 = vmatprep.subr.mxu0 0.0
    %213 = vmatpush1.msra.mxu0 0.0
    %214 = vmatprep.subr.mxu0 0.0
    %215 = vmatpush1.msra.mxu0 0.0
    %216 = vmatprep.subr.mxu0 0.0
    %217 = vmatpush1.msra.mxu0 0.0
    %218 = vmatprep.subr.mxu0 0.0
    %219 = vmatpush1.msra.mxu0 %v173
    %220 = vmatprep.subr.mxu0 0.0
    %221 = vmatpush2.msra.mxu0 0.0
    %222 = vmatprep.subr.mxu0 0.0
    %223 = vmatpush2.msra.mxu0 0.0
    %224 = vmatprep.subr.mxu0 0.0
    %225 = vmatpush2.msra.mxu0 0.0
    %226 = vmatprep.subr.mxu0 0.0
    %227 = vmatpush2.msra.mxu0 0.0
    %228 = vmatprep.subr.mxu0 0.0
    %229 = vmatpush2.msra.mxu0 0.0
    %230 = vmatprep.subr.mxu0 0.0
    %231 = vmatpush2.msra.mxu0 0.0
    %232 = vmatprep.subr.mxu0 0.0
    %233 = vmatpush2.msra.mxu0 0.0
    %234 = vmatprep.subr.mxu0 0.0
    %235 = vmatpush2.msra.mxu0 0.0
    %236 = vmatprep.subr.mxu0 0.0
    %237 = vmatpush2.msra.mxu0 0.0
    %238 = vmatprep.subr.mxu0 0.0
    %239 = vmatpush2.msra.mxu0 0.0
    %240 = vmatprep.subr.mxu0 0.0
    %241 = vmatpush2.msra.mxu0 0.0
    %242 = vmatprep.subr.mxu0 0.0
    %243 = vmatpush2.msra.mxu0 0.0
    %244 = vmatprep.subr.mxu0 0.0
    %245 = vmatpush2.msra.mxu0 0.0
    %246 = vmatprep.subr.mxu0 0.0
    %247 = vmatpush2.msra.mxu0 0.0
    %248 = vmatprep.subr.mxu0 0.0
    %249 = vmatpush2.msra.mxu0 0.0
    %250 = vmatprep.subr.mxu0 0.0
    %251 = vmatpush2.msra.mxu0 0.0
    %252 = vmatprep.mubr.f32.mxu0 0.0
    %253 = vmatmul.mubr.f32.gmra.mxu0 %v183
    %v254 = vpop.f32.mrf.mxu0
    %v255 = vadd.f32 %v179, %v254
    %v256 = vpop.f32.mrf.mxu0
    %257 = vmatprep.mubr.f32.mxu0 0.0
    %258 = vmatmul.mubr.f32.gmra.mxu0 %v186
    %v259 = vpop.f32.mrf.mxu0
    %v260 = vadd.f32 %v179, %v259
    %v261 = vpop.f32.mrf.mxu0
    %262 = vdwg.mxu0
    %263 = vst.msk [vmem:[#allocation4] sm:$0xff] %vm169, %v255
    %264 = vst.msk [vmem:[#allocation4 + $0x8] sm:$0xff] %vm169, %v260
    %v265 = vld [vmem:[%s3] sm:$0xff]
    %v266 = vld [vmem:[%s3 + $0x8] sm:$0xff]
    %v267 = vld [vmem:[%s3 + $0x10] sm:$0xf]
    %v268 = vld [vmem:[%s13] sm:$0xff]
    %v269 = vld [vmem:[%s14] sm:$0x1]
    %v271 = vlaneseq
    %v272 = vshrl.u32 %v271, 7
    %v273 = vsub.s32 0, %v272
    %v274 = vrot.slane %v269, %v273
    %v277 = vsel %vm181, %v265, 0
    %v280 = vsel %vm181, %v266, 0
    %v283 = vsel %vm181, %v267, 0
    %285 = vmatprep.subr.mxu0 0.0
    %286 = vmatpush1.msra.mxu0 0.0
    %287 = vmatprep.subr.mxu0 0.0
    %288 = vmatpush1.msra.mxu0 0.0
    %289 = vmatprep.subr.mxu0 0.0
    %290 = vmatpush1.msra.mxu0 0.0
    %291 = vmatprep.subr.mxu0 0.0
    %292 = vmatpush1.msra.mxu0 0.0
    %293 = vmatprep.subr.mxu0 0.0
    %294 = vmatpush1.msra.mxu0 0.0
    %295 = vmatprep.subr.mxu0 0.0
    %296 = vmatpush1.msra.mxu0 0.0
    %297 = vmatprep.subr.mxu0 0.0
    %298 = vmatpush1.msra.mxu0 0.0
    %299 = vmatprep.subr.mxu0 0.0
    %300 = vmatpush1.msra.mxu0 0.0
    %301 = vmatprep.subr.mxu0 0.0
    %302 = vmatpush1.msra.mxu0 0.0
    %303 = vmatprep.subr.mxu0 0.0
    %304 = vmatpush1.msra.mxu0 0.0
    %305 = vmatprep.subr.mxu0 0.0
    %306 = vmatpush1.msra.mxu0 0.0
    %307 = vmatprep.subr.mxu0 0.0
    %308 = vmatpush1.msra.mxu0 0.0
    %309 = vmatprep.subr.mxu0 0.0
    %310 = vmatpush1.msra.mxu0 0.0
    %311 = vmatprep.subr.mxu0 0.0
    %312 = vmatpush1.msra.mxu0 0.0
    %313 = vmatprep.subr.mxu0 0.0
    %314 = vmatpush1.msra.mxu0 0.0
    %315 = vmatprep.subr.mxu0 0.0
    %316 = vmatpush1.msra.mxu0 %v268
    %317 = vmatprep.subr.mxu0 0.0
    %318 = vmatpush2.msra.mxu0 0.0
    %319 = vmatprep.subr.mxu0 0.0
    %320 = vmatpush2.msra.mxu0 0.0
    %321 = vmatprep.subr.mxu0 0.0
    %322 = vmatpush2.msra.mxu0 0.0
    %323 = vmatprep.subr.mxu0 0.0
    %324 = vmatpush2.msra.mxu0 0.0
    %325 = vmatprep.subr.mxu0 0.0
    %326 = vmatpush2.msra.mxu0 0.0
    %327 = vmatprep.subr.mxu0 0.0
    %328 = vmatpush2.msra.mxu0 0.0
    %329 = vmatprep.subr.mxu0 0.0
    %330 = vmatpush2.msra.mxu0 0.0
    %331 = vmatprep.subr.mxu0 0.0
    %332 = vmatpush2.msra.mxu0 0.0
    %333 = vmatprep.subr.mxu0 0.0
    %334 = vmatpush2.msra.mxu0 0.0
    %335 = vmatprep.subr.mxu0 0.0
    %336 = vmatpush2.msra.mxu0 0.0
    %337 = vmatprep.subr.mxu0 0.0
    %338 = vmatpush2.msra.mxu0 0.0
    %339 = vmatprep.subr.mxu0 0.0
    %340 = vmatpush2.msra.mxu0 0.0
    %341 = vmatprep.subr.mxu0 0.0
    %342 = vmatpush2.msra.mxu0 0.0
    %343 = vmatprep.subr.mxu0 0.0
    %344 = vmatpush2.msra.mxu0 0.0
    %345 = vmatprep.subr.mxu0 0.0
    %346 = vmatpush2.msra.mxu0 0.0
    %347 = vmatprep.subr.mxu0 0.0
    %348 = vmatpush2.msra.mxu0 0.0
    %349 = vmatprep.mubr.f32.mxu0 0.0
    %350 = vmatmul.mubr.f32.gmra.mxu0 %v277
    %v351 = vpop.f32.mrf.mxu0
    %v352 = vadd.f32 %v274, %v351
    %v353 = vpop.f32.mrf.mxu0
    %354 = vmatprep.mubr.f32.mxu0 0.0
    %355 = vmatmul.mubr.f32.gmra.mxu0 %v280
    %v356 = vpop.f32.mrf.mxu0
    %v357 = vadd.f32 %v274, %v356
    %v358 = vpop.f32.mrf.mxu0
    %359 = vmatprep.mubr.f32.mxu0 0.0
    %360 = vmatmul.mubr.f32.gmra.mxu0 %v283
    %v361 = vpop.f32.mrf.mxu0
    %v362 = vadd.f32 %v274, %v361
    %v363 = vpop.f32.mrf.mxu0
    %364 = vdwg.mxu0
    %v365 = vld [vmem:[%s2] sm:$0xff]
    %v366 = vld [vmem:[%s2 + $0x8] sm:$0xff]
    %v367 = vld [vmem:[%s2 + $0x10] sm:$0xff]
    %v368 = vld [vmem:[%s15] sm:$0xff]
    %v369 = vld [vmem:[%s15 + $0x8] sm:$0xff]
    %v370 = vld [vmem:[%s15 + $0x10] sm:$0xff]
    %v371 = vld [vmem:[%s16] sm:$0x1]
    %v373 = vlaneseq
    %v374 = vshrl.u32 %v373, 7
    %v375 = vsub.s32 0, %v374
    %v376 = vrot.slane %v371, %v375
    %vm378 = vcmask 195584
    %v380 = vsel %vm378, %v365, 0
    %v383 = vsel %vm378, %v366, 0
    %v386 = vsel %vm378, %v367, 0
    %388 = vmatprep.subr.mxu0 0.0
    %389 = vmatpush1.msra.mxu0 0.0
    %390 = vmatprep.subr.mxu0 0.0
    %391 = vmatpush1.msra.mxu0 0.0
    %392 = vmatprep.subr.mxu0 0.0
    %393 = vmatpush1.msra.mxu0 0.0
    %394 = vmatprep.subr.mxu0 0.0
    %395 = vmatpush1.msra.mxu0 0.0
    %396 = vmatprep.subr.mxu0 0.0
    %397 = vmatpush1.msra.mxu0 0.0
    %398 = vmatprep.subr.mxu0 0.0
    %399 = vmatpush1.msra.mxu0 0.0
    %400 = vmatprep.subr.mxu0 0.0
    %401 = vmatpush1.msra.mxu0 0.0
    %402 = vmatprep.subr.mxu0 0.0
    %403 = vmatpush1.msra.mxu0 0.0
    %404 = vmatprep.subr.mxu0 0.0
    %405 = vmatpush1.msra.mxu0 0.0
    %406 = vmatprep.subr.mxu0 0.0
    %407 = vmatpush1.msra.mxu0 0.0
    %408 = vmatprep.subr.mxu0 0.0
    %409 = vmatpush1.msra.mxu0 0.0
    %410 = vmatprep.subr.mxu0 0.0
    %411 = vmatpush1.msra.mxu0 0.0
    %412 = vmatprep.subr.mxu0 0.0
    %413 = vmatpush1.msra.mxu0 0.0
    %414 = vmatprep.subr.mxu0 0.0
    %415 = vmatpush1.msra.mxu0 %v370
    %416 = vmatprep.subr.mxu0 0.0
    %417 = vmatpush1.msra.mxu0 %v369
    %418 = vmatprep.subr.mxu0 0.0
    %419 = vmatpush1.msra.mxu0 %v368
    %420 = vmatprep.subr.mxu0 0.0
    %421 = vmatpush2.msra.mxu0 0.0
    %422 = vmatprep.subr.mxu0 0.0
    %423 = vmatpush2.msra.mxu0 0.0
    %424 = vmatprep.subr.mxu0 0.0
    %425 = vmatpush2.msra.mxu0 0.0
    %426 = vmatprep.subr.mxu0 0.0
    %427 = vmatpush2.msra.mxu0 0.0
    %428 = vmatprep.subr.mxu0 0.0
    %429 = vmatpush2.msra.mxu0 0.0
    %430 = vmatprep.subr.mxu0 0.0
    %431 = vmatpush2.msra.mxu0 0.0
    %432 = vmatprep.subr.mxu0 0.0
    %433 = vmatpush2.msra.mxu0 0.0
    %434 = vmatprep.subr.mxu0 0.0
    %435 = vmatpush2.msra.mxu0 0.0
    %436 = vmatprep.subr.mxu0 0.0
    %437 = vmatpush2.msra.mxu0 0.0
    %438 = vmatprep.subr.mxu0 0.0
    %439 = vmatpush2.msra.mxu0 0.0
    %440 = vmatprep.subr.mxu0 0.0
    %441 = vmatpush2.msra.mxu0 0.0
    %442 = vmatprep.subr.mxu0 0.0
    %443 = vmatpush2.msra.mxu0 0.0
    %444 = vmatprep.subr.mxu0 0.0
    %445 = vmatpush2.msra.mxu0 0.0
    %446 = vmatprep.subr.mxu0 0.0
    %447 = vmatpush2.msra.mxu0 0.0
    %448 = vmatprep.subr.mxu0 0.0
    %449 = vmatpush2.msra.mxu0 0.0
    %450 = vmatprep.subr.mxu0 0.0
    %451 = vmatpush2.msra.mxu0 0.0
    %452 = vmatprep.mubr.f32.mxu0 0.0
    %453 = vmatmul.mubr.f32.gmra.mxu0 %v380
    %v454 = vpop.f32.mrf.mxu0
    %v455 = vadd.f32 %v376, %v454
    %v456 = vpop.f32.mrf.mxu0
    %457 = vmatprep.mubr.f32.mxu0 0.0
    %458 = vmatmul.mubr.f32.gmra.mxu0 %v383
    %v459 = vpop.f32.mrf.mxu0
    %v460 = vadd.f32 %v376, %v459
    %v461 = vpop.f32.mrf.mxu0
    %462 = vmatprep.mubr.f32.mxu0 0.0
    %463 = vmatmul.mubr.f32.gmra.mxu0 %v386
    %v464 = vpop.f32.mrf.mxu0
    %v465 = vadd.f32 %v376, %v464
    %v466 = vpop.f32.mrf.mxu0
    %467 = vdwg.mxu0
    %v468 = vmul.f32 %v455, 0.5
    %v469 = vmul.f32 %v460, 0.5
    %v470 = vmul.f32 %v465, 0.5
    %v471 = vmul.f32 %v455, 0.70710677
    %v472 = vmul.f32 %v460, 0.70710677
    %v473 = vmul.f32 %v465, 0.70710677
    %v474 = verf.f32.pop %v471
    %v475 = verf.f32.pop %v472
    %v476 = verf.f32.pop %v473
    %v477 = vadd.f32 %v474, 1.0
    %v478 = vadd.f32 %v475, 1.0
    %v479 = vadd.f32 %v476, 1.0
    %v480 = vmul.f32 %v468, %v477
    %v481 = vmul.f32 %v469, %v478
    %v482 = vmul.f32 %v470, %v479
    %v483 = vld [vmem:[%s17] sm:$0xff]
    %v484 = vld [vmem:[%s17 + $0x8] sm:$0xff]
    %v485 = vld [vmem:[%s17 + $0x10] sm:$0xff]
    %v486 = vld [vmem:[%s18] sm:$0x1]
    %v488 = vlaneseq
    %v489 = vshrl.u32 %v488, 7
    %v490 = vsub.s32 0, %v489
    %v491 = vrot.slane %v486, %v490
    %v494 = vsel %vm378, %v480, 0
    %v497 = vsel %vm378, %v481, 0
    %v500 = vsel %vm378, %v482, 0
    %502 = vmatprep.subr.mxu0 0.0
    %503 = vmatpush1.msra.mxu0 0.0
    %504 = vmatprep.subr.mxu0 0.0
    %505 = vmatpush1.msra.mxu0 0.0
    %506 = vmatprep.subr.mxu0 0.0
    %507 = vmatpush1.msra.mxu0 0.0
    %508 = vmatprep.subr.mxu0 0.0
    %509 = vmatpush1.msra.mxu0 0.0
    %510 = vmatprep.subr.mxu0 0.0
    %511 = vmatpush1.msra.mxu0 0.0
    %512 = vmatprep.subr.mxu0 0.0
    %513 = vmatpush1.msra.mxu0 0.0
    %514 = vmatprep.subr.mxu0 0.0
    %515 = vmatpush1.msra.mxu0 0.0
    %516 = vmatprep.subr.mxu0 0.0
    %517 = vmatpush1.msra.mxu0 0.0
    %518 = vmatprep.subr.mxu0 0.0
    %519 = vmatpush1.msra.mxu0 0.0
    %520 = vmatprep.subr.mxu0 0.0
    %521 = vmatpush1.msra.mxu0 0.0
    %522 = vmatprep.subr.mxu0 0.0
    %523 = vmatpush1.msra.mxu0 0.0
    %524 = vmatprep.subr.mxu0 0.0
    %525 = vmatpush1.msra.mxu0 0.0
    %526 = vmatprep.subr.mxu0 0.0
    %527 = vmatpush1.msra.mxu0 0.0
    %528 = vmatprep.subr.mxu0 0.0
    %529 = vmatpush1.msra.mxu0 %v485
    %530 = vmatprep.subr.mxu0 0.0
    %531 = vmatpush1.msra.mxu0 %v484
    %532 = vmatprep.subr.mxu0 0.0
    %533 = vmatpush1.msra.mxu0 %v483
    %534 = vmatprep.subr.mxu0 0.0
    %535 = vmatpush2.msra.mxu0 0.0
    %536 = vmatprep.subr.mxu0 0.0
    %537 = vmatpush2.msra.mxu0 0.0
    %538 = vmatprep.subr.mxu0 0.0
    %539 = vmatpush2.msra.mxu0 0.0
    %540 = vmatprep.subr.mxu0 0.0
    %541 = vmatpush2.msra.mxu0 0.0
    %542 = vmatprep.subr.mxu0 0.0
    %543 = vmatpush2.msra.mxu0 0.0
    %544 = vmatprep.subr.mxu0 0.0
    %545 = vmatpush2.msra.mxu0 0.0
    %546 = vmatprep.subr.mxu0 0.0
    %547 = vmatpush2.msra.mxu0 0.0
    %548 = vmatprep.subr.mxu0 0.0
    %549 = vmatpush2.msra.mxu0 0.0
    %550 = vmatprep.subr.mxu0 0.0
    %551 = vmatpush2.msra.mxu0 0.0
    %552 = vmatprep.subr.mxu0 0.0
    %553 = vmatpush2.msra.mxu0 0.0
    %554 = vmatprep.subr.mxu0 0.0
    %555 = vmatpush2.msra.mxu0 0.0
    %556 = vmatprep.subr.mxu0 0.0
    %557 = vmatpush2.msra.mxu0 0.0
    %558 = vmatprep.subr.mxu0 0.0
    %559 = vmatpush2.msra.mxu0 0.0
    %560 = vmatprep.subr.mxu0 0.0
    %561 = vmatpush2.msra.mxu0 0.0
    %562 = vmatprep.subr.mxu0 0.0
    %563 = vmatpush2.msra.mxu0 0.0
    %564 = vmatprep.subr.mxu0 0.0
    %565 = vmatpush2.msra.mxu0 0.0
    %566 = vmatprep.mubr.f32.mxu0 0.0
    %567 = vmatmul.mubr.f32.gmra.mxu0 %v494
    %v568 = vpop.f32.mrf.mxu0
    %v569 = vadd.f32 %v491, %v568
    %v570 = vpop.f32.mrf.mxu0
    %571 = vmatprep.mubr.f32.mxu0 0.0
    %572 = vmatmul.mubr.f32.gmra.mxu0 %v497
    %v573 = vpop.f32.mrf.mxu0
    %v574 = vadd.f32 %v491, %v573
    %v575 = vpop.f32.mrf.mxu0
    %576 = vmatprep.mubr.f32.mxu0 0.0
    %577 = vmatmul.mubr.f32.gmra.mxu0 %v500
    %v578 = vpop.f32.mrf.mxu0
    %v579 = vadd.f32 %v491, %v578
    %v580 = vpop.f32.mrf.mxu0
    %581 = vdwg.mxu0
    %v582 = vld [vmem:[%s4] sm:$0xf]
    %v583 = vld [vmem:[%s4 + $0x4] sm:$0xf]
    %v584 = vld [vmem:[%s4 + $0x8] sm:$0x3]
    %v585 = vunpack.c.l.bf16 %v582
    %v586 = vunpack.c.l.bf16 %v583
    %v587 = vunpack.c.l.bf16 %v584
    %v588 = vld [vmem:[%s5] sm:$0xf]
    %v589 = vld [vmem:[%s5 + $0x4] sm:$0x3]
    %v590 = vunpack.c.l.bf16 %v588
    %v591 = vunpack.c.l.bf16 %v589
    %v592 = vld [vmem:[%s6] sm:$0xf]
    %v593 = vld [vmem:[%s6 + $0x4] sm:$0xf]
    %v594 = vld [vmem:[%s6 + $0x8] sm:$0xf]
    %v595 = vld [vmem:[%s6 + $0xc] sm:$0xf]
    %v596 = vld [vmem:[%s6 + $0x10] sm:$0xf]
    %v597 = vunpack.c.l.bf16 %v592
    %v598 = vunpack.c.l.bf16 %v593
    %v599 = vunpack.c.l.bf16 %v594
    %v600 = vunpack.c.l.bf16 %v595
    %v601 = vunpack.c.l.bf16 %v596
    %v602 = vld [vmem:[%s7] sm:$0xf]
    %v603 = vld [vmem:[%s7 + $0x4] sm:$0xf]
    %v604 = vld [vmem:[%s7 + $0x8] sm:$0xf]
    %v605 = vld [vmem:[%s7 + $0xc] sm:$0xf]
    %v606 = vld [vmem:[%s7 + $0x10] sm:$0xf]
    %v607 = vunpack.c.l.bf16 %v602
    %v608 = vunpack.c.l.bf16 %v603
    %v609 = vunpack.c.l.bf16 %v604
    %v610 = vunpack.c.l.bf16 %v605
    %v611 = vunpack.c.l.bf16 %v606
    %v612 = vld [vmem:[%s8] sm:$0xf]
    %v613 = vld [vmem:[%s8 + $0x4] sm:$0xf]
    %v614 = vld [vmem:[%s8 + $0x8] sm:$0xf]
    %v615 = vunpack.c.l.bf16 %v612
    %v616 = vunpack.c.l.bf16 %v613
    %v617 = vunpack.c.l.bf16 %v614
    %v618 = vlaneseq
    %v619 = vshrl.u32 %v618, 7
    %v620 = vsub.s32 0, %v619
    %v621 = vrot.slane %v590, %v620
    %623 = vbcast.lane.b32.xlu0 %v621, 256
    %v624 = vpop.permute.xlu0 %623
    %s626 = sor.u32 256, 8
    %627 = vbcast.lane.b32.xlu0 %v621, %s626
    %v628 = vpop.permute.xlu0 %627
    %s630 = sor.u32 256, 16
    %631 = vbcast.lane.b32.xlu0 %v621, %s630
    %v632 = vpop.permute.xlu0 %631
    %v633 = vlaneseq
    %v634 = vshrl.u32 %v633, 7
    %v635 = vsub.s32 1, %v634
    %v636 = vrot.slane %v590, %v635
    %638 = vbcast.lane.b32.xlu0 %v636, 256
    %v639 = vpop.permute.xlu0 %638
    %s641 = sor.u32 256, 8
    %642 = vbcast.lane.b32.xlu0 %v636, %s641
    %v643 = vpop.permute.xlu0 %642
    %s645 = sor.u32 256, 16
    %646 = vbcast.lane.b32.xlu0 %v636, %s645
    %v647 = vpop.permute.xlu0 %646
    %v648 = vlaneseq
    %v649 = vshrl.u32 %v648, 7
    %v650 = vsub.s32 2, %v649
    %v651 = vrot.slane %v590, %v650
    %653 = vbcast.lane.b32.xlu0 %v651, 256
    %v654 = vpop.permute.xlu0 %653
    %s656 = sor.u32 256, 8
    %657 = vbcast.lane.b32.xlu0 %v651, %s656
    %v658 = vpop.permute.xlu0 %657
    %s660 = sor.u32 256, 16
    %661 = vbcast.lane.b32.xlu0 %v651, %s660
    %v662 = vpop.permute.xlu0 %661
    %v663 = vlaneseq
    %v664 = vshrl.u32 %v663, 7
    %v665 = vsub.s32 3, %v664
    %v666 = vrot.slane %v590, %v665
    %668 = vbcast.lane.b32.xlu0 %v666, 256
    %v669 = vpop.permute.xlu0 %668
    %s671 = sor.u32 256, 8
    %672 = vbcast.lane.b32.xlu0 %v666, %s671
    %v673 = vpop.permute.xlu0 %672
    %s675 = sor.u32 256, 16
    %676 = vbcast.lane.b32.xlu0 %v666, %s675
    %v677 = vpop.permute.xlu0 %676
    %v678 = vlaneseq
    %v679 = vshrl.u32 %v678, 7
    %v680 = vsub.s32 4, %v679
    %v681 = vrot.slane %v590, %v680
    %683 = vbcast.lane.b32.xlu0 %v681, 256
    %v684 = vpop.permute.xlu0 %683
    %s686 = sor.u32 256, 8
    %687 = vbcast.lane.b32.xlu0 %v681, %s686
    %v688 = vpop.permute.xlu0 %687
    %s690 = sor.u32 256, 16
    %691 = vbcast.lane.b32.xlu0 %v681, %s690
    %v692 = vpop.permute.xlu0 %691
    %v693 = vlaneseq
    %v694 = vshrl.u32 %v693, 7
    %v695 = vsub.s32 5, %v694
    %v696 = vrot.slane %v590, %v695
    %698 = vbcast.lane.b32.xlu0 %v696, 256
    %v699 = vpop.permute.xlu0 %698
    %s701 = sor.u32 256, 8
    %702 = vbcast.lane.b32.xlu0 %v696, %s701
    %v703 = vpop.permute.xlu0 %702
    %s705 = sor.u32 256, 16
    %706 = vbcast.lane.b32.xlu0 %v696, %s705
    %v707 = vpop.permute.xlu0 %706
    %v708 = vlaneseq
    %v709 = vshrl.u32 %v708, 7
    %v710 = vsub.s32 6, %v709
    %v711 = vrot.slane %v590, %v710
    %713 = vbcast.lane.b32.xlu0 %v711, 256
    %v714 = vpop.permute.xlu0 %713
    %s716 = sor.u32 256, 8
    %717 = vbcast.lane.b32.xlu0 %v711, %s716
    %v718 = vpop.permute.xlu0 %717
    %s720 = sor.u32 256, 16
    %721 = vbcast.lane.b32.xlu0 %v711, %s720
    %v722 = vpop.permute.xlu0 %721
    %v723 = vlaneseq
    %v724 = vshrl.u32 %v723, 7
    %v725 = vsub.s32 7, %v724
    %v726 = vrot.slane %v590, %v725
    %728 = vbcast.lane.b32.xlu0 %v726, 256
    %v729 = vpop.permute.xlu0 %728
    %s731 = sor.u32 256, 8
    %732 = vbcast.lane.b32.xlu0 %v726, %s731
    %v733 = vpop.permute.xlu0 %732
    %s735 = sor.u32 256, 16
    %736 = vbcast.lane.b32.xlu0 %v726, %s735
    %v737 = vpop.permute.xlu0 %736
    %v738 = vlaneseq
    %v739 = vshrl.u32 %v738, 7
    %v740 = vsub.s32 0, %v739
    %v741 = vrot.slane %v591, %v740
    %743 = vbcast.lane.b32.xlu0 %v741, 256
    %v744 = vpop.permute.xlu0 %743
    %s746 = sor.u32 256, 8
    %747 = vbcast.lane.b32.xlu0 %v741, %s746
    %v748 = vpop.permute.xlu0 %747
    %s750 = sor.u32 256, 16
    %751 = vbcast.lane.b32.xlu0 %v741, %s750
    %v752 = vpop.permute.xlu0 %751
    %v753 = vlaneseq
    %v754 = vshrl.u32 %v753, 7
    %v755 = vsub.s32 1, %v754
    %v756 = vrot.slane %v591, %v755
    %758 = vbcast.lane.b32.xlu0 %v756, 256
    %v759 = vpop.permute.xlu0 %758
    %s761 = sor.u32 256, 8
    %762 = vbcast.lane.b32.xlu0 %v756, %s761
    %v763 = vpop.permute.xlu0 %762
    %s765 = sor.u32 256, 16
    %766 = vbcast.lane.b32.xlu0 %v756, %s765
    %v767 = vpop.permute.xlu0 %766
    %v768 = vlaneseq
    %v769 = vshrl.u32 %v768, 7
    %v770 = vsub.s32 2, %v769
    %v771 = vrot.slane %v591, %v770
    %773 = vbcast.lane.b32.xlu0 %v771, 256
    %v774 = vpop.permute.xlu0 %773
    %s776 = sor.u32 256, 8
    %777 = vbcast.lane.b32.xlu0 %v771, %s776
    %v778 = vpop.permute.xlu0 %777
    %s780 = sor.u32 256, 16
    %781 = vbcast.lane.b32.xlu0 %v771, %s780
    %v782 = vpop.permute.xlu0 %781
    %v783 = vlaneseq
    %v784 = vshrl.u32 %v783, 7
    %v785 = vsub.s32 3, %v784
    %v786 = vrot.slane %v591, %v785
    %788 = vbcast.lane.b32.xlu0 %v786, 256
    %v789 = vpop.permute.xlu0 %788
    %s791 = sor.u32 256, 8
    %792 = vbcast.lane.b32.xlu0 %v786, %s791
    %v793 = vpop.permute.xlu0 %792
    %s795 = sor.u32 256, 16
    %796 = vbcast.lane.b32.xlu0 %v786, %s795
    %v797 = vpop.permute.xlu0 %796
    %vm798 = vcmp.gt.f32.partialorder %v624, 0.5
    %vm799 = vcmp.gt.f32.partialorder %v628, 0.5
    %vm800 = vcmp.gt.f32.partialorder %v632, 0.5
    %vm801 = vcmp.gt.f32.partialorder %v639, 0.5
    %vm802 = vcmp.gt.f32.partialorder %v643, 0.5
    %vm803 = vcmp.gt.f32.partialorder %v647, 0.5
    %vm804 = vcmp.gt.f32.partialorder %v654, 0.5
    %vm805 = vcmp.gt.f32.partialorder %v658, 0.5
    %vm806 = vcmp.gt.f32.partialorder %v662, 0.5
    %vm807 = vcmp.gt.f32.partialorder %v669, 0.5
    %vm808 = vcmp.gt.f32.partialorder %v673, 0.5
    %vm809 = vcmp.gt.f32.partialorder %v677, 0.5
    %vm810 = vcmp.gt.f32.partialorder %v684, 0.5
    %vm811 = vcmp.gt.f32.partialorder %v688, 0.5
    %vm812 = vcmp.gt.f32.partialorder %v692, 0.5
    %vm813 = vcmp.gt.f32.partialorder %v699, 0.5
    %vm814 = vcmp.gt.f32.partialorder %v703, 0.5
    %vm815 = vcmp.gt.f32.partialorder %v707, 0.5
    %vm816 = vcmp.gt.f32.partialorder %v714, 0.5
    %vm817 = vcmp.gt.f32.partialorder %v718, 0.5
    %vm818 = vcmp.gt.f32.partialorder %v722, 0.5
    %vm819 = vcmp.gt.f32.partialorder %v729, 0.5
    %vm820 = vcmp.gt.f32.partialorder %v733, 0.5
    %vm821 = vcmp.gt.f32.partialorder %v737, 0.5
    %vm822 = vcmp.gt.f32.partialorder %v744, 0.5
    %vm823 = vcmp.gt.f32.partialorder %v748, 0.5
    %vm824 = vcmp.gt.f32.partialorder %v752, 0.5
    %vm825 = vcmp.gt.f32.partialorder %v759, 0.5
    %vm826 = vcmp.gt.f32.partialorder %v763, 0.5
    %vm827 = vcmp.gt.f32.partialorder %v767, 0.5
    %vm828 = vcmp.gt.f32.partialorder %v774, 0.5
    %vm829 = vcmp.gt.f32.partialorder %v778, 0.5
    %vm830 = vcmp.gt.f32.partialorder %v782, 0.5
    %vm831 = vcmp.gt.f32.partialorder %v789, 0.5
    %vm832 = vcmp.gt.f32.partialorder %v793, 0.5
    %vm833 = vcmp.gt.f32.partialorder %v797, 0.5
    %v834 = vld [vmem:[%s19] sm:$0xff]
    %v835 = vld [vmem:[%s19 + $0x8] sm:$0xff]
    %v836 = vld [vmem:[%s19 + $0x10] sm:$0xff]
    %v837 = vld [vmem:[%s19 + $0x18] sm:$0xff]
    %v838 = vld [vmem:[%s20] sm:$0xff]
    %v839 = vld [vmem:[%s20 + $0x8] sm:$0xff]
    %v840 = vld [vmem:[%s20 + $0x10] sm:$0xff]
    %v841 = vld [vmem:[%s20 + $0x18] sm:$0xff]
    %v842 = vld [vmem:[%s21] sm:$0xff]
    %v843 = vld [vmem:[%s21 + $0x8] sm:$0xff]
    %v844 = vld [vmem:[%s21 + $0x10] sm:$0xff]
    %v845 = vld [vmem:[%s21 + $0x18] sm:$0xff]
    %v846 = vld [vmem:[%s21 + $0x20] sm:$0xff]
    %v847 = vld [vmem:[%s22] sm:$0x1]
    %v848 = vld [vmem:[%s23] sm:$0xff]
    %v849 = vld [vmem:[%s23 + $0x8] sm:$0xff]
    %v850 = vld [vmem:[%s23 + $0x10] sm:$0xff]
    %v851 = vld [vmem:[%s23 + $0x18] sm:$0xff]
    %v852 = vld [vmem:[%s23 + $0x20] sm:$0xff]
    %v853 = vld [vmem:[%s24] sm:$0x1]
    %v855 = vsel %vm169, %v352, 0
    %v858 = vsel %vm169, %v357, 0
    %v861 = vsel %vm169, %v362, 0
    %863 = vmatprep.subr.mxu0 0.0
    %864 = vmatpush1.msra.mxu0 0.0
    %865 = vmatprep.subr.mxu0 0.0
    %866 = vmatpush1.msra.mxu0 0.0
    %867 = vmatprep.subr.mxu0 0.0
    %868 = vmatpush1.msra.mxu0 0.0
    %869 = vmatprep.subr.mxu0 0.0
    %870 = vmatpush1.msra.mxu0 0.0
    %871 = vmatprep.subr.mxu0 0.0
    %872 = vmatpush1.msra.mxu0 0.0
    %873 = vmatprep.subr.mxu0 0.0
    %874 = vmatpush1.msra.mxu0 0.0
    %875 = vmatprep.subr.mxu0 0.0
    %876 = vmatpush1.msra.mxu0 0.0
    %877 = vmatprep.subr.mxu0 0.0
    %878 = vmatpush1.msra.mxu0 0.0
    %879 = vmatprep.subr.mxu0 0.0
    %880 = vmatpush1.msra.mxu0 0.0
    %881 = vmatprep.subr.mxu0 0.0
    %882 = vmatpush1.msra.mxu0 0.0
    %883 = vmatprep.subr.mxu0 0.0
    %884 = vmatpush1.msra.mxu0 0.0
    %885 = vmatprep.subr.mxu0 0.0
    %886 = vmatpush1.msra.mxu0 0.0
    %887 = vmatprep.subr.mxu0 0.0
    %888 = vmatpush1.msra.mxu0 %v841
    %889 = vmatprep.subr.mxu0 0.0
    %890 = vmatpush1.msra.mxu0 %v840
    %891 = vmatprep.subr.mxu0 0.0
    %892 = vmatpush1.msra.mxu0 %v839
    %893 = vmatprep.subr.mxu0 0.0
    %894 = vmatpush1.msra.mxu0 %v838
    %895 = vmatprep.subr.mxu0 0.0
    %896 = vmatpush2.msra.mxu0 0.0
    %897 = vmatprep.subr.mxu0 0.0
    %898 = vmatpush2.msra.mxu0 0.0
    %899 = vmatprep.subr.mxu0 0.0
    %900 = vmatpush2.msra.mxu0 0.0
    %901 = vmatprep.subr.mxu0 0.0
    %902 = vmatpush2.msra.mxu0 0.0
    %903 = vmatprep.subr.mxu0 0.0
    %904 = vmatpush2.msra.mxu0 0.0
    %905 = vmatprep.subr.mxu0 0.0
    %906 = vmatpush2.msra.mxu0 0.0
    %907 = vmatprep.subr.mxu0 0.0
    %908 = vmatpush2.msra.mxu0 0.0
    %909 = vmatprep.subr.mxu0 0.0
    %910 = vmatpush2.msra.mxu0 0.0
    %911 = vmatprep.subr.mxu0 0.0
    %912 = vmatpush2.msra.mxu0 0.0
    %913 = vmatprep.subr.mxu0 0.0
    %914 = vmatpush2.msra.mxu0 0.0
    %915 = vmatprep.subr.mxu0 0.0
    %916 = vmatpush2.msra.mxu0 0.0
    %917 = vmatprep.subr.mxu0 0.0
    %918 = vmatpush2.msra.mxu0 0.0
    %919 = vmatprep.subr.mxu0 0.0
    %920 = vmatpush2.msra.mxu0 0.0
    %921 = vmatprep.subr.mxu0 0.0
    %922 = vmatpush2.msra.mxu0 0.0
    %923 = vmatprep.subr.mxu0 0.0
    %924 = vmatpush2.msra.mxu0 0.0
    %925 = vmatprep.subr.mxu0 0.0
    %926 = vmatpush2.msra.mxu0 0.0
    %927 = vmatprep.mubr.f32.mxu0 0.0
    %928 = vmatmul.mubr.f32.gmra.mxu0 %v855
    %v929 = vpop.f32.mrf.mxu0
    %v930 = vadd.f32 0.0, %v929
    %v931 = vpop.f32.mrf.mxu0
    %932 = vmatprep.mubr.f32.mxu0 0.0
    %933 = vmatmul.mubr.f32.gmra.mxu0 %v858
    %v934 = vpop.f32.mrf.mxu0
    %v935 = vadd.f32 0.0, %v934
    %v936 = vpop.f32.mrf.mxu0
    %937 = vmatprep.mubr.f32.mxu0 0.0
    %938 = vmatmul.mubr.f32.gmra.mxu0 %v861
    %v939 = vpop.f32.mrf.mxu0
    %v940 = vadd.f32 0.0, %v939
    %v941 = vpop.f32.mrf.mxu0
    %942 = vdwg.mxu0
    %v943 = vsel %vm798, 1, 0
    %v944 = vsel %vm799, 1, 0
    %v945 = vsel %vm800, 1, 0
    %v946 = vsel %vm801, 1, 0
    %v947 = vsel %vm802, 1, 0
    %v948 = vsel %vm803, 1, 0
    %v949 = vsel %vm804, 1, 0
    %v950 = vsel %vm805, 1, 0
    %v951 = vsel %vm806, 1, 0
    %v952 = vsel %vm807, 1, 0
    %v953 = vsel %vm808, 1, 0
    %v954 = vsel %vm809, 1, 0
    %v955 = vsel %vm810, 1, 0
    %v956 = vsel %vm811, 1, 0
    %v957 = vsel %vm812, 1, 0
    %v958 = vsel %vm813, 1, 0
    %v959 = vsel %vm814, 1, 0
    %v960 = vsel %vm815, 1, 0
    %v961 = vsel %vm816, 1, 0
    %v962 = vsel %vm817, 1, 0
    %v963 = vsel %vm818, 1, 0
    %v964 = vsel %vm819, 1, 0
    %v965 = vsel %vm820, 1, 0
    %v966 = vsel %vm821, 1, 0
    %v967 = vsel %vm822, 1, 0
    %v968 = vsel %vm823, 1, 0
    %v969 = vsel %vm824, 1, 0
    %v970 = vsel %vm825, 1, 0
    %v971 = vsel %vm826, 1, 0
    %v972 = vsel %vm827, 1, 0
    %v973 = vsel %vm828, 1, 0
    %v974 = vsel %vm829, 1, 0
    %v975 = vsel %vm830, 1, 0
    %v976 = vsel %vm831, 1, 0
    %v977 = vsel %vm832, 1, 0
    %v978 = vsel %vm833, 1, 0
    %vm979 = vcmp.eq.s32.totalorder %v943, 1
    %vm980 = vcmp.eq.s32.totalorder %v944, 1
    %vm981 = vcmp.eq.s32.totalorder %v945, 1
    %vm982 = vcmp.eq.s32.totalorder %v946, 1
    %vm983 = vcmp.eq.s32.totalorder %v947, 1
    %vm984 = vcmp.eq.s32.totalorder %v948, 1
    %vm985 = vcmp.eq.s32.totalorder %v949, 1
    %vm986 = vcmp.eq.s32.totalorder %v950, 1
    %vm987 = vcmp.eq.s32.totalorder %v951, 1
    %vm988 = vcmp.eq.s32.totalorder %v952, 1
    %vm989 = vcmp.eq.s32.totalorder %v953, 1
    %vm990 = vcmp.eq.s32.totalorder %v954, 1
    %vm991 = vcmp.eq.s32.totalorder %v955, 1
    %vm992 = vcmp.eq.s32.totalorder %v956, 1
    %vm993 = vcmp.eq.s32.totalorder %v957, 1
    %vm994 = vcmp.eq.s32.totalorder %v958, 1
    %vm995 = vcmp.eq.s32.totalorder %v959, 1
    %vm996 = vcmp.eq.s32.totalorder %v960, 1
    %vm997 = vcmp.eq.s32.totalorder %v961, 1
    %vm998 = vcmp.eq.s32.totalorder %v962, 1
    %vm999 = vcmp.eq.s32.totalorder %v963, 1
    %vm1000 = vcmp.eq.s32.totalorder %v964, 1
    %vm1001 = vcmp.eq.s32.totalorder %v965, 1
    %vm1002 = vcmp.eq.s32.totalorder %v966, 1
    %vm1003 = vcmp.eq.s32.totalorder %v967, 1
    %vm1004 = vcmp.eq.s32.totalorder %v968, 1
    %vm1005 = vcmp.eq.s32.totalorder %v969, 1
    %vm1006 = vcmp.eq.s32.totalorder %v970, 1
    %vm1007 = vcmp.eq.s32.totalorder %v971, 1
    %vm1008 = vcmp.eq.s32.totalorder %v972, 1
    %vm1009 = vcmp.eq.s32.totalorder %v973, 1
    %vm1010 = vcmp.eq.s32.totalorder %v974, 1
    %vm1011 = vcmp.eq.s32.totalorder %v975, 1
    %vm1012 = vcmp.eq.s32.totalorder %v976, 1
    %vm1013 = vcmp.eq.s32.totalorder %v977, 1
    %vm1014 = vcmp.eq.s32.totalorder %v978, 1
    %v1015 = vsel %vm979, %v930, -1e+30
    %v1016 = vsel %vm980, %v935, -1e+30
    %v1017 = vsel %vm981, %v940, -1e+30
    %v1018 = vsel %vm982, %v930, -1e+30
    %v1019 = vsel %vm983, %v935, -1e+30
    %v1020 = vsel %vm984, %v940, -1e+30
    %v1021 = vsel %vm985, %v930, -1e+30
    %v1022 = vsel %vm986, %v935, -1e+30
    %v1023 = vsel %vm987, %v940, -1e+30
    %v1024 = vsel %vm988, %v930, -1e+30
    %v1025 = vsel %vm989, %v935, -1e+30
    %v1026 = vsel %vm990, %v940, -1e+30
    %v1027 = vsel %vm991, %v930, -1e+30
    %v1028 = vsel %vm992, %v935, -1e+30
    %v1029 = vsel %vm993, %v940, -1e+30
    %v1030 = vsel %vm994, %v930, -1e+30
    %v1031 = vsel %vm995, %v935, -1e+30
    %v1032 = vsel %vm996, %v940, -1e+30
    %v1033 = vsel %vm997, %v930, -1e+30
    %v1034 = vsel %vm998, %v935, -1e+30
    %v1035 = vsel %vm999, %v940, -1e+30
    %v1036 = vsel %vm1000, %v930, -1e+30
    %v1037 = vsel %vm1001, %v935, -1e+30
    %v1038 = vsel %vm1002, %v940, -1e+30
    %v1039 = vsel %vm1003, %v930, -1e+30
    %v1040 = vsel %vm1004, %v935, -1e+30
    %v1041 = vsel %vm1005, %v940, -1e+30
    %v1042 = vsel %vm1006, %v930, -1e+30
    %v1043 = vsel %vm1007, %v935, -1e+30
    %v1044 = vsel %vm1008, %v940, -1e+30
    %v1045 = vsel %vm1009, %v930, -1e+30
    %v1046 = vsel %vm1010, %v935, -1e+30
    %v1047 = vsel %vm1011, %v940, -1e+30
    %v1048 = vsel %vm1012, %v930, -1e+30
    %v1049 = vsel %vm1013, %v935, -1e+30
    %v1050 = vsel %vm1014, %v940, -1e+30
    %v1051 = vsel %vm181, %v1015, -inf
    %v1052 = vsel %vm181, %v1016, -inf
    %v1053 = vmax.f32 %v1051, %v1052
    %vm1054 = vcmask 60416
    %v1055 = vsel %vm1054, %v1017, -inf
    %v1056 = vmax.f32 %v1053, %v1055
    %v1057 = vrot.slane %v1056, 4
    %v1058 = vmax.f32 %v1056, %v1057
    %v1059 = vrot.slane %v1058, 2
    %v1060 = vmax.f32 %v1058, %v1059
    %v1061 = vrot.slane %v1060, 1
    %v1062 = vmax.f32 %v1060, %v1061
    %v1063 = vsel %vm181, %v1018, -inf
    %v1064 = vsel %vm181, %v1019, -inf
    %v1065 = vmax.f32 %v1063, %v1064
    %v1066 = vsel %vm1054, %v1020, -inf
    %v1067 = vmax.f32 %v1065, %v1066
    %v1068 = vrot.slane %v1067, 4
    %v1069 = vmax.f32 %v1067, %v1068
    %v1070 = vrot.slane %v1069, 2
    %v1071 = vmax.f32 %v1069, %v1070
    %v1072 = vrot.slane %v1071, 1
    %v1073 = vmax.f32 %v1071, %v1072
    %v1074 = vsel %vm181, %v1021, -inf
    %v1075 = vsel %vm181, %v1022, -inf
    %v1076 = vmax.f32 %v1074, %v1075
    %v1077 = vsel %vm1054, %v1023, -inf
    %v1078 = vmax.f32 %v1076, %v1077
    %v1079 = vrot.slane %v1078, 4
    %v1080 = vmax.f32 %v1078, %v1079
    %v1081 = vrot.slane %v1080, 2
    %v1082 = vmax.f32 %v1080, %v1081
    %v1083 = vrot.slane %v1082, 1
    %v1084 = vmax.f32 %v1082, %v1083
    %v1085 = vsel %vm181, %v1024, -inf
    %v1086 = vsel %vm181, %v1025, -inf
    %v1087 = vmax.f32 %v1085, %v1086
    %v1088 = vsel %vm1054, %v1026, -inf
    %v1089 = vmax.f32 %v1087, %v1088
    %v1090 = vrot.slane %v1089, 4
    %v1091 = vmax.f32 %v1089, %v1090
    %v1092 = vrot.slane %v1091, 2
    %v1093 = vmax.f32 %v1091, %v1092
    %v1094 = vrot.slane %v1093, 1
    %v1095 = vmax.f32 %v1093, %v1094
    %v1096 = vsel %vm181, %v1027, -inf
    %v1097 = vsel %vm181, %v1028, -inf
    %v1098 = vmax.f32 %v1096, %v1097
    %v1099 = vsel %vm1054, %v1029, -inf
    %v1100 = vmax.f32 %v1098, %v1099
    %v1101 = vrot.slane %v1100, 4
    %v1102 = vmax.f32 %v1100, %v1101
    %v1103 = vrot.slane %v1102, 2
    %v1104 = vmax.f32 %v1102, %v1103
    %v1105 = vrot.slane %v1104, 1
    %v1106 = vmax.f32 %v1104, %v1105
    %v1107 = vsel %vm181, %v1030, -inf
    %v1108 = vsel %vm181, %v1031, -inf
    %v1109 = vmax.f32 %v1107, %v1108
    %v1110 = vsel %vm1054, %v1032, -inf
    %v1111 = vmax.f32 %v1109, %v1110
    %v1112 = vrot.slane %v1111, 4
    %v1113 = vmax.f32 %v1111, %v1112
    %v1114 = vrot.slane %v1113, 2
    %v1115 = vmax.f32 %v1113, %v1114
    %v1116 = vrot.slane %v1115, 1
    %v1117 = vmax.f32 %v1115, %v1116
    %v1118 = vsel %vm181, %v1033, -inf
    %v1119 = vsel %vm181, %v1034, -inf
    %v1120 = vmax.f32 %v1118, %v1119
    %v1121 = vsel %vm1054, %v1035, -inf
    %v1122 = vmax.f32 %v1120, %v1121
    %v1123 = vrot.slane %v1122, 4
    %v1124 = vmax.f32 %v1122, %v1123
    %v1125 = vrot.slane %v1124, 2
    %v1126 = vmax.f32 %v1124, %v1125
    %v1127 = vrot.slane %v1126, 1
    %v1128 = vmax.f32 %v1126, %v1127
    %v1129 = vsel %vm181, %v1036, -inf
    %v1130 = vsel %vm181, %v1037, -inf
    %v1131 = vmax.f32 %v1129, %v1130
    %v1132 = vsel %vm1054, %v1038, -inf
    %v1133 = vmax.f32 %v1131, %v1132
    %v1134 = vrot.slane %v1133, 4
    %v1135 = vmax.f32 %v1133, %v1134
    %v1136 = vrot.slane %v1135, 2
    %v1137 = vmax.f32 %v1135, %v1136
    %v1138 = vrot.slane %v1137, 1
    %v1139 = vmax.f32 %v1137, %v1138
    %v1140 = vsel %vm181, %v1039, -inf
    %v1141 = vsel %vm181, %v1040, -inf
    %v1142 = vmax.f32 %v1140, %v1141
    %v1143 = vsel %vm1054, %v1041, -inf
    %v1144 = vmax.f32 %v1142, %v1143
    %v1145 = vrot.slane %v1144, 4
    %v1146 = vmax.f32 %v1144, %v1145
    %v1147 = vrot.slane %v1146, 2
    %v1148 = vmax.f32 %v1146, %v1147
    %v1149 = vrot.slane %v1148, 1
    %v1150 = vmax.f32 %v1148, %v1149
    %v1151 = vsel %vm181, %v1042, -inf
    %v1152 = vsel %vm181, %v1043, -inf
    %v1153 = vmax.f32 %v1151, %v1152
    %v1154 = vsel %vm1054, %v1044, -inf
    %v1155 = vmax.f32 %v1153, %v1154
    %v1156 = vrot.slane %v1155, 4
    %v1157 = vmax.f32 %v1155, %v1156
    %v1158 = vrot.slane %v1157, 2
    %v1159 = vmax.f32 %v1157, %v1158
    %v1160 = vrot.slane %v1159, 1
    %v1161 = vmax.f32 %v1159, %v1160
    %v1162 = vsel %vm181, %v1045, -inf
    %v1163 = vsel %vm181, %v1046, -inf
    %v1164 = vmax.f32 %v1162, %v1163
    %v1165 = vsel %vm1054, %v1047, -inf
    %v1166 = vmax.f32 %v1164, %v1165
    %v1167 = vrot.slane %v1166, 4
    %v1168 = vmax.f32 %v1166, %v1167
    %v1169 = vrot.slane %v1168, 2
    %v1170 = vmax.f32 %v1168, %v1169
    %v1171 = vrot.slane %v1170, 1
    %v1172 = vmax.f32 %v1170, %v1171
    %v1173 = vsel %vm181, %v1048, -inf
    %v1174 = vsel %vm181, %v1049, -inf
    %v1175 = vmax.f32 %v1173, %v1174
    %v1176 = vsel %vm1054, %v1050, -inf
    %v1177 = vmax.f32 %v1175, %v1176
    %v1178 = vrot.slane %v1177, 4
    %v1179 = vmax.f32 %v1177, %v1178
    %v1180 = vrot.slane %v1179, 2
    %v1181 = vmax.f32 %v1179, %v1180
    %v1182 = vrot.slane %v1181, 1
    %v1183 = vmax.f32 %v1181, %v1182
    %vm1196 = vcmask 1041409
    %v1197 = vsel %vm1196, %v1073, %v1062
    %vm1198 = vcmask 1042434
    %v1199 = vsel %vm1198, %v1084, %v1197
    %vm1200 = vcmask 1043459
    %v1201 = vsel %vm1200, %v1095, %v1199
    %vm1202 = vcmask 1044484
    %v1203 = vsel %vm1202, %v1106, %v1201
    %vm1204 = vcmask 1045509
    %v1205 = vsel %vm1204, %v1117, %v1203
    %vm1206 = vcmask 1046534
    %v1207 = vsel %vm1206, %v1128, %v1205
    %vm1208 = vcmask 1047559
    %v1209 = vsel %vm1208, %v1139, %v1207
    %v1210 = vsel %vm1196, %v1161, %v1150
    %v1211 = vsel %vm1198, %v1172, %v1210
    %v1212 = vsel %vm1200, %v1183, %v1211
    %vm1214 = vcmask 97280
    %v1216 = vsel %vm1214, %v585, 0
    %v1219 = vsel %vm1214, %v586, 0
    %v1222 = vsel %vm1214, %v587, 0
    %vm1224 = vcmask 1043456
    %v1225 = vsel %vm1224, %v1212, 0
    %1227 = vmatprep.subr.mxu0 0.0
    %1228 = vmatpush1.msra.mxu0 0.0
    %1229 = vmatprep.subr.mxu0 0.0
    %1230 = vmatpush1.msra.mxu0 0.0
    %1231 = vmatprep.subr.mxu0 0.0
    %1232 = vmatpush1.msra.mxu0 0.0
    %1233 = vmatprep.subr.mxu0 0.0
    %1234 = vmatpush1.msra.mxu0 0.0
    %1235 = vmatprep.subr.mxu0 0.0
    %1236 = vmatpush1.msra.mxu0 0.0
    %1237 = vmatprep.subr.mxu0 0.0
    %1238 = vmatpush1.msra.mxu0 0.0
    %1239 = vmatprep.subr.mxu0 0.0
    %1240 = vmatpush1.msra.mxu0 0.0
    %1241 = vmatprep.subr.mxu0 0.0
    %1242 = vmatpush1.msra.mxu0 0.0
    %1243 = vmatprep.subr.mxu0 0.0
    %1244 = vmatpush1.msra.mxu0 0.0
    %1245 = vmatprep.subr.mxu0 0.0
    %1246 = vmatpush1.msra.mxu0 0.0
    %1247 = vmatprep.subr.mxu0 0.0
    %1248 = vmatpush1.msra.mxu0 0.0
    %1249 = vmatprep.subr.mxu0 0.0
    %1250 = vmatpush1.msra.mxu0 0.0
    %1251 = vmatprep.subr.mxu0 0.0
    %1252 = vmatpush1.msra.mxu0 0.0
    %1253 = vmatprep.subr.mxu0 0.0
    %1254 = vmatpush1.msra.mxu0 0.0
    %1255 = vmatprep.subr.mxu0 0.0
    %1256 = vmatpush1.msra.mxu0 %v1225
    %1257 = vmatprep.subr.mxu0 0.0
    %1258 = vmatpush1.msra.mxu0 %v1209
    %1259 = vmatprep.subr.mxu0 0.0
    %1260 = vmatpush2.msra.mxu0 0.0
    %1261 = vmatprep.subr.mxu0 0.0
    %1262 = vmatpush2.msra.mxu0 0.0
    %1263 = vmatprep.subr.mxu0 0.0
    %1264 = vmatpush2.msra.mxu0 0.0
    %1265 = vmatprep.subr.mxu0 0.0
    %1266 = vmatpush2.msra.mxu0 0.0
    %1267 = vmatprep.subr.mxu0 0.0
    %1268 = vmatpush2.msra.mxu0 0.0
    %1269 = vmatprep.subr.mxu0 0.0
    %1270 = vmatpush2.msra.mxu0 0.0
    %1271 = vmatprep.subr.mxu0 0.0
    %1272 = vmatpush2.msra.mxu0 0.0
    %1273 = vmatprep.subr.mxu0 0.0
    %1274 = vmatpush2.msra.mxu0 0.0
    %1275 = vmatprep.subr.mxu0 0.0
    %1276 = vmatpush2.msra.mxu0 0.0
    %1277 = vmatprep.subr.mxu0 0.0
    %1278 = vmatpush2.msra.mxu0 0.0
    %1279 = vmatprep.subr.mxu0 0.0
    %1280 = vmatpush2.msra.mxu0 0.0
    %1281 = vmatprep.subr.mxu0 0.0
    %1282 = vmatpush2.msra.mxu0 0.0
    %1283 = vmatprep.subr.mxu0 0.0
    %1284 = vmatpush2.msra.mxu0 0.0
    %1285 = vmatprep.subr.mxu0 0.0
    %1286 = vmatpush2.msra.mxu0 0.0
    %1287 = vmatprep.subr.mxu0 0.0
    %1288 = vmatpush2.msra.mxu0 0.0
    %1289 = vmatprep.subr.mxu0 0.0
    %1290 = vmatpush2.msra.mxu0 0.0
    %1291 = vmatprep.mubr.f32.mxu0 0.0
    %1292 = vmatmul.mubr.f32.gmra.mxu0 %v1216
    %v1293 = vpop.f32.mrf.mxu0
    %v1294 = vadd.f32 0.0, %v1293
    %v1295 = vpop.f32.mrf.mxu0
    %1296 = vmatprep.mubr.f32.mxu0 0.0
    %1297 = vmatmul.mubr.f32.gmra.mxu0 %v1219
    %v1298 = vpop.f32.mrf.mxu0
    %v1299 = vadd.f32 0.0, %v1298
    %v1300 = vpop.f32.mrf.mxu0
    %1301 = vmatprep.mubr.f32.mxu0 0.0
    %1302 = vmatmul.mubr.f32.gmra.mxu0 %v1222
    %v1303 = vpop.f32.mrf.mxu0
    %v1304 = vadd.f32 0.0, %v1303
    %v1305 = vpop.f32.mrf.mxu0
    %1306 = vdwg.mxu0
    %v1307 = vsub.f32 %v930, %v1294
    %v1308 = vsub.f32 %v935, %v1299
    %v1309 = vsub.f32 %v940, %v1304
    %v1310 = vmul.f32 %v1307, 1.442695
    %v1311 = vpow.pop %v1310
    %v1312 = vmul.f32 %v1308, 1.442695
    %v1313 = vpow.pop %v1312
    %v1314 = vmul.f32 %v1309, 1.442695
    %v1315 = vpow.pop %v1314
    %vm1316 = vcmask 162816
    %v1318 = vsel %vm1316, %v590, 0
    %v1321 = vsel %vm1316, %v591, 0
    %v1324 = vsel %vm1224, %v1315, 0
    %1326 = vmatprep.subr.mxu0 0.0
    %1327 = vmatpush1.msra.mxu0 0.0
    %1328 = vmatprep.subr.mxu0 0.0
    %1329 = vmatpush1.msra.mxu0 0.0
    %1330 = vmatprep.subr.mxu0 0.0
    %1331 = vmatpush1.msra.mxu0 0.0
    %1332 = vmatprep.subr.mxu0 0.0
    %1333 = vmatpush1.msra.mxu0 0.0
    %1334 = vmatprep.subr.mxu0 0.0
    %1335 = vmatpush1.msra.mxu0 0.0
    %1336 = vmatprep.subr.mxu0 0.0
    %1337 = vmatpush1.msra.mxu0 0.0
    %1338 = vmatprep.subr.mxu0 0.0
    %1339 = vmatpush1.msra.mxu0 0.0
    %1340 = vmatprep.subr.mxu0 0.0
    %1341 = vmatpush1.msra.mxu0 0.0
    %1342 = vmatprep.subr.mxu0 0.0
    %1343 = vmatpush1.msra.mxu0 0.0
    %1344 = vmatprep.subr.mxu0 0.0
    %1345 = vmatpush1.msra.mxu0 0.0
    %1346 = vmatprep.subr.mxu0 0.0
    %1347 = vmatpush1.msra.mxu0 0.0
    %1348 = vmatprep.subr.mxu0 0.0
    %1349 = vmatpush1.msra.mxu0 0.0
    %1350 = vmatprep.subr.mxu0 0.0
    %1351 = vmatpush1.msra.mxu0 0.0
    %1352 = vmatprep.subr.mxu0 0.0
    %1353 = vmatpush1.msra.mxu0 %v1324
    %1354 = vmatprep.subr.mxu0 0.0
    %1355 = vmatpush1.msra.mxu0 %v1313
    %1356 = vmatprep.subr.mxu0 0.0
    %1357 = vmatpush1.msra.mxu0 %v1311
    %1358 = vmatprep.subr.mxu0 0.0
    %1359 = vmatpush2.msra.mxu0 0.0
    %1360 = vmatprep.subr.mxu0 0.0
    %1361 = vmatpush2.msra.mxu0 0.0
    %1362 = vmatprep.subr.mxu0 0.0
    %1363 = vmatpush2.msra.mxu0 0.0
    %1364 = vmatprep.subr.mxu0 0.0
    %1365 = vmatpush2.msra.mxu0 0.0
    %1366 = vmatprep.subr.mxu0 0.0
    %1367 = vmatpush2.msra.mxu0 0.0
    %1368 = vmatprep.subr.mxu0 0.0
    %1369 = vmatpush2.msra.mxu0 0.0
    %1370 = vmatprep.subr.mxu0 0.0
    %1371 = vmatpush2.msra.mxu0 0.0
    %1372 = vmatprep.subr.mxu0 0.0
    %1373 = vmatpush2.msra.mxu0 0.0
    %1374 = vmatprep.subr.mxu0 0.0
    %1375 = vmatpush2.msra.mxu0 0.0
    %1376 = vmatprep.subr.mxu0 0.0
    %1377 = vmatpush2.msra.mxu0 0.0
    %1378 = vmatprep.subr.mxu0 0.0
    %1379 = vmatpush2.msra.mxu0 0.0
    %1380 = vmatprep.subr.mxu0 0.0
    %1381 = vmatpush2.msra.mxu0 0.0
    %1382 = vmatprep.subr.mxu0 0.0
    %1383 = vmatpush2.msra.mxu0 0.0
    %1384 = vmatprep.subr.mxu0 0.0
    %1385 = vmatpush2.msra.mxu0 0.0
    %1386 = vmatprep.subr.mxu0 0.0
    %1387 = vmatpush2.msra.mxu0 0.0
    %1388 = vmatprep.subr.mxu0 0.0
    %1389 = vmatpush2.msra.mxu0 0.0
    %1390 = vmatprep.mubr.f32.mxu0 0.0
    %1391 = vmatmul.mubr.f32.gmra.mxu0 %v1318
    %v1392 = vpop.f32.mrf.mxu0
    %v1393 = vadd.f32 0.0, %v1392
    %v1394 = vpop.f32.mrf.mxu0
    %1395 = vmatprep.mubr.f32.mxu0 0.0
    %1396 = vmatmul.mubr.f32.gmra.mxu0 %v1321
    %v1397 = vpop.f32.mrf.mxu0
    %v1398 = vadd.f32 0.0, %v1397
    %v1399 = vpop.f32.mrf.mxu0
    %1400 = vdwg.mxu0
    %v1402 = vsel %vm1224, %v1398, 0
    %1404 = vmatprep.subr.mxu0 0.0
    %1405 = vmatpush1.msra.mxu0 0.0
    %1406 = vmatprep.subr.mxu0 0.0
    %1407 = vmatpush1.msra.mxu0 0.0
    %1408 = vmatprep.subr.mxu0 0.0
    %1409 = vmatpush1.msra.mxu0 0.0
    %1410 = vmatprep.subr.mxu0 0.0
    %1411 = vmatpush1.msra.mxu0 0.0
    %1412 = vmatprep.subr.mxu0 0.0
    %1413 = vmatpush1.msra.mxu0 0.0
    %1414 = vmatprep.subr.mxu0 0.0
    %1415 = vmatpush1.msra.mxu0 0.0
    %1416 = vmatprep.subr.mxu0 0.0
    %1417 = vmatpush1.msra.mxu0 0.0
    %1418 = vmatprep.subr.mxu0 0.0
    %1419 = vmatpush1.msra.mxu0 0.0
    %1420 = vmatprep.subr.mxu0 0.0
    %1421 = vmatpush1.msra.mxu0 0.0
    %1422 = vmatprep.subr.mxu0 0.0
    %1423 = vmatpush1.msra.mxu0 0.0
    %1424 = vmatprep.subr.mxu0 0.0
    %1425 = vmatpush1.msra.mxu0 0.0
    %1426 = vmatprep.subr.mxu0 0.0
    %1427 = vmatpush1.msra.mxu0 0.0
    %1428 = vmatprep.subr.mxu0 0.0
    %1429 = vmatpush1.msra.mxu0 0.0
    %1430 = vmatprep.subr.mxu0 0.0
    %1431 = vmatpush1.msra.mxu0 0.0
    %1432 = vmatprep.subr.mxu0 0.0
    %1433 = vmatpush1.msra.mxu0 %v1402
    %1434 = vmatprep.subr.mxu0 0.0
    %1435 = vmatpush1.msra.mxu0 %v1393
    %1436 = vmatprep.subr.mxu0 0.0
    %1437 = vmatpush2.msra.mxu0 0.0
    %1438 = vmatprep.subr.mxu0 0.0
    %1439 = vmatpush2.msra.mxu0 0.0
    %1440 = vmatprep.subr.mxu0 0.0
    %1441 = vmatpush2.msra.mxu0 0.0
    %1442 = vmatprep.subr.mxu0 0.0
    %1443 = vmatpush2.msra.mxu0 0.0
    %1444 = vmatprep.subr.mxu0 0.0
    %1445 = vmatpush2.msra.mxu0 0.0
    %1446 = vmatprep.subr.mxu0 0.0
    %1447 = vmatpush2.msra.mxu0 0.0
    %1448 = vmatprep.subr.mxu0 0.0
    %1449 = vmatpush2.msra.mxu0 0.0
    %1450 = vmatprep.subr.mxu0 0.0
    %1451 = vmatpush2.msra.mxu0 0.0
    %1452 = vmatprep.subr.mxu0 0.0
    %1453 = vmatpush2.msra.mxu0 0.0
    %1454 = vmatprep.subr.mxu0 0.0
    %1455 = vmatpush2.msra.mxu0 0.0
    %1456 = vmatprep.subr.mxu0 0.0
    %1457 = vmatpush2.msra.mxu0 0.0
    %1458 = vmatprep.subr.mxu0 0.0
    %1459 = vmatpush2.msra.mxu0 0.0
    %1460 = vmatprep.subr.mxu0 0.0
    %1461 = vmatpush2.msra.mxu0 0.0
    %1462 = vmatprep.subr.mxu0 0.0
    %1463 = vmatpush2.msra.mxu0 0.0
    %1464 = vmatprep.subr.mxu0 0.0
    %1465 = vmatpush2.msra.mxu0 0.0
    %1466 = vmatprep.subr.mxu0 0.0
    %1467 = vmatpush2.msra.mxu0 0.0
    %1468 = vmatprep.mubr.f32.mxu0 0.0
    %1469 = vmatmul.mubr.f32.gmra.mxu0 %v1216
    %v1470 = vpop.f32.mrf.mxu0
    %v1471 = vadd.f32 0.0, %v1470
    %v1472 = vpop.f32.mrf.mxu0
    %1473 = vmatprep.mubr.f32.mxu0 0.0
    %1474 = vmatmul.mubr.f32.gmra.mxu0 %v1219
    %v1475 = vpop.f32.mrf.mxu0
    %v1476 = vadd.f32 0.0, %v1475
    %v1477 = vpop.f32.mrf.mxu0
    %1478 = vmatprep.mubr.f32.mxu0 0.0
    %1479 = vmatmul.mubr.f32.gmra.mxu0 %v1222
    %v1480 = vpop.f32.mrf.mxu0
    %v1481 = vadd.f32 0.0, %v1480
    %v1482 = vpop.f32.mrf.mxu0
    %1483 = vdwg.mxu0
    %v1484 = vrcp.pop %v1471
    %v1485 = vmul.f32 %v1311, %v1484
    %v1486 = vrcp.pop %v1476
    %v1487 = vmul.f32 %v1313, %v1486
    %v1488 = vrcp.pop %v1481
    %v1489 = vmul.f32 %v1315, %v1488
    %v1491 = vsel %vm1316, %v597, 0
    %v1494 = vsel %vm1316, %v598, 0
    %v1497 = vsel %vm1316, %v599, 0
    %v1500 = vsel %vm1316, %v600, 0
    %v1503 = vsel %vm1316, %v601, 0
    %v1506 = vsel %vm1224, %v1489, 0
    %1508 = vmatprep.subr.mxu0 0.0
    %1509 = vmatpush1.msra.mxu0 0.0
    %1510 = vmatprep.subr.mxu0 0.0
    %1511 = vmatpush1.msra.mxu0 0.0
    %1512 = vmatprep.subr.mxu0 0.0
    %1513 = vmatpush1.msra.mxu0 0.0
    %1514 = vmatprep.subr.mxu0 0.0
    %1515 = vmatpush1.msra.mxu0 0.0
    %1516 = vmatprep.subr.mxu0 0.0
    %1517 = vmatpush1.msra.mxu0 0.0
    %1518 = vmatprep.subr.mxu0 0.0
    %1519 = vmatpush1.msra.mxu0 0.0
    %1520 = vmatprep.subr.mxu0 0.0
    %1521 = vmatpush1.msra.mxu0 0.0
    %1522 = vmatprep.subr.mxu0 0.0
    %1523 = vmatpush1.msra.mxu0 0.0
    %1524 = vmatprep.subr.mxu0 0.0
    %1525 = vmatpush1.msra.mxu0 0.0
    %1526 = vmatprep.subr.mxu0 0.0
    %1527 = vmatpush1.msra.mxu0 0.0
    %1528 = vmatprep.subr.mxu0 0.0
    %1529 = vmatpush1.msra.mxu0 0.0
    %1530 = vmatprep.subr.mxu0 0.0
    %1531 = vmatpush1.msra.mxu0 0.0
    %1532 = vmatprep.subr.mxu0 0.0
    %1533 = vmatpush1.msra.mxu0 0.0
    %1534 = vmatprep.subr.mxu0 0.0
    %1535 = vmatpush1.msra.mxu0 %v1506
    %1536 = vmatprep.subr.mxu0 0.0
    %1537 = vmatpush1.msra.mxu0 %v1487
    %1538 = vmatprep.subr.mxu0 0.0
    %1539 = vmatpush1.msra.mxu0 %v1485
    %1540 = vmatprep.subr.mxu0 0.0
    %1541 = vmatpush2.msra.mxu0 0.0
    %1542 = vmatprep.subr.mxu0 0.0
    %1543 = vmatpush2.msra.mxu0 0.0
    %1544 = vmatprep.subr.mxu0 0.0
    %1545 = vmatpush2.msra.mxu0 0.0
    %1546 = vmatprep.subr.mxu0 0.0
    %1547 = vmatpush2.msra.mxu0 0.0
    %1548 = vmatprep.subr.mxu0 0.0
    %1549 = vmatpush2.msra.mxu0 0.0
    %1550 = vmatprep.subr.mxu0 0.0
    %1551 = vmatpush2.msra.mxu0 0.0
    %1552 = vmatprep.subr.mxu0 0.0
    %1553 = vmatpush2.msra.mxu0 0.0
    %1554 = vmatprep.subr.mxu0 0.0
    %1555 = vmatpush2.msra.mxu0 0.0
    %1556 = vmatprep.subr.mxu0 0.0
    %1557 = vmatpush2.msra.mxu0 0.0
    %1558 = vmatprep.subr.mxu0 0.0
    %1559 = vmatpush2.msra.mxu0 0.0
    %1560 = vmatprep.subr.mxu0 0.0
    %1561 = vmatpush2.msra.mxu0 0.0
    %1562 = vmatprep.subr.mxu0 0.0
    %1563 = vmatpush2.msra.mxu0 0.0
    %1564 = vmatprep.subr.mxu0 0.0
    %1565 = vmatpush2.msra.mxu0 0.0
    %1566 = vmatprep.subr.mxu0 0.0
    %1567 = vmatpush2.msra.mxu0 0.0
    %1568 = vmatprep.subr.mxu0 0.0
    %1569 = vmatpush2.msra.mxu0 0.0
    %1570 = vmatprep.subr.mxu0 0.0
    %1571 = vmatpush2.msra.mxu0 0.0
    %1572 = vmatprep.mubr.f32.mxu0 0.0
    %1573 = vmatmul.mubr.f32.gmra.mxu0 %v1491
    %v1574 = vpop.f32.mrf.mxu0
    %v1575 = vadd.f32 0.0, %v1574
    %v1576 = vpop.f32.mrf.mxu0
    %1577 = vmatprep.mubr.f32.mxu0 0.0
    %1578 = vmatmul.mubr.f32.gmra.mxu0 %v1494
    %v1579 = vpop.f32.mrf.mxu0
    %v1580 = vadd.f32 0.0, %v1579
    %v1581 = vpop.f32.mrf.mxu0
    %1582 = vmatprep.mubr.f32.mxu0 0.0
    %1583 = vmatmul.mubr.f32.gmra.mxu0 %v1497
    %v1584 = vpop.f32.mrf.mxu0
    %v1585 = vadd.f32 0.0, %v1584
    %v1586 = vpop.f32.mrf.mxu0
    %1587 = vmatprep.mubr.f32.mxu0 0.0
    %1588 = vmatmul.mubr.f32.gmra.mxu0 %v1500
    %v1589 = vpop.f32.mrf.mxu0
    %v1590 = vadd.f32 0.0, %v1589
    %v1591 = vpop.f32.mrf.mxu0
    %1592 = vmatprep.mubr.f32.mxu0 0.0
    %1593 = vmatmul.mubr.f32.gmra.mxu0 %v1503
    %v1594 = vpop.f32.mrf.mxu0
    %v1595 = vadd.f32 0.0, %v1594
    %v1596 = vpop.f32.mrf.mxu0
    %1597 = vdwg.mxu0
    %v1599 = vsel %vm169, %v569, 0
    %v1602 = vsel %vm169, %v574, 0
    %v1605 = vsel %vm169, %v579, 0
    %1607 = vmatprep.subr.mxu0 0.0
    %1608 = vmatpush1.msra.mxu0 0.0
    %1609 = vmatprep.subr.mxu0 0.0
    %1610 = vmatpush1.msra.mxu0 0.0
    %1611 = vmatprep.subr.mxu0 0.0
    %1612 = vmatpush1.msra.mxu0 0.0
    %1613 = vmatprep.subr.mxu0 0.0
    %1614 = vmatpush1.msra.mxu0 0.0
    %1615 = vmatprep.subr.mxu0 0.0
    %1616 = vmatpush1.msra.mxu0 0.0
    %1617 = vmatprep.subr.mxu0 0.0
    %1618 = vmatpush1.msra.mxu0 0.0
    %1619 = vmatprep.subr.mxu0 0.0
    %1620 = vmatpush1.msra.mxu0 0.0
    %1621 = vmatprep.subr.mxu0 0.0
    %1622 = vmatpush1.msra.mxu0 0.0
    %1623 = vmatprep.subr.mxu0 0.0
    %1624 = vmatpush1.msra.mxu0 0.0
    %1625 = vmatprep.subr.mxu0 0.0
    %1626 = vmatpush1.msra.mxu0 0.0
    %1627 = vmatprep.subr.mxu0 0.0
    %1628 = vmatpush1.msra.mxu0 0.0
    %1629 = vmatprep.subr.mxu0 0.0
    %1630 = vmatpush1.msra.mxu0 0.0
    %1631 = vmatprep.subr.mxu0 0.0
    %1632 = vmatpush1.msra.mxu0 %v837
    %1633 = vmatprep.subr.mxu0 0.0
    %1634 = vmatpush1.msra.mxu0 %v836
    %1635 = vmatprep.subr.mxu0 0.0
    %1636 = vmatpush1.msra.mxu0 %v835
    %1637 = vmatprep.subr.mxu0 0.0
    %1638 = vmatpush1.msra.mxu0 %v834
    %1639 = vmatprep.subr.mxu0 0.0
    %1640 = vmatpush2.msra.mxu0 0.0
    %1641 = vmatprep.subr.mxu0 0.0
    %1642 = vmatpush2.msra.mxu0 0.0
    %1643 = vmatprep.subr.mxu0 0.0
    %1644 = vmatpush2.msra.mxu0 0.0
    %1645 = vmatprep.subr.mxu0 0.0
    %1646 = vmatpush2.msra.mxu0 0.0
    %1647 = vmatprep.subr.mxu0 0.0
    %1648 = vmatpush2.msra.mxu0 0.0
    %1649 = vmatprep.subr.mxu0 0.0
    %1650 = vmatpush2.msra.mxu0 0.0
    %1651 = vmatprep.subr.mxu0 0.0
    %1652 = vmatpush2.msra.mxu0 0.0
    %1653 = vmatprep.subr.mxu0 0.0
    %1654 = vmatpush2.msra.mxu0 0.0
    %1655 = vmatprep.subr.mxu0 0.0
    %1656 = vmatpush2.msra.mxu0 0.0
    %1657 = vmatprep.subr.mxu0 0.0
    %1658 = vmatpush2.msra.mxu0 0.0
    %1659 = vmatprep.subr.mxu0 0.0
    %1660 = vmatpush2.msra.mxu0 0.0
    %1661 = vmatprep.subr.mxu0 0.0
    %1662 = vmatpush2.msra.mxu0 0.0
    %1663 = vmatprep.subr.mxu0 0.0
    %1664 = vmatpush2.msra.mxu0 0.0
    %1665 = vmatprep.subr.mxu0 0.0
    %1666 = vmatpush2.msra.mxu0 0.0
    %1667 = vmatprep.subr.mxu0 0.0
    %1668 = vmatpush2.msra.mxu0 0.0
    %1669 = vmatprep.subr.mxu0 0.0
    %1670 = vmatpush2.msra.mxu0 0.0
    %1671 = vmatprep.mubr.f32.mxu0 0.0
    %1672 = vmatmul.mubr.f32.gmra.mxu0 %v1599
    %v1673 = vpop.f32.mrf.mxu0
    %v1674 = vadd.f32 0.0, %v1673
    %v1675 = vpop.f32.mrf.mxu0
    %1676 = vmatprep.mubr.f32.mxu0 0.0
    %1677 = vmatmul.mubr.f32.gmra.mxu0 %v1602
    %v1678 = vpop.f32.mrf.mxu0
    %v1679 = vadd.f32 0.0, %v1678
    %v1680 = vpop.f32.mrf.mxu0
    %1681 = vmatprep.mubr.f32.mxu0 0.0
    %1682 = vmatmul.mubr.f32.gmra.mxu0 %v1605
    %v1683 = vpop.f32.mrf.mxu0
    %v1684 = vadd.f32 0.0, %v1683
    %v1685 = vpop.f32.mrf.mxu0
    %1686 = vdwg.mxu0
    %v1688 = vsel %vm378, %v607, 0
    %v1691 = vsel %vm378, %v608, 0
    %v1694 = vsel %vm378, %v609, 0
    %v1697 = vsel %vm378, %v610, 0
    %v1700 = vsel %vm378, %v611, 0
    %1702 = vmatprep.subr.mxu0 0.0
    %1703 = vmatpush1.msra.mxu0 0.0
    %1704 = vmatprep.subr.mxu0 0.0
    %1705 = vmatpush1.msra.mxu0 0.0
    %1706 = vmatprep.subr.mxu0 0.0
    %1707 = vmatpush1.msra.mxu0 0.0
    %1708 = vmatprep.subr.mxu0 0.0
    %1709 = vmatpush1.msra.mxu0 0.0
    %1710 = vmatprep.subr.mxu0 0.0
    %1711 = vmatpush1.msra.mxu0 0.0
    %1712 = vmatprep.subr.mxu0 0.0
    %1713 = vmatpush1.msra.mxu0 0.0
    %1714 = vmatprep.subr.mxu0 0.0
    %1715 = vmatpush1.msra.mxu0 0.0
    %1716 = vmatprep.subr.mxu0 0.0
    %1717 = vmatpush1.msra.mxu0 0.0
    %1718 = vmatprep.subr.mxu0 0.0
    %1719 = vmatpush1.msra.mxu0 0.0
    %1720 = vmatprep.subr.mxu0 0.0
    %1721 = vmatpush1.msra.mxu0 0.0
    %1722 = vmatprep.subr.mxu0 0.0
    %1723 = vmatpush1.msra.mxu0 0.0
    %1724 = vmatprep.subr.mxu0 0.0
    %1725 = vmatpush1.msra.mxu0 0.0
    %1726 = vmatprep.subr.mxu0 0.0
    %1727 = vmatpush1.msra.mxu0 0.0
    %1728 = vmatprep.subr.mxu0 0.0
    %1729 = vmatpush1.msra.mxu0 %v1684
    %1730 = vmatprep.subr.mxu0 0.0
    %1731 = vmatpush1.msra.mxu0 %v1679
    %1732 = vmatprep.subr.mxu0 0.0
    %1733 = vmatpush1.msra.mxu0 %v1674
    %1734 = vmatprep.subr.mxu0 0.0
    %1735 = vmatpush2.msra.mxu0 0.0
    %1736 = vmatprep.subr.mxu0 0.0
    %1737 = vmatpush2.msra.mxu0 0.0
    %1738 = vmatprep.subr.mxu0 0.0
    %1739 = vmatpush2.msra.mxu0 0.0
    %1740 = vmatprep.subr.mxu0 0.0
    %1741 = vmatpush2.msra.mxu0 0.0
    %1742 = vmatprep.subr.mxu0 0.0
    %1743 = vmatpush2.msra.mxu0 0.0
    %1744 = vmatprep.subr.mxu0 0.0
    %1745 = vmatpush2.msra.mxu0 0.0
    %1746 = vmatprep.subr.mxu0 0.0
    %1747 = vmatpush2.msra.mxu0 0.0
    %1748 = vmatprep.subr.mxu0 0.0
    %1749 = vmatpush2.msra.mxu0 0.0
    %1750 = vmatprep.subr.mxu0 0.0
    %1751 = vmatpush2.msra.mxu0 0.0
    %1752 = vmatprep.subr.mxu0 0.0
    %1753 = vmatpush2.msra.mxu0 0.0
    %1754 = vmatprep.subr.mxu0 0.0
    %1755 = vmatpush2.msra.mxu0 0.0
    %1756 = vmatprep.subr.mxu0 0.0
    %1757 = vmatpush2.msra.mxu0 0.0
    %1758 = vmatprep.subr.mxu0 0.0
    %1759 = vmatpush2.msra.mxu0 0.0
    %1760 = vmatprep.subr.mxu0 0.0
    %1761 = vmatpush2.msra.mxu0 0.0
    %1762 = vmatprep.subr.mxu0 0.0
    %1763 = vmatpush2.msra.mxu0 0.0
    %1764 = vmatprep.subr.mxu0 0.0
    %1765 = vmatpush2.msra.mxu0 0.0
    %1766 = vmatprep.mubr.f32.mxu0 0.0
    %1767 = vmatmul.mubr.f32.gmra.mxu0 %v1688
    %v1768 = vpop.f32.mrf.mxu0
    %v1769 = vadd.f32 0.0, %v1768
    %v1770 = vpop.f32.mrf.mxu0
    %1771 = vmatprep.mubr.f32.mxu0 0.0
    %1772 = vmatmul.mubr.f32.gmra.mxu0 %v1691
    %v1773 = vpop.f32.mrf.mxu0
    %v1774 = vadd.f32 0.0, %v1773
    %v1775 = vpop.f32.mrf.mxu0
    %1776 = vmatprep.mubr.f32.mxu0 0.0
    %1777 = vmatmul.mubr.f32.gmra.mxu0 %v1694
    %v1778 = vpop.f32.mrf.mxu0
    %v1779 = vadd.f32 0.0, %v1778
    %v1780 = vpop.f32.mrf.mxu0
    %1781 = vmatprep.mubr.f32.mxu0 0.0
    %1782 = vmatmul.mubr.f32.gmra.mxu0 %v1697
    %v1783 = vpop.f32.mrf.mxu0
    %v1784 = vadd.f32 0.0, %v1783
    %v1785 = vpop.f32.mrf.mxu0
    %1786 = vmatprep.mubr.f32.mxu0 0.0
    %1787 = vmatmul.mubr.f32.gmra.mxu0 %v1700
    %v1788 = vpop.f32.mrf.mxu0
    %v1789 = vadd.f32 0.0, %v1788
    %v1790 = vpop.f32.mrf.mxu0
    %1791 = vdwg.mxu0
    %v1792 = vmul.f32 %v1575, %v1769
    %v1793 = vmul.f32 %v1580, %v1774
    %v1794 = vmul.f32 %v1585, %v1779
    %v1795 = vmul.f32 %v1590, %v1784
    %v1796 = vmul.f32 %v1595, %v1789
    %vm1797 = vcmask 326656
    %v1799 = vsel %vm1797, %v615, 0
    %v1802 = vsel %vm1797, %v616, 0
    %v1805 = vsel %vm1797, %v617, 0
    %1807 = vmatprep.subr.mxu0 0.0
    %1808 = vmatpush1.msra.mxu0 0.0
    %1809 = vmatprep.subr.mxu0 0.0
    %1810 = vmatpush1.msra.mxu0 0.0
    %1811 = vmatprep.subr.mxu0 0.0
    %1812 = vmatpush1.msra.mxu0 0.0
    %1813 = vmatprep.subr.mxu0 0.0
    %1814 = vmatpush1.msra.mxu0 0.0
    %1815 = vmatprep.subr.mxu0 0.0
    %1816 = vmatpush1.msra.mxu0 0.0
    %1817 = vmatprep.subr.mxu0 0.0
    %1818 = vmatpush1.msra.mxu0 0.0
    %1819 = vmatprep.subr.mxu0 0.0
    %1820 = vmatpush1.msra.mxu0 0.0
    %1821 = vmatprep.subr.mxu0 0.0
    %1822 = vmatpush1.msra.mxu0 0.0
    %1823 = vmatprep.subr.mxu0 0.0
    %1824 = vmatpush1.msra.mxu0 0.0
    %1825 = vmatprep.subr.mxu0 0.0
    %1826 = vmatpush1.msra.mxu0 0.0
    %1827 = vmatprep.subr.mxu0 0.0
    %1828 = vmatpush1.msra.mxu0 0.0
    %1829 = vmatprep.subr.mxu0 0.0
    %1830 = vmatpush1.msra.mxu0 %v1796
    %1831 = vmatprep.subr.mxu0 0.0
    %1832 = vmatpush1.msra.mxu0 %v1795
    %1833 = vmatprep.subr.mxu0 0.0
    %1834 = vmatpush1.msra.mxu0 %v1794
    %1835 = vmatprep.subr.mxu0 0.0
    %1836 = vmatpush1.msra.mxu0 %v1793
    %1837 = vmatprep.subr.mxu0 0.0
    %1838 = vmatpush1.msra.mxu0 %v1792
    %1839 = vmatprep.subr.mxu0 0.0
    %1840 = vmatpush2.msra.mxu0 0.0
    %1841 = vmatprep.subr.mxu0 0.0
    %1842 = vmatpush2.msra.mxu0 0.0
    %1843 = vmatprep.subr.mxu0 0.0
    %1844 = vmatpush2.msra.mxu0 0.0
    %1845 = vmatprep.subr.mxu0 0.0
    %1846 = vmatpush2.msra.mxu0 0.0
    %1847 = vmatprep.subr.mxu0 0.0
    %1848 = vmatpush2.msra.mxu0 0.0
    %1849 = vmatprep.subr.mxu0 0.0
    %1850 = vmatpush2.msra.mxu0 0.0
    %1851 = vmatprep.subr.mxu0 0.0
    %1852 = vmatpush2.msra.mxu0 0.0
    %1853 = vmatprep.subr.mxu0 0.0
    %1854 = vmatpush2.msra.mxu0 0.0
    %1855 = vmatprep.subr.mxu0 0.0
    %1856 = vmatpush2.msra.mxu0 0.0
    %1857 = vmatprep.subr.mxu0 0.0
    %1858 = vmatpush2.msra.mxu0 0.0
    %1859 = vmatprep.subr.mxu0 0.0
    %1860 = vmatpush2.msra.mxu0 0.0
    %1861 = vmatprep.subr.mxu0 0.0
    %1862 = vmatpush2.msra.mxu0 0.0
    %1863 = vmatprep.subr.mxu0 0.0
    %1864 = vmatpush2.msra.mxu0 0.0
    %1865 = vmatprep.subr.mxu0 0.0
    %1866 = vmatpush2.msra.mxu0 0.0
    %1867 = vmatprep.subr.mxu0 0.0
    %1868 = vmatpush2.msra.mxu0 0.0
    %1869 = vmatprep.subr.mxu0 0.0
    %1870 = vmatpush2.msra.mxu0 0.0
    %1871 = vmatprep.mubr.f32.mxu0 0.0
    %1872 = vmatmul.mubr.f32.gmra.mxu0 %v1799
    %v1873 = vpop.f32.mrf.mxu0
    %v1874 = vadd.f32 0.0, %v1873
    %v1875 = vpop.f32.mrf.mxu0
    %1876 = vmatprep.mubr.f32.mxu0 0.0
    %1877 = vmatmul.mubr.f32.gmra.mxu0 %v1802
    %v1878 = vpop.f32.mrf.mxu0
    %v1879 = vadd.f32 0.0, %v1878
    %v1880 = vpop.f32.mrf.mxu0
    %1881 = vmatprep.mubr.f32.mxu0 0.0
    %1882 = vmatmul.mubr.f32.gmra.mxu0 %v1805
    %v1883 = vpop.f32.mrf.mxu0
    %v1884 = vadd.f32 0.0, %v1883
    %v1885 = vpop.f32.mrf.mxu0
    %1886 = vdwg.mxu0
    %1887 = vmatprep.subr.mxu0 0.0
    %1888 = vmatpush1.msra.mxu0 0.0
    %1889 = vmatprep.subr.mxu0 0.0
    %1890 = vmatpush1.msra.mxu0 0.0
    %1891 = vmatprep.subr.mxu0 0.0
    %1892 = vmatpush1.msra.mxu0 0.0
    %1893 = vmatprep.subr.mxu0 0.0
    %1894 = vmatpush1.msra.mxu0 0.0
    %1895 = vmatprep.subr.mxu0 0.0
    %1896 = vmatpush1.msra.mxu0 0.0
    %1897 = vmatprep.subr.mxu0 0.0
    %1898 = vmatpush1.msra.mxu0 0.0
    %1899 = vmatprep.subr.mxu0 0.0
    %1900 = vmatpush1.msra.mxu0 0.0
    %1901 = vmatprep.subr.mxu0 0.0
    %1902 = vmatpush1.msra.mxu0 0.0
    %1903 = vmatprep.subr.mxu0 0.0
    %1904 = vmatpush1.msra.mxu0 0.0
    %1905 = vmatprep.subr.mxu0 0.0
    %1906 = vmatpush1.msra.mxu0 0.0
    %1907 = vmatprep.subr.mxu0 0.0
    %1908 = vmatpush1.msra.mxu0 0.0
    %1909 = vmatprep.subr.mxu0 0.0
    %1910 = vmatpush1.msra.mxu0 0.0
    %1911 = vmatprep.subr.mxu0 0.0
    %1912 = vmatpush1.msra.mxu0 0.0
    %1913 = vmatprep.subr.mxu0 0.0
    %1914 = vmatpush1.msra.mxu0 %v1884
    %1915 = vmatprep.subr.mxu0 0.0
    %1916 = vmatpush1.msra.mxu0 %v1879
    %1917 = vmatprep.subr.mxu0 0.0
    %1918 = vmatpush1.msra.mxu0 %v1874
    %1919 = vmatprep.subr.mxu0 0.0
    %1920 = vmatpush2.msra.mxu0 0.0
    %1921 = vmatprep.subr.mxu0 0.0
    %1922 = vmatpush2.msra.mxu0 0.0
    %1923 = vmatprep.subr.mxu0 0.0
    %1924 = vmatpush2.msra.mxu0 0.0
    %1925 = vmatprep.subr.mxu0 0.0
    %1926 = vmatpush2.msra.mxu0 0.0
    %1927 = vmatprep.subr.mxu0 0.0
    %1928 = vmatpush2.msra.mxu0 0.0
    %1929 = vmatprep.subr.mxu0 0.0
    %1930 = vmatpush2.msra.mxu0 0.0
    %1931 = vmatprep.subr.mxu0 0.0
    %1932 = vmatpush2.msra.mxu0 0.0
    %1933 = vmatprep.subr.mxu0 0.0
    %1934 = vmatpush2.msra.mxu0 0.0
    %1935 = vmatprep.subr.mxu0 0.0
    %1936 = vmatpush2.msra.mxu0 0.0
    %1937 = vmatprep.subr.mxu0 0.0
    %1938 = vmatpush2.msra.mxu0 0.0
    %1939 = vmatprep.subr.mxu0 0.0
    %1940 = vmatpush2.msra.mxu0 0.0
    %1941 = vmatprep.subr.mxu0 0.0
    %1942 = vmatpush2.msra.mxu0 0.0
    %1943 = vmatprep.subr.mxu0 0.0
    %1944 = vmatpush2.msra.mxu0 0.0
    %1945 = vmatprep.subr.mxu0 0.0
    %1946 = vmatpush2.msra.mxu0 0.0
    %1947 = vmatprep.subr.mxu0 0.0
    %1948 = vmatpush2.msra.mxu0 0.0
    %1949 = vmatprep.subr.mxu0 0.0
    %1950 = vmatpush2.msra.mxu0 0.0
    %1951 = vmatprep.mubr.f32.mxu0 0.0
    %1952 = vmatmul.mubr.f32.gmra.mxu0 %v1688
    %v1953 = vpop.f32.mrf.mxu0
    %v1954 = vadd.f32 0.0, %v1953
    %v1955 = vpop.f32.mrf.mxu0
    %1956 = vmatprep.mubr.f32.mxu0 0.0
    %1957 = vmatmul.mubr.f32.gmra.mxu0 %v1691
    %v1958 = vpop.f32.mrf.mxu0
    %v1959 = vadd.f32 0.0, %v1958
    %v1960 = vpop.f32.mrf.mxu0
    %1961 = vmatprep.mubr.f32.mxu0 0.0
    %1962 = vmatmul.mubr.f32.gmra.mxu0 %v1694
    %v1963 = vpop.f32.mrf.mxu0
    %v1964 = vadd.f32 0.0, %v1963
    %v1965 = vpop.f32.mrf.mxu0
    %1966 = vmatprep.mubr.f32.mxu0 0.0
    %1967 = vmatmul.mubr.f32.gmra.mxu0 %v1697
    %v1968 = vpop.f32.mrf.mxu0
    %v1969 = vadd.f32 0.0, %v1968
    %v1970 = vpop.f32.mrf.mxu0
    %1971 = vmatprep.mubr.f32.mxu0 0.0
    %1972 = vmatmul.mubr.f32.gmra.mxu0 %v1700
    %v1973 = vpop.f32.mrf.mxu0
    %v1974 = vadd.f32 0.0, %v1973
    %v1975 = vpop.f32.mrf.mxu0
    %1976 = vdwg.mxu0
    %v1977 = vmul.f32 %v1575, %v1954
    %v1978 = vmul.f32 %v1580, %v1959
    %v1979 = vmul.f32 %v1585, %v1964
    %v1980 = vmul.f32 %v1590, %v1969
    %v1981 = vmul.f32 %v1595, %v1974
    %1982 = vmatprep.subr.mxu0 0.0
    %1983 = vmatpush1.msra.mxu0 0.0
    %1984 = vmatprep.subr.mxu0 0.0
    %1985 = vmatpush1.msra.mxu0 0.0
    %1986 = vmatprep.subr.mxu0 0.0
    %1987 = vmatpush1.msra.mxu0 0.0
    %1988 = vmatprep.subr.mxu0 0.0
    %1989 = vmatpush1.msra.mxu0 0.0
    %1990 = vmatprep.subr.mxu0 0.0
    %1991 = vmatpush1.msra.mxu0 0.0
    %1992 = vmatprep.subr.mxu0 0.0
    %1993 = vmatpush1.msra.mxu0 0.0
    %1994 = vmatprep.subr.mxu0 0.0
    %1995 = vmatpush1.msra.mxu0 0.0
    %1996 = vmatprep.subr.mxu0 0.0
    %1997 = vmatpush1.msra.mxu0 0.0
    %1998 = vmatprep.subr.mxu0 0.0
    %1999 = vmatpush1.msra.mxu0 0.0
    %2000 = vmatprep.subr.mxu0 0.0
    %2001 = vmatpush1.msra.mxu0 0.0
    %2002 = vmatprep.subr.mxu0 0.0
    %2003 = vmatpush1.msra.mxu0 0.0
    %2004 = vmatprep.subr.mxu0 0.0
    %2005 = vmatpush1.msra.mxu0 %v1981
    %2006 = vmatprep.subr.mxu0 0.0
    %2007 = vmatpush1.msra.mxu0 %v1980
    %2008 = vmatprep.subr.mxu0 0.0
    %2009 = vmatpush1.msra.mxu0 %v1979
    %2010 = vmatprep.subr.mxu0 0.0
    %2011 = vmatpush1.msra.mxu0 %v1978
    %2012 = vmatprep.subr.mxu0 0.0
    %2013 = vmatpush1.msra.mxu0 %v1977
    %2014 = vmatprep.subr.mxu0 0.0
    %2015 = vmatpush2.msra.mxu0 0.0
    %2016 = vmatprep.subr.mxu0 0.0
    %2017 = vmatpush2.msra.mxu0 0.0
    %2018 = vmatprep.subr.mxu0 0.0
    %2019 = vmatpush2.msra.mxu0 0.0
    %2020 = vmatprep.subr.mxu0 0.0
    %2021 = vmatpush2.msra.mxu0 0.0
    %2022 = vmatprep.subr.mxu0 0.0
    %2023 = vmatpush2.msra.mxu0 0.0
    %2024 = vmatprep.subr.mxu0 0.0
    %2025 = vmatpush2.msra.mxu0 0.0
    %2026 = vmatprep.subr.mxu0 0.0
    %2027 = vmatpush2.msra.mxu0 0.0
    %2028 = vmatprep.subr.mxu0 0.0
    %2029 = vmatpush2.msra.mxu0 0.0
    %2030 = vmatprep.subr.mxu0 0.0
    %2031 = vmatpush2.msra.mxu0 0.0
    %2032 = vmatprep.subr.mxu0 0.0
    %2033 = vmatpush2.msra.mxu0 0.0
    %2034 = vmatprep.subr.mxu0 0.0
    %2035 = vmatpush2.msra.mxu0 0.0
    %2036 = vmatprep.subr.mxu0 0.0
    %2037 = vmatpush2.msra.mxu0 0.0
    %2038 = vmatprep.subr.mxu0 0.0
    %2039 = vmatpush2.msra.mxu0 0.0
    %2040 = vmatprep.subr.mxu0 0.0
    %2041 = vmatpush2.msra.mxu0 0.0
    %2042 = vmatprep.subr.mxu0 0.0
    %2043 = vmatpush2.msra.mxu0 0.0
    %2044 = vmatprep.subr.mxu0 0.0
    %2045 = vmatpush2.msra.mxu0 0.0
    %2046 = vmatprep.mubr.f32.mxu0 0.0
    %2047 = vmatmul.mubr.f32.gmra.mxu0 %v1799
    %v2048 = vpop.f32.mrf.mxu0
    %v2049 = vadd.f32 0.0, %v2048
    %v2050 = vpop.f32.mrf.mxu0
    %2051 = vmatprep.mubr.f32.mxu0 0.0
    %2052 = vmatmul.mubr.f32.gmra.mxu0 %v1802
    %v2053 = vpop.f32.mrf.mxu0
    %v2054 = vadd.f32 0.0, %v2053
    %v2055 = vpop.f32.mrf.mxu0
    %2056 = vmatprep.mubr.f32.mxu0 0.0
    %2057 = vmatmul.mubr.f32.gmra.mxu0 %v1805
    %v2058 = vpop.f32.mrf.mxu0
    %v2059 = vadd.f32 0.0, %v2058
    %v2060 = vpop.f32.mrf.mxu0
    %2061 = vdwg.mxu0
    %2062 = vmatprep.subr.mxu0 0.0
    %2063 = vmatpush1.msra.mxu0 0.0
    %2064 = vmatprep.subr.mxu0 0.0
    %2065 = vmatpush1.msra.mxu0 0.0
    %2066 = vmatprep.subr.mxu0 0.0
    %2067 = vmatpush1.msra.mxu0 0.0
    %2068 = vmatprep.subr.mxu0 0.0
    %2069 = vmatpush1.msra.mxu0 0.0
    %2070 = vmatprep.subr.mxu0 0.0
    %2071 = vmatpush1.msra.mxu0 0.0
    %2072 = vmatprep.subr.mxu0 0.0
    %2073 = vmatpush1.msra.mxu0 0.0
    %2074 = vmatprep.subr.mxu0 0.0
    %2075 = vmatpush1.msra.mxu0 0.0
    %2076 = vmatprep.subr.mxu0 0.0
    %2077 = vmatpush1.msra.mxu0 0.0
    %2078 = vmatprep.subr.mxu0 0.0
    %2079 = vmatpush1.msra.mxu0 0.0
    %2080 = vmatprep.subr.mxu0 0.0
    %2081 = vmatpush1.msra.mxu0 0.0
    %2082 = vmatprep.subr.mxu0 0.0
    %2083 = vmatpush1.msra.mxu0 0.0
    %2084 = vmatprep.subr.mxu0 0.0
    %2085 = vmatpush1.msra.mxu0 0.0
    %2086 = vmatprep.subr.mxu0 0.0
    %2087 = vmatpush1.msra.mxu0 0.0
    %2088 = vmatprep.subr.mxu0 0.0
    %2089 = vmatpush1.msra.mxu0 %v2059
    %2090 = vmatprep.subr.mxu0 0.0
    %2091 = vmatpush1.msra.mxu0 %v2054
    %2092 = vmatprep.subr.mxu0 0.0
    %2093 = vmatpush1.msra.mxu0 %v2049
    %2094 = vmatprep.subr.mxu0 0.0
    %2095 = vmatpush2.msra.mxu0 0.0
    %2096 = vmatprep.subr.mxu0 0.0
    %2097 = vmatpush2.msra.mxu0 0.0
    %2098 = vmatprep.subr.mxu0 0.0
    %2099 = vmatpush2.msra.mxu0 0.0
    %2100 = vmatprep.subr.mxu0 0.0
    %2101 = vmatpush2.msra.mxu0 0.0
    %2102 = vmatprep.subr.mxu0 0.0
    %2103 = vmatpush2.msra.mxu0 0.0
    %2104 = vmatprep.subr.mxu0 0.0
    %2105 = vmatpush2.msra.mxu0 0.0
    %2106 = vmatprep.subr.mxu0 0.0
    %2107 = vmatpush2.msra.mxu0 0.0
    %2108 = vmatprep.subr.mxu0 0.0
    %2109 = vmatpush2.msra.mxu0 0.0
    %2110 = vmatprep.subr.mxu0 0.0
    %2111 = vmatpush2.msra.mxu0 0.0
    %2112 = vmatprep.subr.mxu0 0.0
    %2113 = vmatpush2.msra.mxu0 0.0
    %2114 = vmatprep.subr.mxu0 0.0
    %2115 = vmatpush2.msra.mxu0 0.0
    %2116 = vmatprep.subr.mxu0 0.0
    %2117 = vmatpush2.msra.mxu0 0.0
    %2118 = vmatprep.subr.mxu0 0.0
    %2119 = vmatpush2.msra.mxu0 0.0
    %2120 = vmatprep.subr.mxu0 0.0
    %2121 = vmatpush2.msra.mxu0 0.0
    %2122 = vmatprep.subr.mxu0 0.0
    %2123 = vmatpush2.msra.mxu0 0.0
    %2124 = vmatprep.subr.mxu0 0.0
    %2125 = vmatpush2.msra.mxu0 0.0
    %2126 = vmatprep.mubr.f32.mxu0 0.0
    %2127 = vmatmul.mubr.f32.gmra.mxu0 %v1688
    %v2128 = vpop.f32.mrf.mxu0
    %v2129 = vadd.f32 0.0, %v2128
    %v2130 = vpop.f32.mrf.mxu0
    %2131 = vmatprep.mubr.f32.mxu0 0.0
    %2132 = vmatmul.mubr.f32.gmra.mxu0 %v1691
    %v2133 = vpop.f32.mrf.mxu0
    %v2134 = vadd.f32 0.0, %v2133
    %v2135 = vpop.f32.mrf.mxu0
    %2136 = vmatprep.mubr.f32.mxu0 0.0
    %2137 = vmatmul.mubr.f32.gmra.mxu0 %v1694
    %v2138 = vpop.f32.mrf.mxu0
    %v2139 = vadd.f32 0.0, %v2138
    %v2140 = vpop.f32.mrf.mxu0
    %2141 = vmatprep.mubr.f32.mxu0 0.0
    %2142 = vmatmul.mubr.f32.gmra.mxu0 %v1697
    %v2143 = vpop.f32.mrf.mxu0
    %v2144 = vadd.f32 0.0, %v2143
    %v2145 = vpop.f32.mrf.mxu0
    %2146 = vmatprep.mubr.f32.mxu0 0.0
    %2147 = vmatmul.mubr.f32.gmra.mxu0 %v1700
    %v2148 = vpop.f32.mrf.mxu0
    %v2149 = vadd.f32 0.0, %v2148
    %v2150 = vpop.f32.mrf.mxu0
    %2151 = vdwg.mxu0
    %v2152 = vmul.f32 %v1575, %v2129
    %v2153 = vmul.f32 %v1580, %v2134
    %v2154 = vmul.f32 %v1585, %v2139
    %v2155 = vmul.f32 %v1590, %v2144
    %v2156 = vmul.f32 %v1595, %v2149
    %2157 = vmatprep.subr.mxu0 0.0
    %2158 = vmatpush1.msra.mxu0 0.0
    %2159 = vmatprep.subr.mxu0 0.0
    %2160 = vmatpush1.msra.mxu0 0.0
    %2161 = vmatprep.subr.mxu0 0.0
    %2162 = vmatpush1.msra.mxu0 0.0
    %2163 = vmatprep.subr.mxu0 0.0
    %2164 = vmatpush1.msra.mxu0 0.0
    %2165 = vmatprep.subr.mxu0 0.0
    %2166 = vmatpush1.msra.mxu0 0.0
    %2167 = vmatprep.subr.mxu0 0.0
    %2168 = vmatpush1.msra.mxu0 0.0
    %2169 = vmatprep.subr.mxu0 0.0
    %2170 = vmatpush1.msra.mxu0 0.0
    %2171 = vmatprep.subr.mxu0 0.0
    %2172 = vmatpush1.msra.mxu0 0.0
    %2173 = vmatprep.subr.mxu0 0.0
    %2174 = vmatpush1.msra.mxu0 0.0
    %2175 = vmatprep.subr.mxu0 0.0
    %2176 = vmatpush1.msra.mxu0 0.0
    %2177 = vmatprep.subr.mxu0 0.0
    %2178 = vmatpush1.msra.mxu0 0.0
    %2179 = vmatprep.subr.mxu0 0.0
    %2180 = vmatpush1.msra.mxu0 %v2156
    %2181 = vmatprep.subr.mxu0 0.0
    %2182 = vmatpush1.msra.mxu0 %v2155
    %2183 = vmatprep.subr.mxu0 0.0
    %2184 = vmatpush1.msra.mxu0 %v2154
    %2185 = vmatprep.subr.mxu0 0.0
    %2186 = vmatpush1.msra.mxu0 %v2153
    %2187 = vmatprep.subr.mxu0 0.0
    %2188 = vmatpush1.msra.mxu0 %v2152
    %2189 = vmatprep.subr.mxu0 0.0
    %2190 = vmatpush2.msra.mxu0 0.0
    %2191 = vmatprep.subr.mxu0 0.0
    %2192 = vmatpush2.msra.mxu0 0.0
    %2193 = vmatprep.subr.mxu0 0.0
    %2194 = vmatpush2.msra.mxu0 0.0
    %2195 = vmatprep.subr.mxu0 0.0
    %2196 = vmatpush2.msra.mxu0 0.0
    %2197 = vmatprep.subr.mxu0 0.0
    %2198 = vmatpush2.msra.mxu0 0.0
    %2199 = vmatprep.subr.mxu0 0.0
    %2200 = vmatpush2.msra.mxu0 0.0
    %2201 = vmatprep.subr.mxu0 0.0
    %2202 = vmatpush2.msra.mxu0 0.0
    %2203 = vmatprep.subr.mxu0 0.0
    %2204 = vmatpush2.msra.mxu0 0.0
    %2205 = vmatprep.subr.mxu0 0.0
    %2206 = vmatpush2.msra.mxu0 0.0
    %2207 = vmatprep.subr.mxu0 0.0
    %2208 = vmatpush2.msra.mxu0 0.0
    %2209 = vmatprep.subr.mxu0 0.0
    %2210 = vmatpush2.msra.mxu0 0.0
    %2211 = vmatprep.subr.mxu0 0.0
    %2212 = vmatpush2.msra.mxu0 0.0
    %2213 = vmatprep.subr.mxu0 0.0
    %2214 = vmatpush2.msra.mxu0 0.0
    %2215 = vmatprep.subr.mxu0 0.0
    %2216 = vmatpush2.msra.mxu0 0.0
    %2217 = vmatprep.subr.mxu0 0.0
    %2218 = vmatpush2.msra.mxu0 0.0
    %2219 = vmatprep.subr.mxu0 0.0
    %2220 = vmatpush2.msra.mxu0 0.0
    %2221 = vmatprep.mubr.f32.mxu0 0.0
    %2222 = vmatmul.mubr.f32.gmra.mxu0 %v1799
    %v2223 = vpop.f32.mrf.mxu0
    %v2224 = vadd.f32 0.0, %v2223
    %v2225 = vpop.f32.mrf.mxu0
    %2226 = vmatprep.mubr.f32.mxu0 0.0
    %2227 = vmatmul.mubr.f32.gmra.mxu0 %v1802
    %v2228 = vpop.f32.mrf.mxu0
    %v2229 = vadd.f32 0.0, %v2228
    %v2230 = vpop.f32.mrf.mxu0
    %2231 = vmatprep.mubr.f32.mxu0 0.0
    %2232 = vmatmul.mubr.f32.gmra.mxu0 %v1805
    %v2233 = vpop.f32.mrf.mxu0
    %v2234 = vadd.f32 0.0, %v2233
    %v2235 = vpop.f32.mrf.mxu0
    %2236 = vdwg.mxu0
    %2237 = vmatprep.subr.mxu0 0.0
    %2238 = vmatpush1.msra.mxu0 0.0
    %2239 = vmatprep.subr.mxu0 0.0
    %2240 = vmatpush1.msra.mxu0 0.0
    %2241 = vmatprep.subr.mxu0 0.0
    %2242 = vmatpush1.msra.mxu0 0.0
    %2243 = vmatprep.subr.mxu0 0.0
    %2244 = vmatpush1.msra.mxu0 0.0
    %2245 = vmatprep.subr.mxu0 0.0
    %2246 = vmatpush1.msra.mxu0 0.0
    %2247 = vmatprep.subr.mxu0 0.0
    %2248 = vmatpush1.msra.mxu0 0.0
    %2249 = vmatprep.subr.mxu0 0.0
    %2250 = vmatpush1.msra.mxu0 0.0
    %2251 = vmatprep.subr.mxu0 0.0
    %2252 = vmatpush1.msra.mxu0 0.0
    %2253 = vmatprep.subr.mxu0 0.0
    %2254 = vmatpush1.msra.mxu0 0.0
    %2255 = vmatprep.subr.mxu0 0.0
    %2256 = vmatpush1.msra.mxu0 0.0
    %2257 = vmatprep.subr.mxu0 0.0
    %2258 = vmatpush1.msra.mxu0 0.0
    %2259 = vmatprep.subr.mxu0 0.0
    %2260 = vmatpush1.msra.mxu0 0.0
    %2261 = vmatprep.subr.mxu0 0.0
    %2262 = vmatpush1.msra.mxu0 0.0
    %2263 = vmatprep.subr.mxu0 0.0
    %2264 = vmatpush1.msra.mxu0 %v2234
    %2265 = vmatprep.subr.mxu0 0.0
    %2266 = vmatpush1.msra.mxu0 %v2229
    %2267 = vmatprep.subr.mxu0 0.0
    %2268 = vmatpush1.msra.mxu0 %v2224
    %2269 = vmatprep.subr.mxu0 0.0
    %2270 = vmatpush2.msra.mxu0 0.0
    %2271 = vmatprep.subr.mxu0 0.0
    %2272 = vmatpush2.msra.mxu0 0.0
    %2273 = vmatprep.subr.mxu0 0.0
    %2274 = vmatpush2.msra.mxu0 0.0
    %2275 = vmatprep.subr.mxu0 0.0
    %2276 = vmatpush2.msra.mxu0 0.0
    %2277 = vmatprep.subr.mxu0 0.0
    %2278 = vmatpush2.msra.mxu0 0.0
    %2279 = vmatprep.subr.mxu0 0.0
    %2280 = vmatpush2.msra.mxu0 0.0
    %2281 = vmatprep.subr.mxu0 0.0
    %2282 = vmatpush2.msra.mxu0 0.0
    %2283 = vmatprep.subr.mxu0 0.0
    %2284 = vmatpush2.msra.mxu0 0.0
    %2285 = vmatprep.subr.mxu0 0.0
    %2286 = vmatpush2.msra.mxu0 0.0
    %2287 = vmatprep.subr.mxu0 0.0
    %2288 = vmatpush2.msra.mxu0 0.0
    %2289 = vmatprep.subr.mxu0 0.0
    %2290 = vmatpush2.msra.mxu0 0.0
    %2291 = vmatprep.subr.mxu0 0.0
    %2292 = vmatpush2.msra.mxu0 0.0
    %2293 = vmatprep.subr.mxu0 0.0
    %2294 = vmatpush2.msra.mxu0 0.0
    %2295 = vmatprep.subr.mxu0 0.0
    %2296 = vmatpush2.msra.mxu0 0.0
    %2297 = vmatprep.subr.mxu0 0.0
    %2298 = vmatpush2.msra.mxu0 0.0
    %2299 = vmatprep.subr.mxu0 0.0
    %2300 = vmatpush2.msra.mxu0 0.0
    %2301 = vmatprep.mubr.f32.mxu0 0.0
    %2302 = vmatmul.mubr.f32.gmra.mxu0 %v1688
    %v2303 = vpop.f32.mrf.mxu0
    %v2304 = vadd.f32 0.0, %v2303
    %v2305 = vpop.f32.mrf.mxu0
    %2306 = vmatprep.mubr.f32.mxu0 0.0
    %2307 = vmatmul.mubr.f32.gmra.mxu0 %v1691
    %v2308 = vpop.f32.mrf.mxu0
    %v2309 = vadd.f32 0.0, %v2308
    %v2310 = vpop.f32.mrf.mxu0
    %2311 = vmatprep.mubr.f32.mxu0 0.0
    %2312 = vmatmul.mubr.f32.gmra.mxu0 %v1694
    %v2313 = vpop.f32.mrf.mxu0
    %v2314 = vadd.f32 0.0, %v2313
    %v2315 = vpop.f32.mrf.mxu0
    %2316 = vmatprep.mubr.f32.mxu0 0.0
    %2317 = vmatmul.mubr.f32.gmra.mxu0 %v1697
    %v2318 = vpop.f32.mrf.mxu0
    %v2319 = vadd.f32 0.0, %v2318
    %v2320 = vpop.f32.mrf.mxu0
    %2321 = vmatprep.mubr.f32.mxu0 0.0
    %2322 = vmatmul.mubr.f32.gmra.mxu0 %v1700
    %v2323 = vpop.f32.mrf.mxu0
    %v2324 = vadd.f32 0.0, %v2323
    %v2325 = vpop.f32.mrf.mxu0
    %2326 = vdwg.mxu0
    %v2327 = vmul.f32 %v1575, %v2304
    %v2328 = vmul.f32 %v1580, %v2309
    %v2329 = vmul.f32 %v1585, %v2314
    %v2330 = vmul.f32 %v1590, %v2319
    %v2331 = vmul.f32 %v1595, %v2324
    %2332 = vmatprep.subr.mxu0 0.0
    %2333 = vmatpush1.msra.mxu0 0.0
    %2334 = vmatprep.subr.mxu0 0.0
    %2335 = vmatpush1.msra.mxu0 0.0
    %2336 = vmatprep.subr.mxu0 0.0
    %2337 = vmatpush1.msra.mxu0 0.0
    %2338 = vmatprep.subr.mxu0 0.0
    %2339 = vmatpush1.msra.mxu0 0.0
    %2340 = vmatprep.subr.mxu0 0.0
    %2341 = vmatpush1.msra.mxu0 0.0
    %2342 = vmatprep.subr.mxu0 0.0
    %2343 = vmatpush1.msra.mxu0 0.0
    %2344 = vmatprep.subr.mxu0 0.0
    %2345 = vmatpush1.msra.mxu0 0.0
    %2346 = vmatprep.subr.mxu0 0.0
    %2347 = vmatpush1.msra.mxu0 0.0
    %2348 = vmatprep.subr.mxu0 0.0
    %2349 = vmatpush1.msra.mxu0 0.0
    %2350 = vmatprep.subr.mxu0 0.0
    %2351 = vmatpush1.msra.mxu0 0.0
    %2352 = vmatprep.subr.mxu0 0.0
    %2353 = vmatpush1.msra.mxu0 0.0
    %2354 = vmatprep.subr.mxu0 0.0
    %2355 = vmatpush1.msra.mxu0 %v2331
    %2356 = vmatprep.subr.mxu0 0.0
    %2357 = vmatpush1.msra.mxu0 %v2330
    %2358 = vmatprep.subr.mxu0 0.0
    %2359 = vmatpush1.msra.mxu0 %v2329
    %2360 = vmatprep.subr.mxu0 0.0
    %2361 = vmatpush1.msra.mxu0 %v2328
    %2362 = vmatprep.subr.mxu0 0.0
    %2363 = vmatpush1.msra.mxu0 %v2327
    %2364 = vmatprep.subr.mxu0 0.0
    %2365 = vmatpush2.msra.mxu0 0.0
    %2366 = vmatprep.subr.mxu0 0.0
    %2367 = vmatpush2.msra.mxu0 0.0
    %2368 = vmatprep.subr.mxu0 0.0
    %2369 = vmatpush2.msra.mxu0 0.0
    %2370 = vmatprep.subr.mxu0 0.0
    %2371 = vmatpush2.msra.mxu0 0.0
    %2372 = vmatprep.subr.mxu0 0.0
    %2373 = vmatpush2.msra.mxu0 0.0
    %2374 = vmatprep.subr.mxu0 0.0
    %2375 = vmatpush2.msra.mxu0 0.0
    %2376 = vmatprep.subr.mxu0 0.0
    %2377 = vmatpush2.msra.mxu0 0.0
    %2378 = vmatprep.subr.mxu0 0.0
    %2379 = vmatpush2.msra.mxu0 0.0
    %2380 = vmatprep.subr.mxu0 0.0
    %2381 = vmatpush2.msra.mxu0 0.0
    %2382 = vmatprep.subr.mxu0 0.0
    %2383 = vmatpush2.msra.mxu0 0.0
    %2384 = vmatprep.subr.mxu0 0.0
    %2385 = vmatpush2.msra.mxu0 0.0
    %2386 = vmatprep.subr.mxu0 0.0
    %2387 = vmatpush2.msra.mxu0 0.0
    %2388 = vmatprep.subr.mxu0 0.0
    %2389 = vmatpush2.msra.mxu0 0.0
    %2390 = vmatprep.subr.mxu0 0.0
    %2391 = vmatpush2.msra.mxu0 0.0
    %2392 = vmatprep.subr.mxu0 0.0
    %2393 = vmatpush2.msra.mxu0 0.0
    %2394 = vmatprep.subr.mxu0 0.0
    %2395 = vmatpush2.msra.mxu0 0.0
    %2396 = vmatprep.mubr.f32.mxu0 0.0
    %2397 = vmatmul.mubr.f32.gmra.mxu0 %v1799
    %v2398 = vpop.f32.mrf.mxu0
    %v2399 = vadd.f32 0.0, %v2398
    %v2400 = vpop.f32.mrf.mxu0
    %2401 = vmatprep.mubr.f32.mxu0 0.0
    %2402 = vmatmul.mubr.f32.gmra.mxu0 %v1802
    %v2403 = vpop.f32.mrf.mxu0
    %v2404 = vadd.f32 0.0, %v2403
    %v2405 = vpop.f32.mrf.mxu0
    %2406 = vmatprep.mubr.f32.mxu0 0.0
    %2407 = vmatmul.mubr.f32.gmra.mxu0 %v1805
    %v2408 = vpop.f32.mrf.mxu0
    %v2409 = vadd.f32 0.0, %v2408
    %v2410 = vpop.f32.mrf.mxu0
    %2411 = vdwg.mxu0
    %2415 = vrot.lane.b32.xlu0 %v1874, 8
    %v2416 = vpop.permute.xlu0 %2415
    %2417 = vrot.lane.b32.xlu0 %v1879, 8
    %v2418 = vpop.permute.xlu0 %2417
    %2419 = vrot.lane.b32.xlu0 %v1884, 8
    %v2420 = vpop.permute.xlu0 %2419
    %2427 = vrot.lane.b32.xlu0 %v2049, 16
    %v2428 = vpop.permute.xlu0 %2427
    %2429 = vrot.lane.b32.xlu0 %v2054, 16
    %v2430 = vpop.permute.xlu0 %2429
    %2431 = vrot.lane.b32.xlu0 %v2059, 16
    %v2432 = vpop.permute.xlu0 %2431
    %2439 = vrot.lane.b32.xlu0 %v2224, 24
    %v2440 = vpop.permute.xlu0 %2439
    %2441 = vrot.lane.b32.xlu0 %v2229, 24
    %v2442 = vpop.permute.xlu0 %2441
    %2443 = vrot.lane.b32.xlu0 %v2234, 24
    %v2444 = vpop.permute.xlu0 %2443
    %2451 = vrot.lane.b32.xlu0 %v2399, 32
    %v2452 = vpop.permute.xlu0 %2451
    %2453 = vrot.lane.b32.xlu0 %v2404, 32
    %v2454 = vpop.permute.xlu0 %2453
    %2455 = vrot.lane.b32.xlu0 %v2409, 32
    %v2456 = vpop.permute.xlu0 %2455
    %v2460 = vsel %vm181, %v1674, %v2416
    %v2461 = vsel %vm181, %v1679, %v2418
    %v2462 = vsel %vm181, %v1684, %v2420
    %v2463 = vsel %vm95, %v2460, %v2428
    %v2464 = vsel %vm95, %v2461, %v2430
    %v2465 = vsel %vm95, %v2462, %v2432
    %v2466 = vsel %vm378, %v2463, %v2440
    %v2467 = vsel %vm378, %v2464, %v2442
    %v2468 = vsel %vm378, %v2465, %v2444
    %v2469 = vsel %vm169, %v2466, %v2452
    %v2470 = vsel %vm169, %v2467, %v2454
    %v2471 = vsel %vm169, %v2468, %v2456
    %v2473 = vlaneseq
    %v2474 = vshrl.u32 %v2473, 7
    %v2475 = vsub.s32 0, %v2474
    %v2476 = vrot.slane %v847, %v2475
    %v2479 = vsel %vm1797, %v2469, 0
    %v2482 = vsel %vm1797, %v2470, 0
    %v2485 = vsel %vm1797, %v2471, 0
    %2487 = vmatprep.subr.mxu0 0.0
    %2488 = vmatpush1.msra.mxu0 0.0
    %2489 = vmatprep.subr.mxu0 0.0
    %2490 = vmatpush1.msra.mxu0 0.0
    %2491 = vmatprep.subr.mxu0 0.0
    %2492 = vmatpush1.msra.mxu0 0.0
    %2493 = vmatprep.subr.mxu0 0.0
    %2494 = vmatpush1.msra.mxu0 0.0
    %2495 = vmatprep.subr.mxu0 0.0
    %2496 = vmatpush1.msra.mxu0 0.0
    %2497 = vmatprep.subr.mxu0 0.0
    %2498 = vmatpush1.msra.mxu0 0.0
    %2499 = vmatprep.subr.mxu0 0.0
    %2500 = vmatpush1.msra.mxu0 0.0
    %2501 = vmatprep.subr.mxu0 0.0
    %2502 = vmatpush1.msra.mxu0 0.0
    %2503 = vmatprep.subr.mxu0 0.0
    %2504 = vmatpush1.msra.mxu0 0.0
    %2505 = vmatprep.subr.mxu0 0.0
    %2506 = vmatpush1.msra.mxu0 0.0
    %2507 = vmatprep.subr.mxu0 0.0
    %2508 = vmatpush1.msra.mxu0 0.0
    %2509 = vmatprep.subr.mxu0 0.0
    %2510 = vmatpush1.msra.mxu0 %v846
    %2511 = vmatprep.subr.mxu0 0.0
    %2512 = vmatpush1.msra.mxu0 %v845
    %2513 = vmatprep.subr.mxu0 0.0
    %2514 = vmatpush1.msra.mxu0 %v844
    %2515 = vmatprep.subr.mxu0 0.0
    %2516 = vmatpush1.msra.mxu0 %v843
    %2517 = vmatprep.subr.mxu0 0.0
    %2518 = vmatpush1.msra.mxu0 %v842
    %2519 = vmatprep.subr.mxu0 0.0
    %2520 = vmatpush2.msra.mxu0 0.0
    %2521 = vmatprep.subr.mxu0 0.0
    %2522 = vmatpush2.msra.mxu0 0.0
    %2523 = vmatprep.subr.mxu0 0.0
    %2524 = vmatpush2.msra.mxu0 0.0
    %2525 = vmatprep.subr.mxu0 0.0
    %2526 = vmatpush2.msra.mxu0 0.0
    %2527 = vmatprep.subr.mxu0 0.0
    %2528 = vmatpush2.msra.mxu0 0.0
    %2529 = vmatprep.subr.mxu0 0.0
    %2530 = vmatpush2.msra.mxu0 0.0
    %2531 = vmatprep.subr.mxu0 0.0
    %2532 = vmatpush2.msra.mxu0 0.0
    %2533 = vmatprep.subr.mxu0 0.0
    %2534 = vmatpush2.msra.mxu0 0.0
    %2535 = vmatprep.subr.mxu0 0.0
    %2536 = vmatpush2.msra.mxu0 0.0
    %2537 = vmatprep.subr.mxu0 0.0
    %2538 = vmatpush2.msra.mxu0 0.0
    %2539 = vmatprep.subr.mxu0 0.0
    %2540 = vmatpush2.msra.mxu0 0.0
    %2541 = vmatprep.subr.mxu0 0.0
    %2542 = vmatpush2.msra.mxu0 0.0
    %2543 = vmatprep.subr.mxu0 0.0
    %2544 = vmatpush2.msra.mxu0 0.0
    %2545 = vmatprep.subr.mxu0 0.0
    %2546 = vmatpush2.msra.mxu0 0.0
    %2547 = vmatprep.subr.mxu0 0.0
    %2548 = vmatpush2.msra.mxu0 0.0
    %2549 = vmatprep.subr.mxu0 0.0
    %2550 = vmatpush2.msra.mxu0 0.0
    %2551 = vmatprep.mubr.f32.mxu0 0.0
    %2552 = vmatmul.mubr.f32.gmra.mxu0 %v2479
    %v2553 = vpop.f32.mrf.mxu0
    %v2554 = vadd.f32 %v2476, %v2553
    %v2555 = vpop.f32.mrf.mxu0
    %2556 = vmatprep.mubr.f32.mxu0 0.0
    %2557 = vmatmul.mubr.f32.gmra.mxu0 %v2482
    %v2558 = vpop.f32.mrf.mxu0
    %v2559 = vadd.f32 %v2476, %v2558
    %v2560 = vpop.f32.mrf.mxu0
    %2561 = vmatprep.mubr.f32.mxu0 0.0
    %2562 = vmatmul.mubr.f32.gmra.mxu0 %v2485
    %v2563 = vpop.f32.mrf.mxu0
    %v2564 = vadd.f32 %v2476, %v2563
    %v2565 = vpop.f32.mrf.mxu0
    %2566 = vdwg.mxu0
    %v2567 = vmul.f32 %v2554, 0.5
    %v2568 = vmul.f32 %v2559, 0.5
    %v2569 = vmul.f32 %v2564, 0.5
    %v2570 = vmul.f32 %v2554, 0.70710677
    %v2571 = vmul.f32 %v2559, 0.70710677
    %v2572 = vmul.f32 %v2564, 0.70710677
    %v2573 = verf.f32.pop %v2570
    %v2574 = verf.f32.pop %v2571
    %v2575 = verf.f32.pop %v2572
    %v2576 = vadd.f32 %v2573, 1.0
    %v2577 = vadd.f32 %v2574, 1.0
    %v2578 = vadd.f32 %v2575, 1.0
    %v2579 = vmul.f32 %v2567, %v2576
    %v2580 = vmul.f32 %v2568, %v2577
    %v2581 = vmul.f32 %v2569, %v2578
    %v2583 = vlaneseq
    %v2584 = vshrl.u32 %v2583, 7
    %v2585 = vsub.s32 0, %v2584
    %v2586 = vrot.slane %v853, %v2585
    %v2589 = vsel %vm1797, %v2579, 0
    %v2592 = vsel %vm1797, %v2580, 0
    %v2595 = vsel %vm1797, %v2581, 0
    %2597 = vmatprep.subr.mxu0 0.0
    %2598 = vmatpush1.msra.mxu0 0.0
    %2599 = vmatprep.subr.mxu0 0.0
    %2600 = vmatpush1.msra.mxu0 0.0
    %2601 = vmatprep.subr.mxu0 0.0
    %2602 = vmatpush1.msra.mxu0 0.0
    %2603 = vmatprep.subr.mxu0 0.0
    %2604 = vmatpush1.msra.mxu0 0.0
    %2605 = vmatprep.subr.mxu0 0.0
    %2606 = vmatpush1.msra.mxu0 0.0
    %2607 = vmatprep.subr.mxu0 0.0
    %2608 = vmatpush1.msra.mxu0 0.0
    %2609 = vmatprep.subr.mxu0 0.0
    %2610 = vmatpush1.msra.mxu0 0.0
    %2611 = vmatprep.subr.mxu0 0.0
    %2612 = vmatpush1.msra.mxu0 0.0
    %2613 = vmatprep.subr.mxu0 0.0
    %2614 = vmatpush1.msra.mxu0 0.0
    %2615 = vmatprep.subr.mxu0 0.0
    %2616 = vmatpush1.msra.mxu0 0.0
    %2617 = vmatprep.subr.mxu0 0.0
    %2618 = vmatpush1.msra.mxu0 0.0
    %2619 = vmatprep.subr.mxu0 0.0
    %2620 = vmatpush1.msra.mxu0 %v852
    %2621 = vmatprep.subr.mxu0 0.0
    %2622 = vmatpush1.msra.mxu0 %v851
    %2623 = vmatprep.subr.mxu0 0.0
    %2624 = vmatpush1.msra.mxu0 %v850
    %2625 = vmatprep.subr.mxu0 0.0
    %2626 = vmatpush1.msra.mxu0 %v849
    %2627 = vmatprep.subr.mxu0 0.0
    %2628 = vmatpush1.msra.mxu0 %v848
    %2629 = vmatprep.subr.mxu0 0.0
    %2630 = vmatpush2.msra.mxu0 0.0
    %2631 = vmatprep.subr.mxu0 0.0
    %2632 = vmatpush2.msra.mxu0 0.0
    %2633 = vmatprep.subr.mxu0 0.0
    %2634 = vmatpush2.msra.mxu0 0.0
    %2635 = vmatprep.subr.mxu0 0.0
    %2636 = vmatpush2.msra.mxu0 0.0
    %2637 = vmatprep.subr.mxu0 0.0
    %2638 = vmatpush2.msra.mxu0 0.0
    %2639 = vmatprep.subr.mxu0 0.0
    %2640 = vmatpush2.msra.mxu0 0.0
    %2641 = vmatprep.subr.mxu0 0.0
    %2642 = vmatpush2.msra.mxu0 0.0
    %2643 = vmatprep.subr.mxu0 0.0
    %2644 = vmatpush2.msra.mxu0 0.0
    %2645 = vmatprep.subr.mxu0 0.0
    %2646 = vmatpush2.msra.mxu0 0.0
    %2647 = vmatprep.subr.mxu0 0.0
    %2648 = vmatpush2.msra.mxu0 0.0
    %2649 = vmatprep.subr.mxu0 0.0
    %2650 = vmatpush2.msra.mxu0 0.0
    %2651 = vmatprep.subr.mxu0 0.0
    %2652 = vmatpush2.msra.mxu0 0.0
    %2653 = vmatprep.subr.mxu0 0.0
    %2654 = vmatpush2.msra.mxu0 0.0
    %2655 = vmatprep.subr.mxu0 0.0
    %2656 = vmatpush2.msra.mxu0 0.0
    %2657 = vmatprep.subr.mxu0 0.0
    %2658 = vmatpush2.msra.mxu0 0.0
    %2659 = vmatprep.subr.mxu0 0.0
    %2660 = vmatpush2.msra.mxu0 0.0
    %2661 = vmatprep.mubr.f32.mxu0 0.0
    %2662 = vmatmul.mubr.f32.gmra.mxu0 %v2589
    %v2663 = vpop.f32.mrf.mxu0
    %v2664 = vadd.f32 %v2586, %v2663
    %v2665 = vpop.f32.mrf.mxu0
    %2666 = vmatprep.mubr.f32.mxu0 0.0
    %2667 = vmatmul.mubr.f32.gmra.mxu0 %v2592
    %v2668 = vpop.f32.mrf.mxu0
    %v2669 = vadd.f32 %v2586, %v2668
    %v2670 = vpop.f32.mrf.mxu0
    %2671 = vmatprep.mubr.f32.mxu0 0.0
    %2672 = vmatmul.mubr.f32.gmra.mxu0 %v2595
    %v2673 = vpop.f32.mrf.mxu0
    %v2674 = vadd.f32 %v2586, %v2673
    %v2675 = vpop.f32.mrf.mxu0
    %2676 = vdwg.mxu0
    %v2677 = vmul.f32 %v569, 2.0
    %v2678 = vmul.f32 %v574, 2.0
    %v2679 = vmul.f32 %v579, 2.0
    %v2680 = vadd.f32 %v2664, %v2677
    %v2681 = vadd.f32 %v2669, %v2678
    %v2682 = vadd.f32 %v2674, %v2679
    %s2683 = scalar_lea.vmem %s19, 32
    %v2684 = vld [vmem:[%s2683] sm:$0xff]
    %v2685 = vld [vmem:[%s2683 + $0x8] sm:$0xff]
    %v2686 = vld [vmem:[%s2683 + $0x10] sm:$0xff]
    %v2687 = vld [vmem:[%s2683 + $0x18] sm:$0xff]
    %s2688 = scalar_lea.vmem %s20, 32
    %v2689 = vld [vmem:[%s2688] sm:$0xff]
    %v2690 = vld [vmem:[%s2688 + $0x8] sm:$0xff]
    %v2691 = vld [vmem:[%s2688 + $0x10] sm:$0xff]
    %v2692 = vld [vmem:[%s2688 + $0x18] sm:$0xff]
    %s2693 = scalar_lea.vmem %s21, 40
    %v2694 = vld [vmem:[%s2693] sm:$0xff]
    %v2695 = vld [vmem:[%s2693 + $0x8] sm:$0xff]
    %v2696 = vld [vmem:[%s2693 + $0x10] sm:$0xff]
    %v2697 = vld [vmem:[%s2693 + $0x18] sm:$0xff]
    %v2698 = vld [vmem:[%s2693 + $0x20] sm:$0xff]
    %s2699 = scalar_lea.vmem %s22, 1
    %v2700 = vld [vmem:[%s2699] sm:$0x1]
    %s2701 = scalar_lea.vmem %s23, 40
    %v2702 = vld [vmem:[%s2701] sm:$0xff]
    %v2703 = vld [vmem:[%s2701 + $0x8] sm:$0xff]
    %v2704 = vld [vmem:[%s2701 + $0x10] sm:$0xff]
    %v2705 = vld [vmem:[%s2701 + $0x18] sm:$0xff]
    %v2706 = vld [vmem:[%s2701 + $0x20] sm:$0xff]
    %s2707 = scalar_lea.vmem %s24, 1
    %v2708 = vld [vmem:[%s2707] sm:$0x1]
    %2709 = vmatprep.subr.mxu0 0.0
    %2710 = vmatpush1.msra.mxu0 0.0
    %2711 = vmatprep.subr.mxu0 0.0
    %2712 = vmatpush1.msra.mxu0 0.0
    %2713 = vmatprep.subr.mxu0 0.0
    %2714 = vmatpush1.msra.mxu0 0.0
    %2715 = vmatprep.subr.mxu0 0.0
    %2716 = vmatpush1.msra.mxu0 0.0
    %2717 = vmatprep.subr.mxu0 0.0
    %2718 = vmatpush1.msra.mxu0 0.0
    %2719 = vmatprep.subr.mxu0 0.0
    %2720 = vmatpush1.msra.mxu0 0.0
    %2721 = vmatprep.subr.mxu0 0.0
    %2722 = vmatpush1.msra.mxu0 0.0
    %2723 = vmatprep.subr.mxu0 0.0
    %2724 = vmatpush1.msra.mxu0 0.0
    %2725 = vmatprep.subr.mxu0 0.0
    %2726 = vmatpush1.msra.mxu0 0.0
    %2727 = vmatprep.subr.mxu0 0.0
    %2728 = vmatpush1.msra.mxu0 0.0
    %2729 = vmatprep.subr.mxu0 0.0
    %2730 = vmatpush1.msra.mxu0 0.0
    %2731 = vmatprep.subr.mxu0 0.0
    %2732 = vmatpush1.msra.mxu0 0.0
    %2733 = vmatprep.subr.mxu0 0.0
    %2734 = vmatpush1.msra.mxu0 %v2692
    %2735 = vmatprep.subr.mxu0 0.0
    %2736 = vmatpush1.msra.mxu0 %v2691
    %2737 = vmatprep.subr.mxu0 0.0
    %2738 = vmatpush1.msra.mxu0 %v2690
    %2739 = vmatprep.subr.mxu0 0.0
    %2740 = vmatpush1.msra.mxu0 %v2689
    %2741 = vmatprep.subr.mxu0 0.0
    %2742 = vmatpush2.msra.mxu0 0.0
    %2743 = vmatprep.subr.mxu0 0.0
    %2744 = vmatpush2.msra.mxu0 0.0
    %2745 = vmatprep.subr.mxu0 0.0
    %2746 = vmatpush2.msra.mxu0 0.0
    %2747 = vmatprep.subr.mxu0 0.0
    %2748 = vmatpush2.msra.mxu0 0.0
    %2749 = vmatprep.subr.mxu0 0.0
    %2750 = vmatpush2.msra.mxu0 0.0
    %2751 = vmatprep.subr.mxu0 0.0
    %2752 = vmatpush2.msra.mxu0 0.0
    %2753 = vmatprep.subr.mxu0 0.0
    %2754 = vmatpush2.msra.mxu0 0.0
    %2755 = vmatprep.subr.mxu0 0.0
    %2756 = vmatpush2.msra.mxu0 0.0
    %2757 = vmatprep.subr.mxu0 0.0
    %2758 = vmatpush2.msra.mxu0 0.0
    %2759 = vmatprep.subr.mxu0 0.0
    %2760 = vmatpush2.msra.mxu0 0.0
    %2761 = vmatprep.subr.mxu0 0.0
    %2762 = vmatpush2.msra.mxu0 0.0
    %2763 = vmatprep.subr.mxu0 0.0
    %2764 = vmatpush2.msra.mxu0 0.0
    %2765 = vmatprep.subr.mxu0 0.0
    %2766 = vmatpush2.msra.mxu0 0.0
    %2767 = vmatprep.subr.mxu0 0.0
    %2768 = vmatpush2.msra.mxu0 0.0
    %2769 = vmatprep.subr.mxu0 0.0
    %2770 = vmatpush2.msra.mxu0 0.0
    %2771 = vmatprep.subr.mxu0 0.0
    %2772 = vmatpush2.msra.mxu0 0.0
    %2773 = vmatprep.mubr.f32.mxu0 0.0
    %2774 = vmatmul.mubr.f32.gmra.mxu0 %v855
    %v2775 = vpop.f32.mrf.mxu0
    %v2776 = vadd.f32 0.0, %v2775
    %v2777 = vpop.f32.mrf.mxu0
    %2778 = vmatprep.mubr.f32.mxu0 0.0
    %2779 = vmatmul.mubr.f32.gmra.mxu0 %v858
    %v2780 = vpop.f32.mrf.mxu0
    %v2781 = vadd.f32 0.0, %v2780
    %v2782 = vpop.f32.mrf.mxu0
    %2783 = vmatprep.mubr.f32.mxu0 0.0
    %2784 = vmatmul.mubr.f32.gmra.mxu0 %v861
    %v2785 = vpop.f32.mrf.mxu0
    %v2786 = vadd.f32 0.0, %v2785
    %v2787 = vpop.f32.mrf.mxu0
    %2788 = vdwg.mxu0
    %v2789 = vsel %vm979, %v2776, -1e+30
    %v2790 = vsel %vm980, %v2781, -1e+30
    %v2791 = vsel %vm981, %v2786, -1e+30
    %v2792 = vsel %vm982, %v2776, -1e+30
    %v2793 = vsel %vm983, %v2781, -1e+30
    %v2794 = vsel %vm984, %v2786, -1e+30
    %v2795 = vsel %vm985, %v2776, -1e+30
    %v2796 = vsel %vm986, %v2781, -1e+30
    %v2797 = vsel %vm987, %v2786, -1e+30
    %v2798 = vsel %vm988, %v2776, -1e+30
    %v2799 = vsel %vm989, %v2781, -1e+30
    %v2800 = vsel %vm990, %v2786, -1e+30
    %v2801 = vsel %vm991, %v2776, -1e+30
    %v2802 = vsel %vm992, %v2781, -1e+30
    %v2803 = vsel %vm993, %v2786, -1e+30
    %v2804 = vsel %vm994, %v2776, -1e+30
    %v2805 = vsel %vm995, %v2781, -1e+30
    %v2806 = vsel %vm996, %v2786, -1e+30
    %v2807 = vsel %vm997, %v2776, -1e+30
    %v2808 = vsel %vm998, %v2781, -1e+30
    %v2809 = vsel %vm999, %v2786, -1e+30
    %v2810 = vsel %vm1000, %v2776, -1e+30
    %v2811 = vsel %vm1001, %v2781, -1e+30
    %v2812 = vsel %vm1002, %v2786, -1e+30
    %v2813 = vsel %vm1003, %v2776, -1e+30
    %v2814 = vsel %vm1004, %v2781, -1e+30
    %v2815 = vsel %vm1005, %v2786, -1e+30
    %v2816 = vsel %vm1006, %v2776, -1e+30
    %v2817 = vsel %vm1007, %v2781, -1e+30
    %v2818 = vsel %vm1008, %v2786, -1e+30
    %v2819 = vsel %vm1009, %v2776, -1e+30
    %v2820 = vsel %vm1010, %v2781, -1e+30
    %v2821 = vsel %vm1011, %v2786, -1e+30
    %v2822 = vsel %vm1012, %v2776, -1e+30
    %v2823 = vsel %vm1013, %v2781, -1e+30
    %v2824 = vsel %vm1014, %v2786, -1e+30
    %v2825 = vsel %vm181, %v2789, -inf
    %v2826 = vsel %vm181, %v2790, -inf
    %v2827 = vmax.f32 %v2825, %v2826
    %v2828 = vsel %vm1054, %v2791, -inf
    %v2829 = vmax.f32 %v2827, %v2828
    %v2830 = vrot.slane %v2829, 4
    %v2831 = vmax.f32 %v2829, %v2830
    %v2832 = vrot.slane %v2831, 2
    %v2833 = vmax.f32 %v2831, %v2832
    %v2834 = vrot.slane %v2833, 1
    %v2835 = vmax.f32 %v2833, %v2834
    %v2836 = vsel %vm181, %v2792, -inf
    %v2837 = vsel %vm181, %v2793, -inf
    %v2838 = vmax.f32 %v2836, %v2837
    %v2839 = vsel %vm1054, %v2794, -inf
    %v2840 = vmax.f32 %v2838, %v2839
    %v2841 = vrot.slane %v2840, 4
    %v2842 = vmax.f32 %v2840, %v2841
    %v2843 = vrot.slane %v2842, 2
    %v2844 = vmax.f32 %v2842, %v2843
    %v2845 = vrot.slane %v2844, 1
    %v2846 = vmax.f32 %v2844, %v2845
    %v2847 = vsel %vm181, %v2795, -inf
    %v2848 = vsel %vm181, %v2796, -inf
    %v2849 = vmax.f32 %v2847, %v2848
    %v2850 = vsel %vm1054, %v2797, -inf
    %v2851 = vmax.f32 %v2849, %v2850
    %v2852 = vrot.slane %v2851, 4
    %v2853 = vmax.f32 %v2851, %v2852
    %v2854 = vrot.slane %v2853, 2
    %v2855 = vmax.f32 %v2853, %v2854
    %v2856 = vrot.slane %v2855, 1
    %v2857 = vmax.f32 %v2855, %v2856
    %v2858 = vsel %vm181, %v2798, -inf
    %v2859 = vsel %vm181, %v2799, -inf
    %v2860 = vmax.f32 %v2858, %v2859
    %v2861 = vsel %vm1054, %v2800, -inf
    %v2862 = vmax.f32 %v2860, %v2861
    %v2863 = vrot.slane %v2862, 4
    %v2864 = vmax.f32 %v2862, %v2863
    %v2865 = vrot.slane %v2864, 2
    %v2866 = vmax.f32 %v2864, %v2865
    %v2867 = vrot.slane %v2866, 1
    %v2868 = vmax.f32 %v2866, %v2867
    %v2869 = vsel %vm181, %v2801, -inf
    %v2870 = vsel %vm181, %v2802, -inf
    %v2871 = vmax.f32 %v2869, %v2870
    %v2872 = vsel %vm1054, %v2803, -inf
    %v2873 = vmax.f32 %v2871, %v2872
    %v2874 = vrot.slane %v2873, 4
    %v2875 = vmax.f32 %v2873, %v2874
    %v2876 = vrot.slane %v2875, 2
    %v2877 = vmax.f32 %v2875, %v2876
    %v2878 = vrot.slane %v2877, 1
    %v2879 = vmax.f32 %v2877, %v2878
    %v2880 = vsel %vm181, %v2804, -inf
    %v2881 = vsel %vm181, %v2805, -inf
    %v2882 = vmax.f32 %v2880, %v2881
    %v2883 = vsel %vm1054, %v2806, -inf
    %v2884 = vmax.f32 %v2882, %v2883
    %v2885 = vrot.slane %v2884, 4
    %v2886 = vmax.f32 %v2884, %v2885
    %v2887 = vrot.slane %v2886, 2
    %v2888 = vmax.f32 %v2886, %v2887
    %v2889 = vrot.slane %v2888, 1
    %v2890 = vmax.f32 %v2888, %v2889
    %v2891 = vsel %vm181, %v2807, -inf
    %v2892 = vsel %vm181, %v2808, -inf
    %v2893 = vmax.f32 %v2891, %v2892
    %v2894 = vsel %vm1054, %v2809, -inf
    %v2895 = vmax.f32 %v2893, %v2894
    %v2896 = vrot.slane %v2895, 4
    %v2897 = vmax.f32 %v2895, %v2896
    %v2898 = vrot.slane %v2897, 2
    %v2899 = vmax.f32 %v2897, %v2898
    %v2900 = vrot.slane %v2899, 1
    %v2901 = vmax.f32 %v2899, %v2900
    %v2902 = vsel %vm181, %v2810, -inf
    %v2903 = vsel %vm181, %v2811, -inf
    %v2904 = vmax.f32 %v2902, %v2903
    %v2905 = vsel %vm1054, %v2812, -inf
    %v2906 = vmax.f32 %v2904, %v2905
    %v2907 = vrot.slane %v2906, 4
    %v2908 = vmax.f32 %v2906, %v2907
    %v2909 = vrot.slane %v2908, 2
    %v2910 = vmax.f32 %v2908, %v2909
    %v2911 = vrot.slane %v2910, 1
    %v2912 = vmax.f32 %v2910, %v2911
    %v2913 = vsel %vm181, %v2813, -inf
    %v2914 = vsel %vm181, %v2814, -inf
    %v2915 = vmax.f32 %v2913, %v2914
    %v2916 = vsel %vm1054, %v2815, -inf
    %v2917 = vmax.f32 %v2915, %v2916
    %v2918 = vrot.slane %v2917, 4
    %v2919 = vmax.f32 %v2917, %v2918
    %v2920 = vrot.slane %v2919, 2
    %v2921 = vmax.f32 %v2919, %v2920
    %v2922 = vrot.slane %v2921, 1
    %v2923 = vmax.f32 %v2921, %v2922
    %v2924 = vsel %vm181, %v2816, -inf
    %v2925 = vsel %vm181, %v2817, -inf
    %v2926 = vmax.f32 %v2924, %v2925
    %v2927 = vsel %vm1054, %v2818, -inf
    %v2928 = vmax.f32 %v2926, %v2927
    %v2929 = vrot.slane %v2928, 4
    %v2930 = vmax.f32 %v2928, %v2929
    %v2931 = vrot.slane %v2930, 2
    %v2932 = vmax.f32 %v2930, %v2931
    %v2933 = vrot.slane %v2932, 1
    %v2934 = vmax.f32 %v2932, %v2933
    %v2935 = vsel %vm181, %v2819, -inf
    %v2936 = vsel %vm181, %v2820, -inf
    %v2937 = vmax.f32 %v2935, %v2936
    %v2938 = vsel %vm1054, %v2821, -inf
    %v2939 = vmax.f32 %v2937, %v2938
    %v2940 = vrot.slane %v2939, 4
    %v2941 = vmax.f32 %v2939, %v2940
    %v2942 = vrot.slane %v2941, 2
    %v2943 = vmax.f32 %v2941, %v2942
    %v2944 = vrot.slane %v2943, 1
    %v2945 = vmax.f32 %v2943, %v2944
    %v2946 = vsel %vm181, %v2822, -inf
    %v2947 = vsel %vm181, %v2823, -inf
    %v2948 = vmax.f32 %v2946, %v2947
    %v2949 = vsel %vm1054, %v2824, -inf
    %v2950 = vmax.f32 %v2948, %v2949
    %v2951 = vrot.slane %v2950, 4
    %v2952 = vmax.f32 %v2950, %v2951
    %v2953 = vrot.slane %v2952, 2
    %v2954 = vmax.f32 %v2952, %v2953
    %v2955 = vrot.slane %v2954, 1
    %v2956 = vmax.f32 %v2954, %v2955
    %v2969 = vsel %vm1196, %v2846, %v2835
    %v2970 = vsel %vm1198, %v2857, %v2969
    %v2971 = vsel %vm1200, %v2868, %v2970
    %v2972 = vsel %vm1202, %v2879, %v2971
    %v2973 = vsel %vm1204, %v2890, %v2972
    %v2974 = vsel %vm1206, %v2901, %v2973
    %v2975 = vsel %vm1208, %v2912, %v2974
    %v2976 = vsel %vm1196, %v2934, %v2923
    %v2977 = vsel %vm1198, %v2945, %v2976
    %v2978 = vsel %vm1200, %v2956, %v2977
    %v2980 = vsel %vm1224, %v2978, 0
    %2982 = vmatprep.subr.mxu0 0.0
    %2983 = vmatpush1.msra.mxu0 0.0
    %2984 = vmatprep.subr.mxu0 0.0
    %2985 = vmatpush1.msra.mxu0 0.0
    %2986 = vmatprep.subr.mxu0 0.0
    %2987 = vmatpush1.msra.mxu0 0.0
    %2988 = vmatprep.subr.mxu0 0.0
    %2989 = vmatpush1.msra.mxu0 0.0
    %2990 = vmatprep.subr.mxu0 0.0
    %2991 = vmatpush1.msra.mxu0 0.0
    %2992 = vmatprep.subr.mxu0 0.0
    %2993 = vmatpush1.msra.mxu0 0.0
    %2994 = vmatprep.subr.mxu0 0.0
    %2995 = vmatpush1.msra.mxu0 0.0
    %2996 = vmatprep.subr.mxu0 0.0
    %2997 = vmatpush1.msra.mxu0 0.0
    %2998 = vmatprep.subr.mxu0 0.0
    %2999 = vmatpush1.msra.mxu0 0.0
    %3000 = vmatprep.subr.mxu0 0.0
    %3001 = vmatpush1.msra.mxu0 0.0
    %3002 = vmatprep.subr.mxu0 0.0
    %3003 = vmatpush1.msra.mxu0 0.0
    %3004 = vmatprep.subr.mxu0 0.0
    %3005 = vmatpush1.msra.mxu0 0.0
    %3006 = vmatprep.subr.mxu0 0.0
    %3007 = vmatpush1.msra.mxu0 0.0
    %3008 = vmatprep.subr.mxu0 0.0
    %3009 = vmatpush1.msra.mxu0 0.0
    %3010 = vmatprep.subr.mxu0 0.0
    %3011 = vmatpush1.msra.mxu0 %v2980
    %3012 = vmatprep.subr.mxu0 0.0
    %3013 = vmatpush1.msra.mxu0 %v2975
    %3014 = vmatprep.subr.mxu0 0.0
    %3015 = vmatpush2.msra.mxu0 0.0
    %3016 = vmatprep.subr.mxu0 0.0
    %3017 = vmatpush2.msra.mxu0 0.0
    %3018 = vmatprep.subr.mxu0 0.0
    %3019 = vmatpush2.msra.mxu0 0.0
    %3020 = vmatprep.subr.mxu0 0.0
    %3021 = vmatpush2.msra.mxu0 0.0
    %3022 = vmatprep.subr.mxu0 0.0
    %3023 = vmatpush2.msra.mxu0 0.0
    %3024 = vmatprep.subr.mxu0 0.0
    %3025 = vmatpush2.msra.mxu0 0.0
    %3026 = vmatprep.subr.mxu0 0.0
    %3027 = vmatpush2.msra.mxu0 0.0
    %3028 = vmatprep.subr.mxu0 0.0
    %3029 = vmatpush2.msra.mxu0 0.0
    %3030 = vmatprep.subr.mxu0 0.0
    %3031 = vmatpush2.msra.mxu0 0.0
    %3032 = vmatprep.subr.mxu0 0.0
    %3033 = vmatpush2.msra.mxu0 0.0
    %3034 = vmatprep.subr.mxu0 0.0
    %3035 = vmatpush2.msra.mxu0 0.0
    %3036 = vmatprep.subr.mxu0 0.0
    %3037 = vmatpush2.msra.mxu0 0.0
    %3038 = vmatprep.subr.mxu0 0.0
    %3039 = vmatpush2.msra.mxu0 0.0
    %3040 = vmatprep.subr.mxu0 0.0
    %3041 = vmatpush2.msra.mxu0 0.0
    %3042 = vmatprep.subr.mxu0 0.0
    %3043 = vmatpush2.msra.mxu0 0.0
    %3044 = vmatprep.subr.mxu0 0.0
    %3045 = vmatpush2.msra.mxu0 0.0
    %3046 = vmatprep.mubr.f32.mxu0 0.0
    %3047 = vmatmul.mubr.f32.gmra.mxu0 %v1216
    %v3048 = vpop.f32.mrf.mxu0
    %v3049 = vadd.f32 0.0, %v3048
    %v3050 = vpop.f32.mrf.mxu0
    %3051 = vmatprep.mubr.f32.mxu0 0.0
    %3052 = vmatmul.mubr.f32.gmra.mxu0 %v1219
    %v3053 = vpop.f32.mrf.mxu0
    %v3054 = vadd.f32 0.0, %v3053
    %v3055 = vpop.f32.mrf.mxu0
    %3056 = vmatprep.mubr.f32.mxu0 0.0
    %3057 = vmatmul.mubr.f32.gmra.mxu0 %v1222
    %v3058 = vpop.f32.mrf.mxu0
    %v3059 = vadd.f32 0.0, %v3058
    %v3060 = vpop.f32.mrf.mxu0
    %3061 = vdwg.mxu0
    %v3062 = vsub.f32 %v2776, %v3049
    %v3063 = vsub.f32 %v2781, %v3054
    %v3064 = vsub.f32 %v2786, %v3059
    %v3065 = vmul.f32 %v3062, 1.442695
    %v3066 = vpow.pop %v3065
    %v3067 = vmul.f32 %v3063, 1.442695
    %v3068 = vpow.pop %v3067
    %v3069 = vmul.f32 %v3064, 1.442695
    %v3070 = vpow.pop %v3069
    %v3072 = vsel %vm1224, %v3070, 0
    %3074 = vmatprep.subr.mxu0 0.0
    %3075 = vmatpush1.msra.mxu0 0.0
    %3076 = vmatprep.subr.mxu0 0.0
    %3077 = vmatpush1.msra.mxu0 0.0
    %3078 = vmatprep.subr.mxu0 0.0
    %3079 = vmatpush1.msra.mxu0 0.0
    %3080 = vmatprep.subr.mxu0 0.0
    %3081 = vmatpush1.msra.mxu0 0.0
    %3082 = vmatprep.subr.mxu0 0.0
    %3083 = vmatpush1.msra.mxu0 0.0
    %3084 = vmatprep.subr.mxu0 0.0
    %3085 = vmatpush1.msra.mxu0 0.0
    %3086 = vmatprep.subr.mxu0 0.0
    %3087 = vmatpush1.msra.mxu0 0.0
    %3088 = vmatprep.subr.mxu0 0.0
    %3089 = vmatpush1.msra.mxu0 0.0
    %3090 = vmatprep.subr.mxu0 0.0
    %3091 = vmatpush1.msra.mxu0 0.0
    %3092 = vmatprep.subr.mxu0 0.0
    %3093 = vmatpush1.msra.mxu0 0.0
    %3094 = vmatprep.subr.mxu0 0.0
    %3095 = vmatpush1.msra.mxu0 0.0
    %3096 = vmatprep.subr.mxu0 0.0
    %3097 = vmatpush1.msra.mxu0 0.0
    %3098 = vmatprep.subr.mxu0 0.0
    %3099 = vmatpush1.msra.mxu0 0.0
    %3100 = vmatprep.subr.mxu0 0.0
    %3101 = vmatpush1.msra.mxu0 %v3072
    %3102 = vmatprep.subr.mxu0 0.0
    %3103 = vmatpush1.msra.mxu0 %v3068
    %3104 = vmatprep.subr.mxu0 0.0
    %3105 = vmatpush1.msra.mxu0 %v3066
    %3106 = vmatprep.subr.mxu0 0.0
    %3107 = vmatpush2.msra.mxu0 0.0
    %3108 = vmatprep.subr.mxu0 0.0
    %3109 = vmatpush2.msra.mxu0 0.0
    %3110 = vmatprep.subr.mxu0 0.0
    %3111 = vmatpush2.msra.mxu0 0.0
    %3112 = vmatprep.subr.mxu0 0.0
    %3113 = vmatpush2.msra.mxu0 0.0
    %3114 = vmatprep.subr.mxu0 0.0
    %3115 = vmatpush2.msra.mxu0 0.0
    %3116 = vmatprep.subr.mxu0 0.0
    %3117 = vmatpush2.msra.mxu0 0.0
    %3118 = vmatprep.subr.mxu0 0.0
    %3119 = vmatpush2.msra.mxu0 0.0
    %3120 = vmatprep.subr.mxu0 0.0
    %3121 = vmatpush2.msra.mxu0 0.0
    %3122 = vmatprep.subr.mxu0 0.0
    %3123 = vmatpush2.msra.mxu0 0.0
    %3124 = vmatprep.subr.mxu0 0.0
    %3125 = vmatpush2.msra.mxu0 0.0
    %3126 = vmatprep.subr.mxu0 0.0
    %3127 = vmatpush2.msra.mxu0 0.0
    %3128 = vmatprep.subr.mxu0 0.0
    %3129 = vmatpush2.msra.mxu0 0.0
    %3130 = vmatprep.subr.mxu0 0.0
    %3131 = vmatpush2.msra.mxu0 0.0
    %3132 = vmatprep.subr.mxu0 0.0
    %3133 = vmatpush2.msra.mxu0 0.0
    %3134 = vmatprep.subr.mxu0 0.0
    %3135 = vmatpush2.msra.mxu0 0.0
    %3136 = vmatprep.subr.mxu0 0.0
    %3137 = vmatpush2.msra.mxu0 0.0
    %3138 = vmatprep.mubr.f32.mxu0 0.0
    %3139 = vmatmul.mubr.f32.gmra.mxu0 %v1318
    %v3140 = vpop.f32.mrf.mxu0
    %v3141 = vadd.f32 0.0, %v3140
    %v3142 = vpop.f32.mrf.mxu0
    %3143 = vmatprep.mubr.f32.mxu0 0.0
    %3144 = vmatmul.mubr.f32.gmra.mxu0 %v1321
    %v3145 = vpop.f32.mrf.mxu0
    %v3146 = vadd.f32 0.0, %v3145
    %v3147 = vpop.f32.mrf.mxu0
    %3148 = vdwg.mxu0
    %v3150 = vsel %vm1224, %v3146, 0
    %3152 = vmatprep.subr.mxu0 0.0
    %3153 = vmatpush1.msra.mxu0 0.0
    %3154 = vmatprep.subr.mxu0 0.0
    %3155 = vmatpush1.msra.mxu0 0.0
    %3156 = vmatprep.subr.mxu0 0.0
    %3157 = vmatpush1.msra.mxu0 0.0
    %3158 = vmatprep.subr.mxu0 0.0
    %3159 = vmatpush1.msra.mxu0 0.0
    %3160 = vmatprep.subr.mxu0 0.0
    %3161 = vmatpush1.msra.mxu0 0.0
    %3162 = vmatprep.subr.mxu0 0.0
    %3163 = vmatpush1.msra.mxu0 0.0
    %3164 = vmatprep.subr.mxu0 0.0
    %3165 = vmatpush1.msra.mxu0 0.0
    %3166 = vmatprep.subr.mxu0 0.0
    %3167 = vmatpush1.msra.mxu0 0.0
    %3168 = vmatprep.subr.mxu0 0.0
    %3169 = vmatpush1.msra.mxu0 0.0
    %3170 = vmatprep.subr.mxu0 0.0
    %3171 = vmatpush1.msra.mxu0 0.0
    %3172 = vmatprep.subr.mxu0 0.0
    %3173 = vmatpush1.msra.mxu0 0.0
    %3174 = vmatprep.subr.mxu0 0.0
    %3175 = vmatpush1.msra.mxu0 0.0
    %3176 = vmatprep.subr.mxu0 0.0
    %3177 = vmatpush1.msra.mxu0 0.0
    %3178 = vmatprep.subr.mxu0 0.0
    %3179 = vmatpush1.msra.mxu0 0.0
    %3180 = vmatprep.subr.mxu0 0.0
    %3181 = vmatpush1.msra.mxu0 %v3150
    %3182 = vmatprep.subr.mxu0 0.0
    %3183 = vmatpush1.msra.mxu0 %v3141
    %3184 = vmatprep.subr.mxu0 0.0
    %3185 = vmatpush2.msra.mxu0 0.0
    %3186 = vmatprep.subr.mxu0 0.0
    %3187 = vmatpush2.msra.mxu0 0.0
    %3188 = vmatprep.subr.mxu0 0.0
    %3189 = vmatpush2.msra.mxu0 0.0
    %3190 = vmatprep.subr.mxu0 0.0
    %3191 = vmatpush2.msra.mxu0 0.0
    %3192 = vmatprep.subr.mxu0 0.0
    %3193 = vmatpush2.msra.mxu0 0.0
    %3194 = vmatprep.subr.mxu0 0.0
    %3195 = vmatpush2.msra.mxu0 0.0
    %3196 = vmatprep.subr.mxu0 0.0
    %3197 = vmatpush2.msra.mxu0 0.0
    %3198 = vmatprep.subr.mxu0 0.0
    %3199 = vmatpush2.msra.mxu0 0.0
    %3200 = vmatprep.subr.mxu0 0.0
    %3201 = vmatpush2.msra.mxu0 0.0
    %3202 = vmatprep.subr.mxu0 0.0
    %3203 = vmatpush2.msra.mxu0 0.0
    %3204 = vmatprep.subr.mxu0 0.0
    %3205 = vmatpush2.msra.mxu0 0.0
    %3206 = vmatprep.subr.mxu0 0.0
    %3207 = vmatpush2.msra.mxu0 0.0
    %3208 = vmatprep.subr.mxu0 0.0
    %3209 = vmatpush2.msra.mxu0 0.0
    %3210 = vmatprep.subr.mxu0 0.0
    %3211 = vmatpush2.msra.mxu0 0.0
    %3212 = vmatprep.subr.mxu0 0.0
    %3213 = vmatpush2.msra.mxu0 0.0
    %3214 = vmatprep.subr.mxu0 0.0
    %3215 = vmatpush2.msra.mxu0 0.0
    %3216 = vmatprep.mubr.f32.mxu0 0.0
    %3217 = vmatmul.mubr.f32.gmra.mxu0 %v1216
    %v3218 = vpop.f32.mrf.mxu0
    %v3219 = vadd.f32 0.0, %v3218
    %v3220 = vpop.f32.mrf.mxu0
    %3221 = vmatprep.mubr.f32.mxu0 0.0
    %3222 = vmatmul.mubr.f32.gmra.mxu0 %v1219
    %v3223 = vpop.f32.mrf.mxu0
    %v3224 = vadd.f32 0.0, %v3223
    %v3225 = vpop.f32.mrf.mxu0
    %3226 = vmatprep.mubr.f32.mxu0 0.0
    %3227 = vmatmul.mubr.f32.gmra.mxu0 %v1222
    %v3228 = vpop.f32.mrf.mxu0
    %v3229 = vadd.f32 0.0, %v3228
    %v3230 = vpop.f32.mrf.mxu0
    %3231 = vdwg.mxu0
    %v3232 = vrcp.pop %v3219
    %v3233 = vmul.f32 %v3066, %v3232
    %v3234 = vrcp.pop %v3224
    %v3235 = vmul.f32 %v3068, %v3234
    %v3236 = vrcp.pop %v3229
    %v3237 = vmul.f32 %v3070, %v3236
    %v3239 = vsel %vm1224, %v3237, 0
    %3241 = vmatprep.subr.mxu0 0.0
    %3242 = vmatpush1.msra.mxu0 0.0
    %3243 = vmatprep.subr.mxu0 0.0
    %3244 = vmatpush1.msra.mxu0 0.0
    %3245 = vmatprep.subr.mxu0 0.0
    %3246 = vmatpush1.msra.mxu0 0.0
    %3247 = vmatprep.subr.mxu0 0.0
    %3248 = vmatpush1.msra.mxu0 0.0
    %3249 = vmatprep.subr.mxu0 0.0
    %3250 = vmatpush1.msra.mxu0 0.0
    %3251 = vmatprep.subr.mxu0 0.0
    %3252 = vmatpush1.msra.mxu0 0.0
    %3253 = vmatprep.subr.mxu0 0.0
    %3254 = vmatpush1.msra.mxu0 0.0
    %3255 = vmatprep.subr.mxu0 0.0
    %3256 = vmatpush1.msra.mxu0 0.0
    %3257 = vmatprep.subr.mxu0 0.0
    %3258 = vmatpush1.msra.mxu0 0.0
    %3259 = vmatprep.subr.mxu0 0.0
    %3260 = vmatpush1.msra.mxu0 0.0
    %3261 = vmatprep.subr.mxu0 0.0
    %3262 = vmatpush1.msra.mxu0 0.0
    %3263 = vmatprep.subr.mxu0 0.0
    %3264 = vmatpush1.msra.mxu0 0.0
    %3265 = vmatprep.subr.mxu0 0.0
    %3266 = vmatpush1.msra.mxu0 0.0
    %3267 = vmatprep.subr.mxu0 0.0
    %3268 = vmatpush1.msra.mxu0 %v3239
    %3269 = vmatprep.subr.mxu0 0.0
    %3270 = vmatpush1.msra.mxu0 %v3235
    %3271 = vmatprep.subr.mxu0 0.0
    %3272 = vmatpush1.msra.mxu0 %v3233
    %3273 = vmatprep.subr.mxu0 0.0
    %3274 = vmatpush2.msra.mxu0 0.0
    %3275 = vmatprep.subr.mxu0 0.0
    %3276 = vmatpush2.msra.mxu0 0.0
    %3277 = vmatprep.subr.mxu0 0.0
    %3278 = vmatpush2.msra.mxu0 0.0
    %3279 = vmatprep.subr.mxu0 0.0
    %3280 = vmatpush2.msra.mxu0 0.0
    %3281 = vmatprep.subr.mxu0 0.0
    %3282 = vmatpush2.msra.mxu0 0.0
    %3283 = vmatprep.subr.mxu0 0.0
    %3284 = vmatpush2.msra.mxu0 0.0
    %3285 = vmatprep.subr.mxu0 0.0
    %3286 = vmatpush2.msra.mxu0 0.0
    %3287 = vmatprep.subr.mxu0 0.0
    %3288 = vmatpush2.msra.mxu0 0.0
    %3289 = vmatprep.subr.mxu0 0.0
    %3290 = vmatpush2.msra.mxu0 0.0
    %3291 = vmatprep.subr.mxu0 0.0
    %3292 = vmatpush2.msra.mxu0 0.0
    %3293 = vmatprep.subr.mxu0 0.0
    %3294 = vmatpush2.msra.mxu0 0.0
    %3295 = vmatprep.subr.mxu0 0.0
    %3296 = vmatpush2.msra.mxu0 0.0
    %3297 = vmatprep.subr.mxu0 0.0
    %3298 = vmatpush2.msra.mxu0 0.0
    %3299 = vmatprep.subr.mxu0 0.0
    %3300 = vmatpush2.msra.mxu0 0.0
    %3301 = vmatprep.subr.mxu0 0.0
    %3302 = vmatpush2.msra.mxu0 0.0
    %3303 = vmatprep.subr.mxu0 0.0
    %3304 = vmatpush2.msra.mxu0 0.0
    %3305 = vmatprep.mubr.f32.mxu0 0.0
    %3306 = vmatmul.mubr.f32.gmra.mxu0 %v1491
    %v3307 = vpop.f32.mrf.mxu0
    %v3308 = vadd.f32 0.0, %v3307
    %v3309 = vpop.f32.mrf.mxu0
    %3310 = vmatprep.mubr.f32.mxu0 0.0
    %3311 = vmatmul.mubr.f32.gmra.mxu0 %v1494
    %v3312 = vpop.f32.mrf.mxu0
    %v3313 = vadd.f32 0.0, %v3312
    %v3314 = vpop.f32.mrf.mxu0
    %3315 = vmatprep.mubr.f32.mxu0 0.0
    %3316 = vmatmul.mubr.f32.gmra.mxu0 %v1497
    %v3317 = vpop.f32.mrf.mxu0
    %v3318 = vadd.f32 0.0, %v3317
    %v3319 = vpop.f32.mrf.mxu0
    %3320 = vmatprep.mubr.f32.mxu0 0.0
    %3321 = vmatmul.mubr.f32.gmra.mxu0 %v1500
    %v3322 = vpop.f32.mrf.mxu0
    %v3323 = vadd.f32 0.0, %v3322
    %v3324 = vpop.f32.mrf.mxu0
    %3325 = vmatprep.mubr.f32.mxu0 0.0
    %3326 = vmatmul.mubr.f32.gmra.mxu0 %v1503
    %v3327 = vpop.f32.mrf.mxu0
    %v3328 = vadd.f32 0.0, %v3327
    %v3329 = vpop.f32.mrf.mxu0
    %3330 = vdwg.mxu0
    %v3332 = vsel %vm169, %v2680, 0
    %v3335 = vsel %vm169, %v2681, 0
    %v3338 = vsel %vm169, %v2682, 0
    %3340 = vmatprep.subr.mxu0 0.0
    %3341 = vmatpush1.msra.mxu0 0.0
    %3342 = vmatprep.subr.mxu0 0.0
    %3343 = vmatpush1.msra.mxu0 0.0
    %3344 = vmatprep.subr.mxu0 0.0
    %3345 = vmatpush1.msra.mxu0 0.0
    %3346 = vmatprep.subr.mxu0 0.0
    %3347 = vmatpush1.msra.mxu0 0.0
    %3348 = vmatprep.subr.mxu0 0.0
    %3349 = vmatpush1.msra.mxu0 0.0
    %3350 = vmatprep.subr.mxu0 0.0
    %3351 = vmatpush1.msra.mxu0 0.0
    %3352 = vmatprep.subr.mxu0 0.0
    %3353 = vmatpush1.msra.mxu0 0.0
    %3354 = vmatprep.subr.mxu0 0.0
    %3355 = vmatpush1.msra.mxu0 0.0
    %3356 = vmatprep.subr.mxu0 0.0
    %3357 = vmatpush1.msra.mxu0 0.0
    %3358 = vmatprep.subr.mxu0 0.0
    %3359 = vmatpush1.msra.mxu0 0.0
    %3360 = vmatprep.subr.mxu0 0.0
    %3361 = vmatpush1.msra.mxu0 0.0
    %3362 = vmatprep.subr.mxu0 0.0
    %3363 = vmatpush1.msra.mxu0 0.0
    %3364 = vmatprep.subr.mxu0 0.0
    %3365 = vmatpush1.msra.mxu0 %v2687
    %3366 = vmatprep.subr.mxu0 0.0
    %3367 = vmatpush1.msra.mxu0 %v2686
    %3368 = vmatprep.subr.mxu0 0.0
    %3369 = vmatpush1.msra.mxu0 %v2685
    %3370 = vmatprep.subr.mxu0 0.0
    %3371 = vmatpush1.msra.mxu0 %v2684
    %3372 = vmatprep.subr.mxu0 0.0
    %3373 = vmatpush2.msra.mxu0 0.0
    %3374 = vmatprep.subr.mxu0 0.0
    %3375 = vmatpush2.msra.mxu0 0.0
    %3376 = vmatprep.subr.mxu0 0.0
    %3377 = vmatpush2.msra.mxu0 0.0
    %3378 = vmatprep.subr.mxu0 0.0
    %3379 = vmatpush2.msra.mxu0 0.0
    %3380 = vmatprep.subr.mxu0 0.0
    %3381 = vmatpush2.msra.mxu0 0.0
    %3382 = vmatprep.subr.mxu0 0.0
    %3383 = vmatpush2.msra.mxu0 0.0
    %3384 = vmatprep.subr.mxu0 0.0
    %3385 = vmatpush2.msra.mxu0 0.0
    %3386 = vmatprep.subr.mxu0 0.0
    %3387 = vmatpush2.msra.mxu0 0.0
    %3388 = vmatprep.subr.mxu0 0.0
    %3389 = vmatpush2.msra.mxu0 0.0
    %3390 = vmatprep.subr.mxu0 0.0
    %3391 = vmatpush2.msra.mxu0 0.0
    %3392 = vmatprep.subr.mxu0 0.0
    %3393 = vmatpush2.msra.mxu0 0.0
    %3394 = vmatprep.subr.mxu0 0.0
    %3395 = vmatpush2.msra.mxu0 0.0
    %3396 = vmatprep.subr.mxu0 0.0
    %3397 = vmatpush2.msra.mxu0 0.0
    %3398 = vmatprep.subr.mxu0 0.0
    %3399 = vmatpush2.msra.mxu0 0.0
    %3400 = vmatprep.subr.mxu0 0.0
    %3401 = vmatpush2.msra.mxu0 0.0
    %3402 = vmatprep.subr.mxu0 0.0
    %3403 = vmatpush2.msra.mxu0 0.0
    %3404 = vmatprep.mubr.f32.mxu0 0.0
    %3405 = vmatmul.mubr.f32.gmra.mxu0 %v3332
    %v3406 = vpop.f32.mrf.mxu0
    %v3407 = vadd.f32 0.0, %v3406
    %v3408 = vpop.f32.mrf.mxu0
    %3409 = vmatprep.mubr.f32.mxu0 0.0
    %3410 = vmatmul.mubr.f32.gmra.mxu0 %v3335
    %v3411 = vpop.f32.mrf.mxu0
    %v3412 = vadd.f32 0.0, %v3411
    %v3413 = vpop.f32.mrf.mxu0
    %3414 = vmatprep.mubr.f32.mxu0 0.0
    %3415 = vmatmul.mubr.f32.gmra.mxu0 %v3338
    %v3416 = vpop.f32.mrf.mxu0
    %v3417 = vadd.f32 0.0, %v3416
    %v3418 = vpop.f32.mrf.mxu0
    %3419 = vdwg.mxu0
    %3420 = vmatprep.subr.mxu0 0.0
    %3421 = vmatpush1.msra.mxu0 0.0
    %3422 = vmatprep.subr.mxu0 0.0
    %3423 = vmatpush1.msra.mxu0 0.0
    %3424 = vmatprep.subr.mxu0 0.0
    %3425 = vmatpush1.msra.mxu0 0.0
    %3426 = vmatprep.subr.mxu0 0.0
    %3427 = vmatpush1.msra.mxu0 0.0
    %3428 = vmatprep.subr.mxu0 0.0
    %3429 = vmatpush1.msra.mxu0 0.0
    %3430 = vmatprep.subr.mxu0 0.0
    %3431 = vmatpush1.msra.mxu0 0.0
    %3432 = vmatprep.subr.mxu0 0.0
    %3433 = vmatpush1.msra.mxu0 0.0
    %3434 = vmatprep.subr.mxu0 0.0
    %3435 = vmatpush1.msra.mxu0 0.0
    %3436 = vmatprep.subr.mxu0 0.0
    %3437 = vmatpush1.msra.mxu0 0.0
    %3438 = vmatprep.subr.mxu0 0.0
    %3439 = vmatpush1.msra.mxu0 0.0
    %3440 = vmatprep.subr.mxu0 0.0
    %3441 = vmatpush1.msra.mxu0 0.0
    %3442 = vmatprep.subr.mxu0 0.0
    %3443 = vmatpush1.msra.mxu0 0.0
    %3444 = vmatprep.subr.mxu0 0.0
    %3445 = vmatpush1.msra.mxu0 0.0
    %3446 = vmatprep.subr.mxu0 0.0
    %3447 = vmatpush1.msra.mxu0 %v3417
    %3448 = vmatprep.subr.mxu0 0.0
    %3449 = vmatpush1.msra.mxu0 %v3412
    %3450 = vmatprep.subr.mxu0 0.0
    %3451 = vmatpush1.msra.mxu0 %v3407
    %3452 = vmatprep.subr.mxu0 0.0
    %3453 = vmatpush2.msra.mxu0 0.0
    %3454 = vmatprep.subr.mxu0 0.0
    %3455 = vmatpush2.msra.mxu0 0.0
    %3456 = vmatprep.subr.mxu0 0.0
    %3457 = vmatpush2.msra.mxu0 0.0
    %3458 = vmatprep.subr.mxu0 0.0
    %3459 = vmatpush2.msra.mxu0 0.0
    %3460 = vmatprep.subr.mxu0 0.0
    %3461 = vmatpush2.msra.mxu0 0.0
    %3462 = vmatprep.subr.mxu0 0.0
    %3463 = vmatpush2.msra.mxu0 0.0
    %3464 = vmatprep.subr.mxu0 0.0
    %3465 = vmatpush2.msra.mxu0 0.0
    %3466 = vmatprep.subr.mxu0 0.0
    %3467 = vmatpush2.msra.mxu0 0.0
    %3468 = vmatprep.subr.mxu0 0.0
    %3469 = vmatpush2.msra.mxu0 0.0
    %3470 = vmatprep.subr.mxu0 0.0
    %3471 = vmatpush2.msra.mxu0 0.0
    %3472 = vmatprep.subr.mxu0 0.0
    %3473 = vmatpush2.msra.mxu0 0.0
    %3474 = vmatprep.subr.mxu0 0.0
    %3475 = vmatpush2.msra.mxu0 0.0
    %3476 = vmatprep.subr.mxu0 0.0
    %3477 = vmatpush2.msra.mxu0 0.0
    %3478 = vmatprep.subr.mxu0 0.0
    %3479 = vmatpush2.msra.mxu0 0.0
    %3480 = vmatprep.subr.mxu0 0.0
    %3481 = vmatpush2.msra.mxu0 0.0
    %3482 = vmatprep.subr.mxu0 0.0
    %3483 = vmatpush2.msra.mxu0 0.0
    %3484 = vmatprep.mubr.f32.mxu0 0.0
    %3485 = vmatmul.mubr.f32.gmra.mxu0 %v1688
    %v3486 = vpop.f32.mrf.mxu0
    %v3487 = vadd.f32 0.0, %v3486
    %v3488 = vpop.f32.mrf.mxu0
    %3489 = vmatprep.mubr.f32.mxu0 0.0
    %3490 = vmatmul.mubr.f32.gmra.mxu0 %v1691
    %v3491 = vpop.f32.mrf.mxu0
    %v3492 = vadd.f32 0.0, %v3491
    %v3493 = vpop.f32.mrf.mxu0
    %3494 = vmatprep.mubr.f32.mxu0 0.0
    %3495 = vmatmul.mubr.f32.gmra.mxu0 %v1694
    %v3496 = vpop.f32.mrf.mxu0
    %v3497 = vadd.f32 0.0, %v3496
    %v3498 = vpop.f32.mrf.mxu0
    %3499 = vmatprep.mubr.f32.mxu0 0.0
    %3500 = vmatmul.mubr.f32.gmra.mxu0 %v1697
    %v3501 = vpop.f32.mrf.mxu0
    %v3502 = vadd.f32 0.0, %v3501
    %v3503 = vpop.f32.mrf.mxu0
    %3504 = vmatprep.mubr.f32.mxu0 0.0
    %3505 = vmatmul.mubr.f32.gmra.mxu0 %v1700
    %v3506 = vpop.f32.mrf.mxu0
    %v3507 = vadd.f32 0.0, %v3506
    %v3508 = vpop.f32.mrf.mxu0
    %3509 = vdwg.mxu0
    %v3510 = vmul.f32 %v3308, %v3487
    %v3511 = vmul.f32 %v3313, %v3492
    %v3512 = vmul.f32 %v3318, %v3497
    %v3513 = vmul.f32 %v3323, %v3502
    %v3514 = vmul.f32 %v3328, %v3507
    %3515 = vmatprep.subr.mxu0 0.0
    %3516 = vmatpush1.msra.mxu0 0.0
    %3517 = vmatprep.subr.mxu0 0.0
    %3518 = vmatpush1.msra.mxu0 0.0
    %3519 = vmatprep.subr.mxu0 0.0
    %3520 = vmatpush1.msra.mxu0 0.0
    %3521 = vmatprep.subr.mxu0 0.0
    %3522 = vmatpush1.msra.mxu0 0.0
    %3523 = vmatprep.subr.mxu0 0.0
    %3524 = vmatpush1.msra.mxu0 0.0
    %3525 = vmatprep.subr.mxu0 0.0
    %3526 = vmatpush1.msra.mxu0 0.0
    %3527 = vmatprep.subr.mxu0 0.0
    %3528 = vmatpush1.msra.mxu0 0.0
    %3529 = vmatprep.subr.mxu0 0.0
    %3530 = vmatpush1.msra.mxu0 0.0
    %3531 = vmatprep.subr.mxu0 0.0
    %3532 = vmatpush1.msra.mxu0 0.0
    %3533 = vmatprep.subr.mxu0 0.0
    %3534 = vmatpush1.msra.mxu0 0.0
    %3535 = vmatprep.subr.mxu0 0.0
    %3536 = vmatpush1.msra.mxu0 0.0
    %3537 = vmatprep.subr.mxu0 0.0
    %3538 = vmatpush1.msra.mxu0 %v3514
    %3539 = vmatprep.subr.mxu0 0.0
    %3540 = vmatpush1.msra.mxu0 %v3513
    %3541 = vmatprep.subr.mxu0 0.0
    %3542 = vmatpush1.msra.mxu0 %v3512
    %3543 = vmatprep.subr.mxu0 0.0
    %3544 = vmatpush1.msra.mxu0 %v3511
    %3545 = vmatprep.subr.mxu0 0.0
    %3546 = vmatpush1.msra.mxu0 %v3510
    %3547 = vmatprep.subr.mxu0 0.0
    %3548 = vmatpush2.msra.mxu0 0.0
    %3549 = vmatprep.subr.mxu0 0.0
    %3550 = vmatpush2.msra.mxu0 0.0
    %3551 = vmatprep.subr.mxu0 0.0
    %3552 = vmatpush2.msra.mxu0 0.0
    %3553 = vmatprep.subr.mxu0 0.0
    %3554 = vmatpush2.msra.mxu0 0.0
    %3555 = vmatprep.subr.mxu0 0.0
    %3556 = vmatpush2.msra.mxu0 0.0
    %3557 = vmatprep.subr.mxu0 0.0
    %3558 = vmatpush2.msra.mxu0 0.0
    %3559 = vmatprep.subr.mxu0 0.0
    %3560 = vmatpush2.msra.mxu0 0.0
    %3561 = vmatprep.subr.mxu0 0.0
    %3562 = vmatpush2.msra.mxu0 0.0
    %3563 = vmatprep.subr.mxu0 0.0
    %3564 = vmatpush2.msra.mxu0 0.0
    %3565 = vmatprep.subr.mxu0 0.0
    %3566 = vmatpush2.msra.mxu0 0.0
    %3567 = vmatprep.subr.mxu0 0.0
    %3568 = vmatpush2.msra.mxu0 0.0
    %3569 = vmatprep.subr.mxu0 0.0
    %3570 = vmatpush2.msra.mxu0 0.0
    %3571 = vmatprep.subr.mxu0 0.0
    %3572 = vmatpush2.msra.mxu0 0.0
    %3573 = vmatprep.subr.mxu0 0.0
    %3574 = vmatpush2.msra.mxu0 0.0
    %3575 = vmatprep.subr.mxu0 0.0
    %3576 = vmatpush2.msra.mxu0 0.0
    %3577 = vmatprep.subr.mxu0 0.0
    %3578 = vmatpush2.msra.mxu0 0.0
    %3579 = vmatprep.mubr.f32.mxu0 0.0
    %3580 = vmatmul.mubr.f32.gmra.mxu0 %v1799
    %v3581 = vpop.f32.mrf.mxu0
    %v3582 = vadd.f32 0.0, %v3581
    %v3583 = vpop.f32.mrf.mxu0
    %3584 = vmatprep.mubr.f32.mxu0 0.0
    %3585 = vmatmul.mubr.f32.gmra.mxu0 %v1802
    %v3586 = vpop.f32.mrf.mxu0
    %v3587 = vadd.f32 0.0, %v3586
    %v3588 = vpop.f32.mrf.mxu0
    %3589 = vmatprep.mubr.f32.mxu0 0.0
    %3590 = vmatmul.mubr.f32.gmra.mxu0 %v1805
    %v3591 = vpop.f32.mrf.mxu0
    %v3592 = vadd.f32 0.0, %v3591
    %v3593 = vpop.f32.mrf.mxu0
    %3594 = vdwg.mxu0
    %3595 = vmatprep.subr.mxu0 0.0
    %3596 = vmatpush1.msra.mxu0 0.0
    %3597 = vmatprep.subr.mxu0 0.0
    %3598 = vmatpush1.msra.mxu0 0.0
    %3599 = vmatprep.subr.mxu0 0.0
    %3600 = vmatpush1.msra.mxu0 0.0
    %3601 = vmatprep.subr.mxu0 0.0
    %3602 = vmatpush1.msra.mxu0 0.0
    %3603 = vmatprep.subr.mxu0 0.0
    %3604 = vmatpush1.msra.mxu0 0.0
    %3605 = vmatprep.subr.mxu0 0.0
    %3606 = vmatpush1.msra.mxu0 0.0
    %3607 = vmatprep.subr.mxu0 0.0
    %3608 = vmatpush1.msra.mxu0 0.0
    %3609 = vmatprep.subr.mxu0 0.0
    %3610 = vmatpush1.msra.mxu0 0.0
    %3611 = vmatprep.subr.mxu0 0.0
    %3612 = vmatpush1.msra.mxu0 0.0
    %3613 = vmatprep.subr.mxu0 0.0
    %3614 = vmatpush1.msra.mxu0 0.0
    %3615 = vmatprep.subr.mxu0 0.0
    %3616 = vmatpush1.msra.mxu0 0.0
    %3617 = vmatprep.subr.mxu0 0.0
    %3618 = vmatpush1.msra.mxu0 0.0
    %3619 = vmatprep.subr.mxu0 0.0
    %3620 = vmatpush1.msra.mxu0 0.0
    %3621 = vmatprep.subr.mxu0 0.0
    %3622 = vmatpush1.msra.mxu0 %v3592
    %3623 = vmatprep.subr.mxu0 0.0
    %3624 = vmatpush1.msra.mxu0 %v3587
    %3625 = vmatprep.subr.mxu0 0.0
    %3626 = vmatpush1.msra.mxu0 %v3582
    %3627 = vmatprep.subr.mxu0 0.0
    %3628 = vmatpush2.msra.mxu0 0.0
    %3629 = vmatprep.subr.mxu0 0.0
    %3630 = vmatpush2.msra.mxu0 0.0
    %3631 = vmatprep.subr.mxu0 0.0
    %3632 = vmatpush2.msra.mxu0 0.0
    %3633 = vmatprep.subr.mxu0 0.0
    %3634 = vmatpush2.msra.mxu0 0.0
    %3635 = vmatprep.subr.mxu0 0.0
    %3636 = vmatpush2.msra.mxu0 0.0
    %3637 = vmatprep.subr.mxu0 0.0
    %3638 = vmatpush2.msra.mxu0 0.0
    %3639 = vmatprep.subr.mxu0 0.0
    %3640 = vmatpush2.msra.mxu0 0.0
    %3641 = vmatprep.subr.mxu0 0.0
    %3642 = vmatpush2.msra.mxu0 0.0
    %3643 = vmatprep.subr.mxu0 0.0
    %3644 = vmatpush2.msra.mxu0 0.0
    %3645 = vmatprep.subr.mxu0 0.0
    %3646 = vmatpush2.msra.mxu0 0.0
    %3647 = vmatprep.subr.mxu0 0.0
    %3648 = vmatpush2.msra.mxu0 0.0
    %3649 = vmatprep.subr.mxu0 0.0
    %3650 = vmatpush2.msra.mxu0 0.0
    %3651 = vmatprep.subr.mxu0 0.0
    %3652 = vmatpush2.msra.mxu0 0.0
    %3653 = vmatprep.subr.mxu0 0.0
    %3654 = vmatpush2.msra.mxu0 0.0
    %3655 = vmatprep.subr.mxu0 0.0
    %3656 = vmatpush2.msra.mxu0 0.0
    %3657 = vmatprep.subr.mxu0 0.0
    %3658 = vmatpush2.msra.mxu0 0.0
    %3659 = vmatprep.mubr.f32.mxu0 0.0
    %3660 = vmatmul.mubr.f32.gmra.mxu0 %v1688
    %v3661 = vpop.f32.mrf.mxu0
    %v3662 = vadd.f32 0.0, %v3661
    %v3663 = vpop.f32.mrf.mxu0
    %3664 = vmatprep.mubr.f32.mxu0 0.0
    %3665 = vmatmul.mubr.f32.gmra.mxu0 %v1691
    %v3666 = vpop.f32.mrf.mxu0
    %v3667 = vadd.f32 0.0, %v3666
    %v3668 = vpop.f32.mrf.mxu0
    %3669 = vmatprep.mubr.f32.mxu0 0.0
    %3670 = vmatmul.mubr.f32.gmra.mxu0 %v1694
    %v3671 = vpop.f32.mrf.mxu0
    %v3672 = vadd.f32 0.0, %v3671
    %v3673 = vpop.f32.mrf.mxu0
    %3674 = vmatprep.mubr.f32.mxu0 0.0
    %3675 = vmatmul.mubr.f32.gmra.mxu0 %v1697
    %v3676 = vpop.f32.mrf.mxu0
    %v3677 = vadd.f32 0.0, %v3676
    %v3678 = vpop.f32.mrf.mxu0
    %3679 = vmatprep.mubr.f32.mxu0 0.0
    %3680 = vmatmul.mubr.f32.gmra.mxu0 %v1700
    %v3681 = vpop.f32.mrf.mxu0
    %v3682 = vadd.f32 0.0, %v3681
    %v3683 = vpop.f32.mrf.mxu0
    %3684 = vdwg.mxu0
    %v3685 = vmul.f32 %v3308, %v3662
    %v3686 = vmul.f32 %v3313, %v3667
    %v3687 = vmul.f32 %v3318, %v3672
    %v3688 = vmul.f32 %v3323, %v3677
    %v3689 = vmul.f32 %v3328, %v3682
    %3690 = vmatprep.subr.mxu0 0.0
    %3691 = vmatpush1.msra.mxu0 0.0
    %3692 = vmatprep.subr.mxu0 0.0
    %3693 = vmatpush1.msra.mxu0 0.0
    %3694 = vmatprep.subr.mxu0 0.0
    %3695 = vmatpush1.msra.mxu0 0.0
    %3696 = vmatprep.subr.mxu0 0.0
    %3697 = vmatpush1.msra.mxu0 0.0
    %3698 = vmatprep.subr.mxu0 0.0
    %3699 = vmatpush1.msra.mxu0 0.0
    %3700 = vmatprep.subr.mxu0 0.0
    %3701 = vmatpush1.msra.mxu0 0.0
    %3702 = vmatprep.subr.mxu0 0.0
    %3703 = vmatpush1.msra.mxu0 0.0
    %3704 = vmatprep.subr.mxu0 0.0
    %3705 = vmatpush1.msra.mxu0 0.0
    %3706 = vmatprep.subr.mxu0 0.0
    %3707 = vmatpush1.msra.mxu0 0.0
    %3708 = vmatprep.subr.mxu0 0.0
    %3709 = vmatpush1.msra.mxu0 0.0
    %3710 = vmatprep.subr.mxu0 0.0
    %3711 = vmatpush1.msra.mxu0 0.0
    %3712 = vmatprep.subr.mxu0 0.0
    %3713 = vmatpush1.msra.mxu0 %v3689
    %3714 = vmatprep.subr.mxu0 0.0
    %3715 = vmatpush1.msra.mxu0 %v3688
    %3716 = vmatprep.subr.mxu0 0.0
    %3717 = vmatpush1.msra.mxu0 %v3687
    %3718 = vmatprep.subr.mxu0 0.0
    %3719 = vmatpush1.msra.mxu0 %v3686
    %3720 = vmatprep.subr.mxu0 0.0
    %3721 = vmatpush1.msra.mxu0 %v3685
    %3722 = vmatprep.subr.mxu0 0.0
    %3723 = vmatpush2.msra.mxu0 0.0
    %3724 = vmatprep.subr.mxu0 0.0
    %3725 = vmatpush2.msra.mxu0 0.0
    %3726 = vmatprep.subr.mxu0 0.0
    %3727 = vmatpush2.msra.mxu0 0.0
    %3728 = vmatprep.subr.mxu0 0.0
    %3729 = vmatpush2.msra.mxu0 0.0
    %3730 = vmatprep.subr.mxu0 0.0
    %3731 = vmatpush2.msra.mxu0 0.0
    %3732 = vmatprep.subr.mxu0 0.0
    %3733 = vmatpush2.msra.mxu0 0.0
    %3734 = vmatprep.subr.mxu0 0.0
    %3735 = vmatpush2.msra.mxu0 0.0
    %3736 = vmatprep.subr.mxu0 0.0
    %3737 = vmatpush2.msra.mxu0 0.0
    %3738 = vmatprep.subr.mxu0 0.0
    %3739 = vmatpush2.msra.mxu0 0.0
    %3740 = vmatprep.subr.mxu0 0.0
    %3741 = vmatpush2.msra.mxu0 0.0
    %3742 = vmatprep.subr.mxu0 0.0
    %3743 = vmatpush2.msra.mxu0 0.0
    %3744 = vmatprep.subr.mxu0 0.0
    %3745 = vmatpush2.msra.mxu0 0.0
    %3746 = vmatprep.subr.mxu0 0.0
    %3747 = vmatpush2.msra.mxu0 0.0
    %3748 = vmatprep.subr.mxu0 0.0
    %3749 = vmatpush2.msra.mxu0 0.0
    %3750 = vmatprep.subr.mxu0 0.0
    %3751 = vmatpush2.msra.mxu0 0.0
    %3752 = vmatprep.subr.mxu0 0.0
    %3753 = vmatpush2.msra.mxu0 0.0
    %3754 = vmatprep.mubr.f32.mxu0 0.0
    %3755 = vmatmul.mubr.f32.gmra.mxu0 %v1799
    %v3756 = vpop.f32.mrf.mxu0
    %v3757 = vadd.f32 0.0, %v3756
    %v3758 = vpop.f32.mrf.mxu0
    %3759 = vmatprep.mubr.f32.mxu0 0.0
    %3760 = vmatmul.mubr.f32.gmra.mxu0 %v1802
    %v3761 = vpop.f32.mrf.mxu0
    %v3762 = vadd.f32 0.0, %v3761
    %v3763 = vpop.f32.mrf.mxu0
    %3764 = vmatprep.mubr.f32.mxu0 0.0
    %3765 = vmatmul.mubr.f32.gmra.mxu0 %v1805
    %v3766 = vpop.f32.mrf.mxu0
    %v3767 = vadd.f32 0.0, %v3766
    %v3768 = vpop.f32.mrf.mxu0
    %3769 = vdwg.mxu0
    %3770 = vmatprep.subr.mxu0 0.0
    %3771 = vmatpush1.msra.mxu0 0.0
    %3772 = vmatprep.subr.mxu0 0.0
    %3773 = vmatpush1.msra.mxu0 0.0
    %3774 = vmatprep.subr.mxu0 0.0
    %3775 = vmatpush1.msra.mxu0 0.0
    %3776 = vmatprep.subr.mxu0 0.0
    %3777 = vmatpush1.msra.mxu0 0.0
    %3778 = vmatprep.subr.mxu0 0.0
    %3779 = vmatpush1.msra.mxu0 0.0
    %3780 = vmatprep.subr.mxu0 0.0
    %3781 = vmatpush1.msra.mxu0 0.0
    %3782 = vmatprep.subr.mxu0 0.0
    %3783 = vmatpush1.msra.mxu0 0.0
    %3784 = vmatprep.subr.mxu0 0.0
    %3785 = vmatpush1.msra.mxu0 0.0
    %3786 = vmatprep.subr.mxu0 0.0
    %3787 = vmatpush1.msra.mxu0 0.0
    %3788 = vmatprep.subr.mxu0 0.0
    %3789 = vmatpush1.msra.mxu0 0.0
    %3790 = vmatprep.subr.mxu0 0.0
    %3791 = vmatpush1.msra.mxu0 0.0
    %3792 = vmatprep.subr.mxu0 0.0
    %3793 = vmatpush1.msra.mxu0 0.0
    %3794 = vmatprep.subr.mxu0 0.0
    %3795 = vmatpush1.msra.mxu0 0.0
    %3796 = vmatprep.subr.mxu0 0.0
    %3797 = vmatpush1.msra.mxu0 %v3767
    %3798 = vmatprep.subr.mxu0 0.0
    %3799 = vmatpush1.msra.mxu0 %v3762
    %3800 = vmatprep.subr.mxu0 0.0
    %3801 = vmatpush1.msra.mxu0 %v3757
    %3802 = vmatprep.subr.mxu0 0.0
    %3803 = vmatpush2.msra.mxu0 0.0
    %3804 = vmatprep.subr.mxu0 0.0
    %3805 = vmatpush2.msra.mxu0 0.0
    %3806 = vmatprep.subr.mxu0 0.0
    %3807 = vmatpush2.msra.mxu0 0.0
    %3808 = vmatprep.subr.mxu0 0.0
    %3809 = vmatpush2.msra.mxu0 0.0
    %3810 = vmatprep.subr.mxu0 0.0
    %3811 = vmatpush2.msra.mxu0 0.0
    %3812 = vmatprep.subr.mxu0 0.0
    %3813 = vmatpush2.msra.mxu0 0.0
    %3814 = vmatprep.subr.mxu0 0.0
    %3815 = vmatpush2.msra.mxu0 0.0
    %3816 = vmatprep.subr.mxu0 0.0
    %3817 = vmatpush2.msra.mxu0 0.0
    %3818 = vmatprep.subr.mxu0 0.0
    %3819 = vmatpush2.msra.mxu0 0.0
    %3820 = vmatprep.subr.mxu0 0.0
    %3821 = vmatpush2.msra.mxu0 0.0
    %3822 = vmatprep.subr.mxu0 0.0
    %3823 = vmatpush2.msra.mxu0 0.0
    %3824 = vmatprep.subr.mxu0 0.0
    %3825 = vmatpush2.msra.mxu0 0.0
    %3826 = vmatprep.subr.mxu0 0.0
    %3827 = vmatpush2.msra.mxu0 0.0
    %3828 = vmatprep.subr.mxu0 0.0
    %3829 = vmatpush2.msra.mxu0 0.0
    %3830 = vmatprep.subr.mxu0 0.0
    %3831 = vmatpush2.msra.mxu0 0.0
    %3832 = vmatprep.subr.mxu0 0.0
    %3833 = vmatpush2.msra.mxu0 0.0
    %3834 = vmatprep.mubr.f32.mxu0 0.0
    %3835 = vmatmul.mubr.f32.gmra.mxu0 %v1688
    %v3836 = vpop.f32.mrf.mxu0
    %v3837 = vadd.f32 0.0, %v3836
    %v3838 = vpop.f32.mrf.mxu0
    %3839 = vmatprep.mubr.f32.mxu0 0.0
    %3840 = vmatmul.mubr.f32.gmra.mxu0 %v1691
    %v3841 = vpop.f32.mrf.mxu0
    %v3842 = vadd.f32 0.0, %v3841
    %v3843 = vpop.f32.mrf.mxu0
    %3844 = vmatprep.mubr.f32.mxu0 0.0
    %3845 = vmatmul.mubr.f32.gmra.mxu0 %v1694
    %v3846 = vpop.f32.mrf.mxu0
    %v3847 = vadd.f32 0.0, %v3846
    %v3848 = vpop.f32.mrf.mxu0
    %3849 = vmatprep.mubr.f32.mxu0 0.0
    %3850 = vmatmul.mubr.f32.gmra.mxu0 %v1697
    %v3851 = vpop.f32.mrf.mxu0
    %v3852 = vadd.f32 0.0, %v3851
    %v3853 = vpop.f32.mrf.mxu0
    %3854 = vmatprep.mubr.f32.mxu0 0.0
    %3855 = vmatmul.mubr.f32.gmra.mxu0 %v1700
    %v3856 = vpop.f32.mrf.mxu0
    %v3857 = vadd.f32 0.0, %v3856
    %v3858 = vpop.f32.mrf.mxu0
    %3859 = vdwg.mxu0
    %v3860 = vmul.f32 %v3308, %v3837
    %v3861 = vmul.f32 %v3313, %v3842
    %v3862 = vmul.f32 %v3318, %v3847
    %v3863 = vmul.f32 %v3323, %v3852
    %v3864 = vmul.f32 %v3328, %v3857
    %3865 = vmatprep.subr.mxu0 0.0
    %3866 = vmatpush1.msra.mxu0 0.0
    %3867 = vmatprep.subr.mxu0 0.0
    %3868 = vmatpush1.msra.mxu0 0.0
    %3869 = vmatprep.subr.mxu0 0.0
    %3870 = vmatpush1.msra.mxu0 0.0
    %3871 = vmatprep.subr.mxu0 0.0
    %3872 = vmatpush1.msra.mxu0 0.0
    %3873 = vmatprep.subr.mxu0 0.0
    %3874 = vmatpush1.msra.mxu0 0.0
    %3875 = vmatprep.subr.mxu0 0.0
    %3876 = vmatpush1.msra.mxu0 0.0
    %3877 = vmatprep.subr.mxu0 0.0
    %3878 = vmatpush1.msra.mxu0 0.0
    %3879 = vmatprep.subr.mxu0 0.0
    %3880 = vmatpush1.msra.mxu0 0.0
    %3881 = vmatprep.subr.mxu0 0.0
    %3882 = vmatpush1.msra.mxu0 0.0
    %3883 = vmatprep.subr.mxu0 0.0
    %3884 = vmatpush1.msra.mxu0 0.0
    %3885 = vmatprep.subr.mxu0 0.0
    %3886 = vmatpush1.msra.mxu0 0.0
    %3887 = vmatprep.subr.mxu0 0.0
    %3888 = vmatpush1.msra.mxu0 %v3864
    %3889 = vmatprep.subr.mxu0 0.0
    %3890 = vmatpush1.msra.mxu0 %v3863
    %3891 = vmatprep.subr.mxu0 0.0
    %3892 = vmatpush1.msra.mxu0 %v3862
    %3893 = vmatprep.subr.mxu0 0.0
    %3894 = vmatpush1.msra.mxu0 %v3861
    %3895 = vmatprep.subr.mxu0 0.0
    %3896 = vmatpush1.msra.mxu0 %v3860
    %3897 = vmatprep.subr.mxu0 0.0
    %3898 = vmatpush2.msra.mxu0 0.0
    %3899 = vmatprep.subr.mxu0 0.0
    %3900 = vmatpush2.msra.mxu0 0.0
    %3901 = vmatprep.subr.mxu0 0.0
    %3902 = vmatpush2.msra.mxu0 0.0
    %3903 = vmatprep.subr.mxu0 0.0
    %3904 = vmatpush2.msra.mxu0 0.0
    %3905 = vmatprep.subr.mxu0 0.0
    %3906 = vmatpush2.msra.mxu0 0.0
    %3907 = vmatprep.subr.mxu0 0.0
    %3908 = vmatpush2.msra.mxu0 0.0
    %3909 = vmatprep.subr.mxu0 0.0
    %3910 = vmatpush2.msra.mxu0 0.0
    %3911 = vmatprep.subr.mxu0 0.0
    %3912 = vmatpush2.msra.mxu0 0.0
    %3913 = vmatprep.subr.mxu0 0.0
    %3914 = vmatpush2.msra.mxu0 0.0
    %3915 = vmatprep.subr.mxu0 0.0
    %3916 = vmatpush2.msra.mxu0 0.0
    %3917 = vmatprep.subr.mxu0 0.0
    %3918 = vmatpush2.msra.mxu0 0.0
    %3919 = vmatprep.subr.mxu0 0.0
    %3920 = vmatpush2.msra.mxu0 0.0
    %3921 = vmatprep.subr.mxu0 0.0
    %3922 = vmatpush2.msra.mxu0 0.0
    %3923 = vmatprep.subr.mxu0 0.0
    %3924 = vmatpush2.msra.mxu0 0.0
    %3925 = vmatprep.subr.mxu0 0.0
    %3926 = vmatpush2.msra.mxu0 0.0
    %3927 = vmatprep.subr.mxu0 0.0
    %3928 = vmatpush2.msra.mxu0 0.0
    %3929 = vmatprep.mubr.f32.mxu0 0.0
    %3930 = vmatmul.mubr.f32.gmra.mxu0 %v1799
    %v3931 = vpop.f32.mrf.mxu0
    %v3932 = vadd.f32 0.0, %v3931
    %v3933 = vpop.f32.mrf.mxu0
    %3934 = vmatprep.mubr.f32.mxu0 0.0
    %3935 = vmatmul.mubr.f32.gmra.mxu0 %v1802
    %v3936 = vpop.f32.mrf.mxu0
    %v3937 = vadd.f32 0.0, %v3936
    %v3938 = vpop.f32.mrf.mxu0
    %3939 = vmatprep.mubr.f32.mxu0 0.0
    %3940 = vmatmul.mubr.f32.gmra.mxu0 %v1805
    %v3941 = vpop.f32.mrf.mxu0
    %v3942 = vadd.f32 0.0, %v3941
    %v3943 = vpop.f32.mrf.mxu0
    %3944 = vdwg.mxu0
    %3945 = vmatprep.subr.mxu0 0.0
    %3946 = vmatpush1.msra.mxu0 0.0
    %3947 = vmatprep.subr.mxu0 0.0
    %3948 = vmatpush1.msra.mxu0 0.0
    %3949 = vmatprep.subr.mxu0 0.0
    %3950 = vmatpush1.msra.mxu0 0.0
    %3951 = vmatprep.subr.mxu0 0.0
    %3952 = vmatpush1.msra.mxu0 0.0
    %3953 = vmatprep.subr.mxu0 0.0
    %3954 = vmatpush1.msra.mxu0 0.0
    %3955 = vmatprep.subr.mxu0 0.0
    %3956 = vmatpush1.msra.mxu0 0.0
    %3957 = vmatprep.subr.mxu0 0.0
    %3958 = vmatpush1.msra.mxu0 0.0
    %3959 = vmatprep.subr.mxu0 0.0
    %3960 = vmatpush1.msra.mxu0 0.0
    %3961 = vmatprep.subr.mxu0 0.0
    %3962 = vmatpush1.msra.mxu0 0.0
    %3963 = vmatprep.subr.mxu0 0.0
    %3964 = vmatpush1.msra.mxu0 0.0
    %3965 = vmatprep.subr.mxu0 0.0
    %3966 = vmatpush1.msra.mxu0 0.0
    %3967 = vmatprep.subr.mxu0 0.0
    %3968 = vmatpush1.msra.mxu0 0.0
    %3969 = vmatprep.subr.mxu0 0.0
    %3970 = vmatpush1.msra.mxu0 0.0
    %3971 = vmatprep.subr.mxu0 0.0
    %3972 = vmatpush1.msra.mxu0 %v3942
    %3973 = vmatprep.subr.mxu0 0.0
    %3974 = vmatpush1.msra.mxu0 %v3937
    %3975 = vmatprep.subr.mxu0 0.0
    %3976 = vmatpush1.msra.mxu0 %v3932
    %3977 = vmatprep.subr.mxu0 0.0
    %3978 = vmatpush2.msra.mxu0 0.0
    %3979 = vmatprep.subr.mxu0 0.0
    %3980 = vmatpush2.msra.mxu0 0.0
    %3981 = vmatprep.subr.mxu0 0.0
    %3982 = vmatpush2.msra.mxu0 0.0
    %3983 = vmatprep.subr.mxu0 0.0
    %3984 = vmatpush2.msra.mxu0 0.0
    %3985 = vmatprep.subr.mxu0 0.0
    %3986 = vmatpush2.msra.mxu0 0.0
    %3987 = vmatprep.subr.mxu0 0.0
    %3988 = vmatpush2.msra.mxu0 0.0
    %3989 = vmatprep.subr.mxu0 0.0
    %3990 = vmatpush2.msra.mxu0 0.0
    %3991 = vmatprep.subr.mxu0 0.0
    %3992 = vmatpush2.msra.mxu0 0.0
    %3993 = vmatprep.subr.mxu0 0.0
    %3994 = vmatpush2.msra.mxu0 0.0
    %3995 = vmatprep.subr.mxu0 0.0
    %3996 = vmatpush2.msra.mxu0 0.0
    %3997 = vmatprep.subr.mxu0 0.0
    %3998 = vmatpush2.msra.mxu0 0.0
    %3999 = vmatprep.subr.mxu0 0.0
    %4000 = vmatpush2.msra.mxu0 0.0
    %4001 = vmatprep.subr.mxu0 0.0
    %4002 = vmatpush2.msra.mxu0 0.0
    %4003 = vmatprep.subr.mxu0 0.0
    %4004 = vmatpush2.msra.mxu0 0.0
    %4005 = vmatprep.subr.mxu0 0.0
    %4006 = vmatpush2.msra.mxu0 0.0
    %4007 = vmatprep.subr.mxu0 0.0
    %4008 = vmatpush2.msra.mxu0 0.0
    %4009 = vmatprep.mubr.f32.mxu0 0.0
    %4010 = vmatmul.mubr.f32.gmra.mxu0 %v1688
    %v4011 = vpop.f32.mrf.mxu0
    %v4012 = vadd.f32 0.0, %v4011
    %v4013 = vpop.f32.mrf.mxu0
    %4014 = vmatprep.mubr.f32.mxu0 0.0
    %4015 = vmatmul.mubr.f32.gmra.mxu0 %v1691
    %v4016 = vpop.f32.mrf.mxu0
    %v4017 = vadd.f32 0.0, %v4016
    %v4018 = vpop.f32.mrf.mxu0
    %4019 = vmatprep.mubr.f32.mxu0 0.0
    %4020 = vmatmul.mubr.f32.gmra.mxu0 %v1694
    %v4021 = vpop.f32.mrf.mxu0
    %v4022 = vadd.f32 0.0, %v4021
    %v4023 = vpop.f32.mrf.mxu0
    %4024 = vmatprep.mubr.f32.mxu0 0.0
    %4025 = vmatmul.mubr.f32.gmra.mxu0 %v1697
    %v4026 = vpop.f32.mrf.mxu0
    %v4027 = vadd.f32 0.0, %v4026
    %v4028 = vpop.f32.mrf.mxu0
    %4029 = vmatprep.mubr.f32.mxu0 0.0
    %4030 = vmatmul.mubr.f32.gmra.mxu0 %v1700
    %v4031 = vpop.f32.mrf.mxu0
    %v4032 = vadd.f32 0.0, %v4031
    %v4033 = vpop.f32.mrf.mxu0
    %4034 = vdwg.mxu0
    %v4035 = vmul.f32 %v3308, %v4012
    %v4036 = vmul.f32 %v3313, %v4017
    %v4037 = vmul.f32 %v3318, %v4022
    %v4038 = vmul.f32 %v3323, %v4027
    %v4039 = vmul.f32 %v3328, %v4032
    %4040 = vmatprep.subr.mxu0 0.0
    %4041 = vmatpush1.msra.mxu0 0.0
    %4042 = vmatprep.subr.mxu0 0.0
    %4043 = vmatpush1.msra.mxu0 0.0
    %4044 = vmatprep.subr.mxu0 0.0
    %4045 = vmatpush1.msra.mxu0 0.0
    %4046 = vmatprep.subr.mxu0 0.0
    %4047 = vmatpush1.msra.mxu0 0.0
    %4048 = vmatprep.subr.mxu0 0.0
    %4049 = vmatpush1.msra.mxu0 0.0
    %4050 = vmatprep.subr.mxu0 0.0
    %4051 = vmatpush1.msra.mxu0 0.0
    %4052 = vmatprep.subr.mxu0 0.0
    %4053 = vmatpush1.msra.mxu0 0.0
    %4054 = vmatprep.subr.mxu0 0.0
    %4055 = vmatpush1.msra.mxu0 0.0
    %4056 = vmatprep.subr.mxu0 0.0
    %4057 = vmatpush1.msra.mxu0 0.0
    %4058 = vmatprep.subr.mxu0 0.0
    %4059 = vmatpush1.msra.mxu0 0.0
    %4060 = vmatprep.subr.mxu0 0.0
    %4061 = vmatpush1.msra.mxu0 0.0
    %4062 = vmatprep.subr.mxu0 0.0
    %4063 = vmatpush1.msra.mxu0 %v4039
    %4064 = vmatprep.subr.mxu0 0.0
    %4065 = vmatpush1.msra.mxu0 %v4038
    %4066 = vmatprep.subr.mxu0 0.0
    %4067 = vmatpush1.msra.mxu0 %v4037
    %4068 = vmatprep.subr.mxu0 0.0
    %4069 = vmatpush1.msra.mxu0 %v4036
    %4070 = vmatprep.subr.mxu0 0.0
    %4071 = vmatpush1.msra.mxu0 %v4035
    %4072 = vmatprep.subr.mxu0 0.0
    %4073 = vmatpush2.msra.mxu0 0.0
    %4074 = vmatprep.subr.mxu0 0.0
    %4075 = vmatpush2.msra.mxu0 0.0
    %4076 = vmatprep.subr.mxu0 0.0
    %4077 = vmatpush2.msra.mxu0 0.0
    %4078 = vmatprep.subr.mxu0 0.0
    %4079 = vmatpush2.msra.mxu0 0.0
    %4080 = vmatprep.subr.mxu0 0.0
    %4081 = vmatpush2.msra.mxu0 0.0
    %4082 = vmatprep.subr.mxu0 0.0
    %4083 = vmatpush2.msra.mxu0 0.0
    %4084 = vmatprep.subr.mxu0 0.0
    %4085 = vmatpush2.msra.mxu0 0.0
    %4086 = vmatprep.subr.mxu0 0.0
    %4087 = vmatpush2.msra.mxu0 0.0
    %4088 = vmatprep.subr.mxu0 0.0
    %4089 = vmatpush2.msra.mxu0 0.0
    %4090 = vmatprep.subr.mxu0 0.0
    %4091 = vmatpush2.msra.mxu0 0.0
    %4092 = vmatprep.subr.mxu0 0.0
    %4093 = vmatpush2.msra.mxu0 0.0
    %4094 = vmatprep.subr.mxu0 0.0
    %4095 = vmatpush2.msra.mxu0 0.0
    %4096 = vmatprep.subr.mxu0 0.0
    %4097 = vmatpush2.msra.mxu0 0.0
    %4098 = vmatprep.subr.mxu0 0.0
    %4099 = vmatpush2.msra.mxu0 0.0
    %4100 = vmatprep.subr.mxu0 0.0
    %4101 = vmatpush2.msra.mxu0 0.0
    %4102 = vmatprep.subr.mxu0 0.0
    %4103 = vmatpush2.msra.mxu0 0.0
    %4104 = vmatprep.mubr.f32.mxu0 0.0
    %4105 = vmatmul.mubr.f32.gmra.mxu0 %v1799
    %v4106 = vpop.f32.mrf.mxu0
    %v4107 = vadd.f32 0.0, %v4106
    %v4108 = vpop.f32.mrf.mxu0
    %4109 = vmatprep.mubr.f32.mxu0 0.0
    %4110 = vmatmul.mubr.f32.gmra.mxu0 %v1802
    %v4111 = vpop.f32.mrf.mxu0
    %v4112 = vadd.f32 0.0, %v4111
    %v4113 = vpop.f32.mrf.mxu0
    %4114 = vmatprep.mubr.f32.mxu0 0.0
    %4115 = vmatmul.mubr.f32.gmra.mxu0 %v1805
    %v4116 = vpop.f32.mrf.mxu0
    %v4117 = vadd.f32 0.0, %v4116
    %v4118 = vpop.f32.mrf.mxu0
    %4119 = vdwg.mxu0
    %4123 = vrot.lane.b32.xlu0 %v3582, 8
    %v4124 = vpop.permute.xlu0 %4123
    %4125 = vrot.lane.b32.xlu0 %v3587, 8
    %v4126 = vpop.permute.xlu0 %4125
    %4127 = vrot.lane.b32.xlu0 %v3592, 8
    %v4128 = vpop.permute.xlu0 %4127
    %4135 = vrot.lane.b32.xlu0 %v3757, 16
    %v4136 = vpop.permute.xlu0 %4135
    %4137 = vrot.lane.b32.xlu0 %v3762, 16
    %v4138 = vpop.permute.xlu0 %4137
    %4139 = vrot.lane.b32.xlu0 %v3767, 16
    %v4140 = vpop.permute.xlu0 %4139
    %4147 = vrot.lane.b32.xlu0 %v3932, 24
    %v4148 = vpop.permute.xlu0 %4147
    %4149 = vrot.lane.b32.xlu0 %v3937, 24
    %v4150 = vpop.permute.xlu0 %4149
    %4151 = vrot.lane.b32.xlu0 %v3942, 24
    %v4152 = vpop.permute.xlu0 %4151
    %4159 = vrot.lane.b32.xlu0 %v4107, 32
    %v4160 = vpop.permute.xlu0 %4159
    %4161 = vrot.lane.b32.xlu0 %v4112, 32
    %v4162 = vpop.permute.xlu0 %4161
    %4163 = vrot.lane.b32.xlu0 %v4117, 32
    %v4164 = vpop.permute.xlu0 %4163
    %v4168 = vsel %vm181, %v3407, %v4124
    %v4169 = vsel %vm181, %v3412, %v4126
    %v4170 = vsel %vm181, %v3417, %v4128
    %v4171 = vsel %vm95, %v4168, %v4136
    %v4172 = vsel %vm95, %v4169, %v4138
    %v4173 = vsel %vm95, %v4170, %v4140
    %v4174 = vsel %vm378, %v4171, %v4148
    %v4175 = vsel %vm378, %v4172, %v4150
    %v4176 = vsel %vm378, %v4173, %v4152
    %v4177 = vsel %vm169, %v4174, %v4160
    %v4178 = vsel %vm169, %v4175, %v4162
    %v4179 = vsel %vm169, %v4176, %v4164
    %v4181 = vlaneseq
    %v4182 = vshrl.u32 %v4181, 7
    %v4183 = vsub.s32 0, %v4182
    %v4184 = vrot.slane %v2700, %v4183
    %v4187 = vsel %vm1797, %v4177, 0
    %v4190 = vsel %vm1797, %v4178, 0
    %v4193 = vsel %vm1797, %v4179, 0
    %4195 = vmatprep.subr.mxu0 0.0
    %4196 = vmatpush1.msra.mxu0 0.0
    %4197 = vmatprep.subr.mxu0 0.0
    %4198 = vmatpush1.msra.mxu0 0.0
    %4199 = vmatprep.subr.mxu0 0.0
    %4200 = vmatpush1.msra.mxu0 0.0
    %4201 = vmatprep.subr.mxu0 0.0
    %4202 = vmatpush1.msra.mxu0 0.0
    %4203 = vmatprep.subr.mxu0 0.0
    %4204 = vmatpush1.msra.mxu0 0.0
    %4205 = vmatprep.subr.mxu0 0.0
    %4206 = vmatpush1.msra.mxu0 0.0
    %4207 = vmatprep.subr.mxu0 0.0
    %4208 = vmatpush1.msra.mxu0 0.0
    %4209 = vmatprep.subr.mxu0 0.0
    %4210 = vmatpush1.msra.mxu0 0.0
    %4211 = vmatprep.subr.mxu0 0.0
    %4212 = vmatpush1.msra.mxu0 0.0
    %4213 = vmatprep.subr.mxu0 0.0
    %4214 = vmatpush1.msra.mxu0 0.0
    %4215 = vmatprep.subr.mxu0 0.0
    %4216 = vmatpush1.msra.mxu0 0.0
    %4217 = vmatprep.subr.mxu0 0.0
    %4218 = vmatpush1.msra.mxu0 %v2698
    %4219 = vmatprep.subr.mxu0 0.0
    %4220 = vmatpush1.msra.mxu0 %v2697
    %4221 = vmatprep.subr.mxu0 0.0
    %4222 = vmatpush1.msra.mxu0 %v2696
    %4223 = vmatprep.subr.mxu0 0.0
    %4224 = vmatpush1.msra.mxu0 %v2695
    %4225 = vmatprep.subr.mxu0 0.0
    %4226 = vmatpush1.msra.mxu0 %v2694
    %4227 = vmatprep.subr.mxu0 0.0
    %4228 = vmatpush2.msra.mxu0 0.0
    %4229 = vmatprep.subr.mxu0 0.0
    %4230 = vmatpush2.msra.mxu0 0.0
    %4231 = vmatprep.subr.mxu0 0.0
    %4232 = vmatpush2.msra.mxu0 0.0
    %4233 = vmatprep.subr.mxu0 0.0
    %4234 = vmatpush2.msra.mxu0 0.0
    %4235 = vmatprep.subr.mxu0 0.0
    %4236 = vmatpush2.msra.mxu0 0.0
    %4237 = vmatprep.subr.mxu0 0.0
    %4238 = vmatpush2.msra.mxu0 0.0
    %4239 = vmatprep.subr.mxu0 0.0
    %4240 = vmatpush2.msra.mxu0 0.0
    %4241 = vmatprep.subr.mxu0 0.0
    %4242 = vmatpush2.msra.mxu0 0.0
    %4243 = vmatprep.subr.mxu0 0.0
    %4244 = vmatpush2.msra.mxu0 0.0
    %4245 = vmatprep.subr.mxu0 0.0
    %4246 = vmatpush2.msra.mxu0 0.0
    %4247 = vmatprep.subr.mxu0 0.0
    %4248 = vmatpush2.msra.mxu0 0.0
    %4249 = vmatprep.subr.mxu0 0.0
    %4250 = vmatpush2.msra.mxu0 0.0
    %4251 = vmatprep.subr.mxu0 0.0
    %4252 = vmatpush2.msra.mxu0 0.0
    %4253 = vmatprep.subr.mxu0 0.0
    %4254 = vmatpush2.msra.mxu0 0.0
    %4255 = vmatprep.subr.mxu0 0.0
    %4256 = vmatpush2.msra.mxu0 0.0
    %4257 = vmatprep.subr.mxu0 0.0
    %4258 = vmatpush2.msra.mxu0 0.0
    %4259 = vmatprep.mubr.f32.mxu0 0.0
    %4260 = vmatmul.mubr.f32.gmra.mxu0 %v4187
    %v4261 = vpop.f32.mrf.mxu0
    %v4262 = vadd.f32 %v4184, %v4261
    %v4263 = vpop.f32.mrf.mxu0
    %4264 = vmatprep.mubr.f32.mxu0 0.0
    %4265 = vmatmul.mubr.f32.gmra.mxu0 %v4190
    %v4266 = vpop.f32.mrf.mxu0
    %v4267 = vadd.f32 %v4184, %v4266
    %v4268 = vpop.f32.mrf.mxu0
    %4269 = vmatprep.mubr.f32.mxu0 0.0
    %4270 = vmatmul.mubr.f32.gmra.mxu0 %v4193
    %v4271 = vpop.f32.mrf.mxu0
    %v4272 = vadd.f32 %v4184, %v4271
    %v4273 = vpop.f32.mrf.mxu0
    %4274 = vdwg.mxu0
    %v4275 = vmul.f32 %v4262, 0.5
    %v4276 = vmul.f32 %v4267, 0.5
    %v4277 = vmul.f32 %v4272, 0.5
    %v4278 = vmul.f32 %v4262, 0.70710677
    %v4279 = vmul.f32 %v4267, 0.70710677
    %v4280 = vmul.f32 %v4272, 0.70710677
    %v4281 = verf.f32.pop %v4278
    %v4282 = verf.f32.pop %v4279
    %v4283 = verf.f32.pop %v4280
    %v4284 = vadd.f32 %v4281, 1.0
    %v4285 = vadd.f32 %v4282, 1.0
    %v4286 = vadd.f32 %v4283, 1.0
    %v4287 = vmul.f32 %v4275, %v4284
    %v4288 = vmul.f32 %v4276, %v4285
    %v4289 = vmul.f32 %v4277, %v4286
    %v4291 = vlaneseq
    %v4292 = vshrl.u32 %v4291, 7
    %v4293 = vsub.s32 0, %v4292
    %v4294 = vrot.slane %v2708, %v4293
    %v4297 = vsel %vm1797, %v4287, 0
    %v4300 = vsel %vm1797, %v4288, 0
    %v4303 = vsel %vm1797, %v4289, 0
    %4305 = vmatprep.subr.mxu0 0.0
    %4306 = vmatpush1.msra.mxu0 0.0
    %4307 = vmatprep.subr.mxu0 0.0
    %4308 = vmatpush1.msra.mxu0 0.0
    %4309 = vmatprep.subr.mxu0 0.0
    %4310 = vmatpush1.msra.mxu0 0.0
    %4311 = vmatprep.subr.mxu0 0.0
    %4312 = vmatpush1.msra.mxu0 0.0
    %4313 = vmatprep.subr.mxu0 0.0
    %4314 = vmatpush1.msra.mxu0 0.0
    %4315 = vmatprep.subr.mxu0 0.0
    %4316 = vmatpush1.msra.mxu0 0.0
    %4317 = vmatprep.subr.mxu0 0.0
    %4318 = vmatpush1.msra.mxu0 0.0
    %4319 = vmatprep.subr.mxu0 0.0
    %4320 = vmatpush1.msra.mxu0 0.0
    %4321 = vmatprep.subr.mxu0 0.0
    %4322 = vmatpush1.msra.mxu0 0.0
    %4323 = vmatprep.subr.mxu0 0.0
    %4324 = vmatpush1.msra.mxu0 0.0
    %4325 = vmatprep.subr.mxu0 0.0
    %4326 = vmatpush1.msra.mxu0 0.0
    %4327 = vmatprep.subr.mxu0 0.0
    %4328 = vmatpush1.msra.mxu0 %v2706
    %4329 = vmatprep.subr.mxu0 0.0
    %4330 = vmatpush1.msra.mxu0 %v2705
    %4331 = vmatprep.subr.mxu0 0.0
    %4332 = vmatpush1.msra.mxu0 %v2704
    %4333 = vmatprep.subr.mxu0 0.0
    %4334 = vmatpush1.msra.mxu0 %v2703
    %4335 = vmatprep.subr.mxu0 0.0
    %4336 = vmatpush1.msra.mxu0 %v2702
    %4337 = vmatprep.subr.mxu0 0.0
    %4338 = vmatpush2.msra.mxu0 0.0
    %4339 = vmatprep.subr.mxu0 0.0
    %4340 = vmatpush2.msra.mxu0 0.0
    %4341 = vmatprep.subr.mxu0 0.0
    %4342 = vmatpush2.msra.mxu0 0.0
    %4343 = vmatprep.subr.mxu0 0.0
    %4344 = vmatpush2.msra.mxu0 0.0
    %4345 = vmatprep.subr.mxu0 0.0
    %4346 = vmatpush2.msra.mxu0 0.0
    %4347 = vmatprep.subr.mxu0 0.0
    %4348 = vmatpush2.msra.mxu0 0.0
    %4349 = vmatprep.subr.mxu0 0.0
    %4350 = vmatpush2.msra.mxu0 0.0
    %4351 = vmatprep.subr.mxu0 0.0
    %4352 = vmatpush2.msra.mxu0 0.0
    %4353 = vmatprep.subr.mxu0 0.0
    %4354 = vmatpush2.msra.mxu0 0.0
    %4355 = vmatprep.subr.mxu0 0.0
    %4356 = vmatpush2.msra.mxu0 0.0
    %4357 = vmatprep.subr.mxu0 0.0
    %4358 = vmatpush2.msra.mxu0 0.0
    %4359 = vmatprep.subr.mxu0 0.0
    %4360 = vmatpush2.msra.mxu0 0.0
    %4361 = vmatprep.subr.mxu0 0.0
    %4362 = vmatpush2.msra.mxu0 0.0
    %4363 = vmatprep.subr.mxu0 0.0
    %4364 = vmatpush2.msra.mxu0 0.0
    %4365 = vmatprep.subr.mxu0 0.0
    %4366 = vmatpush2.msra.mxu0 0.0
    %4367 = vmatprep.subr.mxu0 0.0
    %4368 = vmatpush2.msra.mxu0 0.0
    %4369 = vmatprep.mubr.f32.mxu0 0.0
    %4370 = vmatmul.mubr.f32.gmra.mxu0 %v4297
    %v4371 = vpop.f32.mrf.mxu0
    %v4372 = vadd.f32 %v4294, %v4371
    %v4373 = vpop.f32.mrf.mxu0
    %4374 = vmatprep.mubr.f32.mxu0 0.0
    %4375 = vmatmul.mubr.f32.gmra.mxu0 %v4300
    %v4376 = vpop.f32.mrf.mxu0
    %v4377 = vadd.f32 %v4294, %v4376
    %v4378 = vpop.f32.mrf.mxu0
    %4379 = vmatprep.mubr.f32.mxu0 0.0
    %4380 = vmatmul.mubr.f32.gmra.mxu0 %v4303
    %v4381 = vpop.f32.mrf.mxu0
    %v4382 = vadd.f32 %v4294, %v4381
    %v4383 = vpop.f32.mrf.mxu0
    %4384 = vdwg.mxu0
    %v4385 = vmul.f32 %v2680, 2.0
    %v4386 = vmul.f32 %v2681, 2.0
    %v4387 = vmul.f32 %v2682, 2.0
    %v4388 = vadd.f32 %v4372, %v4385
    %v4389 = vadd.f32 %v4377, %v4386
    %v4390 = vadd.f32 %v4382, %v4387
    %4391 = vst.msk [vmem:[%s27] sm:$0xff] %vm169, %v4388
    %4392 = vst.msk [vmem:[%s27 + $0x8] sm:$0xff] %vm169, %v4389
    %4393 = vst.msk [vmem:[%s27 + $0x10] sm:$0xff] %vm169, %v4390
    // Predicated region
    $region102: #{_piformer_core.1} parent=1 // pred_check
      _
    $region103: #{_piformer_core.1} parent=1 // pred_check_branch
      %4395 = sbr.rel (0) target = $region105
    $region104: #{_piformer_core.1} parent=1 // pred_region
      %s4397 = ssub.s32 128, 128
      %4398 = vsyncadd [#allocation3], %s4397
      %s4400 = sshll.u32 [#allocation2], 4
      %s4401 = int_to_ptr.vmem [resolvable:$true] %s4400
      %4403 = dma.vmem_to_hbm [thread:$0]  %s4401, 128, %s25, [#allocation3]
    $region105: #{_piformer_core.1} parent=1 // pred_fallthru
      _
    // Predicated region
    $region106: #{_piformer_core.1} parent=1 // pred_check
      _
    $region107: #{_piformer_core.1} parent=1 // pred_check_branch
      %4405 = sbr.rel (0) target = $region109
    $region108: #{_piformer_core.1} parent=1 // pred_region
      %s4407 = ssub.s32 256, 256
      %4408 = vsyncadd [#allocation5], %s4407
      %s4409 = sshll.u32 [#allocation4], 4
      %s4410 = int_to_ptr.vmem [resolvable:$true] %s4409
      %4415 = dma.vmem_to_hbm [thread:$0]  %s4410, 256, %s26, [#allocation5], 128, 128, 8
    $region109: #{_piformer_core.1} parent=1 // pred_fallthru
      _
    // Predicated region
    $region110: #{_piformer_core.1} parent=1 // pred_check
      _
    $region111: #{_piformer_core.1} parent=1 // pred_check_branch
      %4417 = sbr.rel (0) target = $region113
    $region112: #{_piformer_core.1} parent=1 // pred_region
      _
    $region113: #{_piformer_core.1} parent=1 // pred_fallthru
      _
    // Predicated region
    $region114: #{_piformer_core.1} parent=1 // pred_check
      _
    $region115: #{_piformer_core.1} parent=1 // pred_check_branch
      %4419 = sbr.rel (0) target = $region117
    $region116: #{_piformer_core.1} parent=1 // pred_region
      %4420 = dma.done [#allocation3], 128
    $region117: #{_piformer_core.1} parent=1 // pred_fallthru
      _
    // Predicated region
    $region118: #{_piformer_core.1} parent=1 // pred_check
      _
    $region119: #{_piformer_core.1} parent=1 // pred_check_branch
      %4422 = sbr.rel (0) target = $region121
    $region120: #{_piformer_core.1} parent=1 // pred_region
      %4423 = dma.done [#allocation5], 256
    $region121: #{_piformer_core.1} parent=1 // pred_fallthru
      _
    // Predicated region
    $region122: #{_piformer_core.1} parent=1 // pred_check
      _
    $region123: #{_piformer_core.1} parent=1 // pred_check_branch
      %4425 = sbr.rel (0) target = $region125
    $region124: #{_piformer_core.1} parent=1 // pred_region
      _
    $region125: #{_piformer_core.1} parent=1 // pred_fallthru
      _
    %4426 = vsyncpa [#allocation3], 1
    %4427 = vsyncpa [#allocation5], 1

</llo_original>
